<compile_context>
chip_gen: v6e
topology: v6e:2x2x1
jax: 0.10.0
libtpu: 0.0.40
codegen_flags: <defaults>
</compile_context>

<pallas_src>
import functools
import math

import jax
import jax.numpy as jnp
from jax.experimental import pallas as pl
from jax.experimental.pallas import tpu as pltpu

CFG = dict(
    vocab_size=256,
    context_length=8,
    emb_dim=32,
    n_heads=4,
    n_layers=2,
    drop_rate=0.0,   # dropout == identity
    qkv_bias=False,
)

_EPS = 1e-5
_SQRT_2_OVER_PI = math.sqrt(2.0 / math.pi)

# bf16 storage for all matmul weights (tok/pos embeddings, qkv, out-proj, MLP,
# vocab head). Compute stays f32: weights are cast up inside the kernel and
# every dot uses preferred_element_type=f32.
WEIGHT_DTYPE = jnp.bfloat16


# ----------------------------- in-kernel helpers -----------------------------

def _layernorm(x, scale, shift):
    # mean / biased variance over last dim (matches torch var(unbiased=False))
    mean = jnp.mean(x, axis=-1, keepdims=True)
    var = jnp.mean((x - mean) ** 2, axis=-1, keepdims=True)
    return scale * ((x - mean) * jax.lax.rsqrt(var + _EPS)) + shift


def _gelu(x):
    # tanh-approximation GELU, exactly as in the reference GELU module
    return 0.5 * x * (1.0 + jnp.tanh(_SQRT_2_OVER_PI * (x + 0.044715 * x ** 3)))


# ------------------------------ fused GPT kernel ------------------------------

def gpt_kernel(
    idx_ref, tok_emb_ref, pos_ref, mask_ref,
    ln1_s_ref, ln1_b_ref, wqkv_ref, wo_ref, bo_ref,
    ln2_s_ref, ln2_b_ref, w1_ref, b1_ref, w2_ref, b2_ref,
    lnf_s_ref, lnf_b_ref, wout_ref,
    out_ref,
    ctx_scratch,
    *, n_layers, n_heads, batch, seq,
):
    f32 = jnp.float32
    B, T, H = batch, seq, n_heads
    N = B * T
    V, D = tok_emb_ref.shape
    hd = D // H
    inv_sqrt_hd = 1.0 / math.sqrt(hd)

    # ---- token embedding: one-hot gather on the MXU + fused positional add ----
    ids = idx_ref[...]                                             # (N, 1) int32
    vocab_iota = jax.lax.broadcasted_iota(jnp.int32, (N, V), 1)
    onehot = (ids == vocab_iota).astype(f32)                       # (N, V)
    x = jnp.dot(onehot, tok_emb_ref[...].astype(f32),
                preferred_element_type=f32)                        # (N, D) f32
    x = (x.reshape(B, T, D) + pos_ref[...].astype(f32)).reshape(N, D)

    mask_bias = mask_ref[...][None]                                # (1, T, T) f32

    for l in range(n_layers):                    # static unroll (n_layers = 2)
        # ---------- attention sub-layer ----------
        h = _layernorm(x, ln1_s_ref[l], ln1_b_ref[l])              # (N, D) f32
        qkv = jnp.dot(h, wqkv_ref[l].astype(f32),
                      preferred_element_type=f32)                  # (N, 3D)
        q = qkv[:, 0:D] * inv_sqrt_hd            # fold 1/sqrt(hd) into Q
        k = qkv[:, D:2 * D]
        v = qkv[:, 2 * D:3 * D]

        def split_heads(t):
            # (N, D) -> (H*B, T, hd); z = h*B + b (same ordering for q/k/v/ctx)
            heads = jnp.stack(
                [t[:, hh * hd:(hh + 1) * hd] for hh in range(H)], axis=0)  # (H,N,hd)
            return heads.reshape(H * B, T, hd)

        qz, kz, vz = split_heads(q), split_heads(k), split_heads(v)
        s = jnp.einsum('znd,zmd->znm', qz, kz,
                       preferred_element_type=f32)                 # (H*B, T, T)
        s = s + mask_bias                                          # causal mask
        m = jnp.max(s, axis=-1, keepdims=True)
        e = jnp.exp(s - m)
        p = e * pl.reciprocal(jnp.sum(e, axis=-1, keepdims=True), approx=True)
        ctx = jnp.einsum('znm,zmd->znd', p, vz,
                         preferred_element_type=f32)               # (H*B, T, hd)

        # reassemble heads -> (N, D) via static lane-slice stores to scratch
        ctx_hn = ctx.reshape(H, N, hd)
        for hh in range(H):
            ctx_scratch[:, hh * hd:(hh + 1) * hd] = ctx_hn[hh]
        ctx_nd = ctx_scratch[...]                                  # (N, D)

        proj = jnp.dot(ctx_nd, wo_ref[l].astype(f32),
                       preferred_element_type=f32) + bo_ref[l]
        x = x + proj                                               # residual 1

        # ---------- feed-forward sub-layer ----------
        h2 = _layernorm(x, ln2_s_ref[l], ln2_b_ref[l])
        f = jnp.dot(h2, w1_ref[l].astype(f32),
                    preferred_element_type=f32) + b1_ref[l]
        f = _gelu(f)
        f = jnp.dot(f, w2_ref[l].astype(f32),
                    preferred_element_type=f32) + b2_ref[l]
        x = x + f                                                  # residual 2

    # ---- final LayerNorm + vocab head (lane-dense output: V = 256) ----
    hf = _layernorm(x, lnf_s_ref[...], lnf_b_ref[...])
    out_ref[...] = jnp.dot(hf, wout_ref[...].astype(f32),
                           preferred_element_type=f32)


def gpt_forward(in_idx, packed, cfg):
    B, T = in_idx.shape
    D, V = cfg["emb_dim"], cfg["vocab_size"]
    N = B * T

    idx = in_idx.reshape(N, 1).astype(jnp.int32)
    operands = (
        idx,
        packed["tok_emb"],
        packed["pos_emb"][:T],
        packed["mask"][:T, :T],
        packed["ln1_s"], packed["ln1_b"],
        packed["wqkv"], packed["wo"], packed["bo"],
        packed["ln2_s"], packed["ln2_b"],
        packed["w1"], packed["b1"], packed["w2"], packed["b2"],
        packed["lnf_s"], packed["lnf_b"],
        packed["out_head"],
    )

    kernel = functools.partial(
        gpt_kernel,
        n_layers=cfg["n_layers"], n_heads=cfg["n_heads"], batch=B, seq=T)

    vmem = pl.BlockSpec(memory_space=pltpu.MemorySpace.VMEM)
    logits = pl.pallas_call(
        kernel,
        out_shape=jax.ShapeDtypeStruct((N, V), jnp.float32),
        in_specs=[vmem] * len(operands),       # every operand VMEM-resident
        out_specs=vmem,
        scratch_shapes=[pltpu.VMEM((N, D), jnp.float32)],   # ctx reassembly
        compiler_params=pltpu.CompilerParams(vmem_limit_bytes=32 * 1024 * 1024),
    )(*operands)
    return logits.reshape(B, T, V)


# ------------------------------ parameter init --------------------------------

def init_params(key, cfg):
    V, C, D = cfg["vocab_size"], cfg["context_length"], cfg["emb_dim"]
    Hdn = 4 * D
    n_keys = 2 + cfg["n_layers"] * 6 + 1
    keys = iter(jax.random.split(key, n_keys))
    std = 0.02

    def nrm(shape):
        return std * jax.random.normal(next(keys), shape, dtype=jnp.float32)

    params = {
        "tok_emb": nrm((V, D)),
        "pos_emb": nrm((C, D)),
        "blocks": [],
        "lnf_s": jnp.ones((1, D), jnp.float32),
        "lnf_b": jnp.zeros((1, D), jnp.float32),
    }
    for _ in range(cfg["n_layers"]):
        params["blocks"].append(dict(
            ln1_s=jnp.ones((1, D), jnp.float32), ln1_b=jnp.zeros((1, D), jnp.float32),
            wq=nrm((D, D)), wk=nrm((D, D)), wv=nrm((D, D)),   # qkv_bias=False
            wo=nrm((D, D)), bo=jnp.zeros((1, D), jnp.float32),
            ln2_s=jnp.ones((1, D), jnp.float32), ln2_b=jnp.zeros((1, D), jnp.float32),
            w1=nrm((D, Hdn)), b1=jnp.zeros((1, Hdn), jnp.float32),
            w2=nrm((Hdn, D)), b2=jnp.zeros((1, D), jnp.float32),
        ))
    params["out_head"] = nrm((D, V))   # Linear(emb_dim, vocab_size, bias=False)
    return params


def pack_params(params, cfg):
    """Host-side, done once: stack per-layer params along L, concat QKV weights
    into one (D, 3D) matrix, cast matmul weights to bf16, and precompute the
    static causal-mask bias."""
    C = cfg["context_length"]
    blocks = params["blocks"]

    def stack(name, dtype=jnp.float32):
        return jnp.stack([b[name] for b in blocks]).astype(dtype)

    r = jnp.arange(C)
    mask = jnp.where(r[None, :] <= r[:, None], 0.0, -1e30).astype(jnp.float32)

    return {
        "tok_emb": params["tok_emb"].astype(WEIGHT_DTYPE),
        "pos_emb": params["pos_emb"].astype(WEIGHT_DTYPE),
        "mask": mask,                                              # (C, C) f32
        "ln1_s": stack("ln1_s"), "ln1_b": stack("ln1_b"),
        "wqkv": jnp.stack([jnp.concatenate([b["wq"], b["wk"], b["wv"]], axis=1)
                           for b in blocks]).astype(WEIGHT_DTYPE),  # (L, D, 3D)
        "wo": stack("wo", WEIGHT_DTYPE),
        "bo": stack("bo"),
        "ln2_s": stack("ln2_s"), "ln2_b": stack("ln2_b"),
        "w1": stack("w1", WEIGHT_DTYPE), "b1": stack("b1"),
        "w2": stack("w2", WEIGHT_DTYPE), "b2": stack("b2"),
        "lnf_s": params["lnf_s"], "lnf_b": params["lnf_b"],
        "out_head": params["out_head"].astype(WEIGHT_DTYPE),
    }


# ----------------------------------- main --------------------------------------

if __name__ == "__main__":
    key = jax.random.PRNGKey(0)
    k_params, k_idx = jax.random.split(key)
    params = init_params(k_params, CFG)
    packed = pack_params(params, CFG)

    B, T = 2, CFG["context_length"]
    in_idx = jax.random.randint(k_idx, (B, T), 0, CFG["vocab_size"], dtype=jnp.int32)

    logits = gpt_forward(in_idx, packed, CFG)
    logits = jax.block_until_ready(logits)
    assert logits.shape == (B, T, CFG["vocab_size"])
    assert bool(jnp.all(jnp.isfinite(logits)))
    print("KERNEL_OK")
</pallas_src>

<mosaic_0001>
module attributes {stable_mosaic.version = 11 : i64} {
  func.func @gpt_kernel(%arg0: memref<16x1xi32, #tpu.memory_space<vmem>>, %arg1: memref<256x32xbf16, #tpu.memory_space<vmem>>, %arg2: memref<8x32xbf16, #tpu.memory_space<vmem>>, %arg3: memref<8x8xf32, #tpu.memory_space<vmem>>, %arg4: memref<2x1x32xf32, #tpu.memory_space<vmem>>, %arg5: memref<2x1x32xf32, #tpu.memory_space<vmem>>, %arg6: memref<2x32x96xbf16, #tpu.memory_space<vmem>>, %arg7: memref<2x32x32xbf16, #tpu.memory_space<vmem>>, %arg8: memref<2x1x32xf32, #tpu.memory_space<vmem>>, %arg9: memref<2x1x32xf32, #tpu.memory_space<vmem>>, %arg10: memref<2x1x32xf32, #tpu.memory_space<vmem>>, %arg11: memref<2x32x128xbf16, #tpu.memory_space<vmem>>, %arg12: memref<2x1x128xf32, #tpu.memory_space<vmem>>, %arg13: memref<2x128x32xbf16, #tpu.memory_space<vmem>>, %arg14: memref<2x1x32xf32, #tpu.memory_space<vmem>>, %arg15: memref<1x32xf32, #tpu.memory_space<vmem>>, %arg16: memref<1x32xf32, #tpu.memory_space<vmem>>, %arg17: memref<32x256xbf16, #tpu.memory_space<vmem>>, %arg18: memref<16x256xf32, #tpu.memory_space<vmem>>, %arg19: memref<16x32xf32, #tpu.memory_space<vmem>>) attributes {dimension_semantics = [], scalar_prefetch = 0 : i64, scratch_operands = 1 : i64, tpu.core_type = #tpu.core_type<tc>} {
    %c0 = arith.constant 0 : index
    %c0_0 = arith.constant 0 : index
    %0 = vector.load %arg0[%c0, %c0_0] : memref<16x1xi32, #tpu.memory_space<vmem>>, vector<16x1xi32>
    %1 = tpu.iota {dimensions = array<i32: 1>} : vector<16x256xi32>
    %2 = vector.broadcast %0 : vector<16x1xi32> to vector<16x256xi32>
    %3 = arith.cmpi eq, %2, %1 : vector<16x256xi32>
    %4 = arith.extui %3 : vector<16x256xi1> to vector<16x256xi32>
    %5 = arith.sitofp %4 : vector<16x256xi32> to vector<16x256xf32>
    %c0_1 = arith.constant 0 : index
    %c0_2 = arith.constant 0 : index
    %6 = vector.load %arg1[%c0_1, %c0_2] : memref<256x32xbf16, #tpu.memory_space<vmem>>, vector<256x32xbf16>
    %7 = arith.extf %6 : vector<256x32xbf16> to vector<256x32xf32>
    %cst = arith.constant dense<0.000000e+00> : vector<16x32xf32>
    %8 = tpu.matmul %5, %7, %cst {dimension_numbers = #tpu.dot_dimension_numbers<[1], [0], [0], [1], [0, 0, 1, 1], [], []>} : vector<16x256xf32>, vector<256x32xf32>, vector<16x32xf32> -> vector<16x32xf32>
    %9 = vector.shape_cast %8 : vector<16x32xf32> to vector<2x8x32xf32>
    %c0_3 = arith.constant 0 : index
    %c0_4 = arith.constant 0 : index
    %10 = vector.load %arg2[%c0_3, %c0_4] : memref<8x32xbf16, #tpu.memory_space<vmem>>, vector<8x32xbf16>
    %11 = arith.extf %10 : vector<8x32xbf16> to vector<8x32xf32>
    %12 = vector.shape_cast %11 : vector<8x32xf32> to vector<1x8x32xf32>
    %13 = vector.broadcast %12 : vector<1x8x32xf32> to vector<2x8x32xf32>
    %14 = arith.addf %9, %13 : vector<2x8x32xf32>
    %15 = vector.shape_cast %14 : vector<2x8x32xf32> to vector<16x32xf32>
    %c0_5 = arith.constant 0 : index
    %c0_6 = arith.constant 0 : index
    %16 = vector.load %arg3[%c0_5, %c0_6] : memref<8x8xf32, #tpu.memory_space<vmem>>, vector<8x8xf32>
    %17 = vector.shape_cast %16 : vector<8x8xf32> to vector<1x8x8xf32>
    %c0_7 = arith.constant 0 : index
    %c0_8 = arith.constant 0 : index
    %c0_9 = arith.constant 0 : index
    %18 = vector.load %arg4[%c0_7, %c0_8, %c0_9] : memref<2x1x32xf32, #tpu.memory_space<vmem>>, vector<1x1x32xf32>
    %19 = vector.shape_cast %18 : vector<1x1x32xf32> to vector<1x32xf32>
    %c0_10 = arith.constant 0 : index
    %c0_11 = arith.constant 0 : index
    %c0_12 = arith.constant 0 : index
    %20 = vector.load %arg5[%c0_10, %c0_11, %c0_12] : memref<2x1x32xf32, #tpu.memory_space<vmem>>, vector<1x1x32xf32>
    %21 = vector.shape_cast %20 : vector<1x1x32xf32> to vector<1x32xf32>
    %cst_13 = arith.constant dense<0.000000e+00> : vector<16xf32>
    %22 = vector.multi_reduction <add>, %15, %cst_13 [1] : vector<16x32xf32> to vector<16xf32>
    %23 = vector.shape_cast %22 : vector<16xf32> to vector<16x1xf32>
    %cst_14 = arith.constant 3.200000e+01 : f32
    %24 = vector.broadcast %cst_14 : f32 to vector<16x1xf32>
    %25 = arith.divf %23, %24 : vector<16x1xf32>
    %26 = vector.broadcast %25 : vector<16x1xf32> to vector<16x32xf32>
    %27 = arith.subf %15, %26 : vector<16x32xf32>
    %28 = arith.mulf %27, %27 : vector<16x32xf32>
    %cst_15 = arith.constant dense<0.000000e+00> : vector<16xf32>
    %29 = vector.multi_reduction <add>, %28, %cst_15 [1] : vector<16x32xf32> to vector<16xf32>
    %30 = vector.shape_cast %29 : vector<16xf32> to vector<16x1xf32>
    %cst_16 = arith.constant 3.200000e+01 : f32
    %31 = vector.broadcast %cst_16 : f32 to vector<16x1xf32>
    %32 = arith.divf %30, %31 : vector<16x1xf32>
    %33 = vector.broadcast %25 : vector<16x1xf32> to vector<16x32xf32>
    %34 = arith.subf %15, %33 : vector<16x32xf32>
    %cst_17 = arith.constant 9.99999974E-6 : f32
    %35 = vector.broadcast %cst_17 : f32 to vector<16x1xf32>
    %36 = arith.addf %32, %35 : vector<16x1xf32>
    %37 = math.rsqrt %36 : vector<16x1xf32>
    %38 = vector.broadcast %37 : vector<16x1xf32> to vector<16x32xf32>
    %39 = arith.mulf %34, %38 : vector<16x32xf32>
    %40 = vector.broadcast %19 : vector<1x32xf32> to vector<16x32xf32>
    %41 = arith.mulf %40, %39 : vector<16x32xf32>
    %42 = vector.broadcast %21 : vector<1x32xf32> to vector<16x32xf32>
    %43 = arith.addf %41, %42 : vector<16x32xf32>
    %c0_18 = arith.constant 0 : index
    %c0_19 = arith.constant 0 : index
    %c0_20 = arith.constant 0 : index
    %44 = vector.load %arg6[%c0_18, %c0_19, %c0_20] : memref<2x32x96xbf16, #tpu.memory_space<vmem>>, vector<1x32x96xbf16>
    %45 = vector.shape_cast %44 : vector<1x32x96xbf16> to vector<32x96xbf16>
    %46 = arith.extf %45 : vector<32x96xbf16> to vector<32x96xf32>
    %cst_21 = arith.constant dense<0.000000e+00> : vector<16x96xf32>
    %47 = tpu.matmul %43, %46, %cst_21 {dimension_numbers = #tpu.dot_dimension_numbers<[1], [0], [0], [1], [0, 0, 1, 1], [], []>} : vector<16x32xf32>, vector<32x96xf32>, vector<16x96xf32> -> vector<16x96xf32>
    %48 = vector.extract_strided_slice %47 {offsets = [0, 0], sizes = [16, 32], strides = [1, 1]} : vector<16x96xf32> to vector<16x32xf32>
    %cst_22 = arith.constant 0.353553385 : f32
    %49 = vector.broadcast %cst_22 : f32 to vector<16x32xf32>
    %50 = arith.mulf %48, %49 : vector<16x32xf32>
    %51 = vector.extract_strided_slice %47 {offsets = [0, 32], sizes = [16, 32], strides = [1, 1]} : vector<16x96xf32> to vector<16x32xf32>
    %52 = vector.extract_strided_slice %47 {offsets = [0, 64], sizes = [16, 32], strides = [1, 1]} : vector<16x96xf32> to vector<16x32xf32>
    %53 = vector.extract_strided_slice %50 {offsets = [0, 0], sizes = [16, 8], strides = [1, 1]} : vector<16x32xf32> to vector<16x8xf32>
    %54 = vector.extract_strided_slice %50 {offsets = [0, 8], sizes = [16, 8], strides = [1, 1]} : vector<16x32xf32> to vector<16x8xf32>
    %55 = vector.extract_strided_slice %50 {offsets = [0, 16], sizes = [16, 8], strides = [1, 1]} : vector<16x32xf32> to vector<16x8xf32>
    %56 = vector.extract_strided_slice %50 {offsets = [0, 24], sizes = [16, 8], strides = [1, 1]} : vector<16x32xf32> to vector<16x8xf32>
    %57 = vector.shape_cast %53 : vector<16x8xf32> to vector<1x16x8xf32>
    %58 = vector.shape_cast %54 : vector<16x8xf32> to vector<1x16x8xf32>
    %59 = vector.shape_cast %55 : vector<16x8xf32> to vector<1x16x8xf32>
    %60 = vector.shape_cast %56 : vector<16x8xf32> to vector<1x16x8xf32>
    %61 = tpu.concatenate %57, %58, %59, %60 in 0 : vector<1x16x8xf32>, vector<1x16x8xf32>, vector<1x16x8xf32>, vector<1x16x8xf32> -> vector<4x16x8xf32>
    %62 = vector.shape_cast %61 : vector<4x16x8xf32> to vector<8x8x8xf32>
    %63 = vector.extract_strided_slice %51 {offsets = [0, 0], sizes = [16, 8], strides = [1, 1]} : vector<16x32xf32> to vector<16x8xf32>
    %64 = vector.extract_strided_slice %51 {offsets = [0, 8], sizes = [16, 8], strides = [1, 1]} : vector<16x32xf32> to vector<16x8xf32>
    %65 = vector.extract_strided_slice %51 {offsets = [0, 16], sizes = [16, 8], strides = [1, 1]} : vector<16x32xf32> to vector<16x8xf32>
    %66 = vector.extract_strided_slice %51 {offsets = [0, 24], sizes = [16, 8], strides = [1, 1]} : vector<16x32xf32> to vector<16x8xf32>
    %67 = vector.shape_cast %63 : vector<16x8xf32> to vector<1x16x8xf32>
    %68 = vector.shape_cast %64 : vector<16x8xf32> to vector<1x16x8xf32>
    %69 = vector.shape_cast %65 : vector<16x8xf32> to vector<1x16x8xf32>
    %70 = vector.shape_cast %66 : vector<16x8xf32> to vector<1x16x8xf32>
    %71 = tpu.concatenate %67, %68, %69, %70 in 0 : vector<1x16x8xf32>, vector<1x16x8xf32>, vector<1x16x8xf32>, vector<1x16x8xf32> -> vector<4x16x8xf32>
    %72 = vector.shape_cast %71 : vector<4x16x8xf32> to vector<8x8x8xf32>
    %73 = vector.extract_strided_slice %52 {offsets = [0, 0], sizes = [16, 8], strides = [1, 1]} : vector<16x32xf32> to vector<16x8xf32>
    %74 = vector.extract_strided_slice %52 {offsets = [0, 8], sizes = [16, 8], strides = [1, 1]} : vector<16x32xf32> to vector<16x8xf32>
    %75 = vector.extract_strided_slice %52 {offsets = [0, 16], sizes = [16, 8], strides = [1, 1]} : vector<16x32xf32> to vector<16x8xf32>
    %76 = vector.extract_strided_slice %52 {offsets = [0, 24], sizes = [16, 8], strides = [1, 1]} : vector<16x32xf32> to vector<16x8xf32>
    %77 = vector.shape_cast %73 : vector<16x8xf32> to vector<1x16x8xf32>
    %78 = vector.shape_cast %74 : vector<16x8xf32> to vector<1x16x8xf32>
    %79 = vector.shape_cast %75 : vector<16x8xf32> to vector<1x16x8xf32>
    %80 = vector.shape_cast %76 : vector<16x8xf32> to vector<1x16x8xf32>
    %81 = tpu.concatenate %77, %78, %79, %80 in 0 : vector<1x16x8xf32>, vector<1x16x8xf32>, vector<1x16x8xf32>, vector<1x16x8xf32> -> vector<4x16x8xf32>
    %82 = vector.shape_cast %81 : vector<4x16x8xf32> to vector<8x8x8xf32>
    "tpu.trace_start"() <{level = 10 : i32, message = "znd,zmd->znm"}> : () -> ()
    %cst_23 = arith.constant dense<0.000000e+00> : vector<8x8x8xf32>
    %83 = tpu.matmul %62, %72, %cst_23 {dimension_numbers = #tpu.dot_dimension_numbers<[2], [2], [1], [1], [0, 0, 0, 1, 1, 1], [0], [0]>} : vector<8x8x8xf32>, vector<8x8x8xf32>, vector<8x8x8xf32> -> vector<8x8x8xf32>
    "tpu.trace_stop"() : () -> ()
    %84 = vector.broadcast %17 : vector<1x8x8xf32> to vector<8x8x8xf32>
    %85 = arith.addf %83, %84 : vector<8x8x8xf32>
    %cst_24 = arith.constant dense<0xFF800000> : vector<8x8xf32>
    %86 = vector.multi_reduction <maximumf>, %85, %cst_24 [2] : vector<8x8x8xf32> to vector<8x8xf32>
    %87 = vector.shape_cast %86 : vector<8x8xf32> to vector<8x8x1xf32>
    %88 = vector.broadcast %87 : vector<8x8x1xf32> to vector<8x8x8xf32>
    %89 = arith.subf %85, %88 : vector<8x8x8xf32>
    %90 = math.exp %89 : vector<8x8x8xf32>
    %cst_25 = arith.constant dense<0.000000e+00> : vector<8x8xf32>
    %91 = vector.multi_reduction <add>, %90, %cst_25 [2] : vector<8x8x8xf32> to vector<8x8xf32>
    %92 = vector.shape_cast %91 : vector<8x8xf32> to vector<8x8x1xf32>
    %93 = tpu.reciprocal %92 {approx = true} : vector<8x8x1xf32> -> vector<8x8x1xf32>
    %94 = vector.broadcast %93 : vector<8x8x1xf32> to vector<8x8x8xf32>
    %95 = arith.mulf %90, %94 : vector<8x8x8xf32>
    "tpu.trace_start"() <{level = 10 : i32, message = "znm,zmd->znd"}> : () -> ()
    %cst_26 = arith.constant dense<0.000000e+00> : vector<8x8x8xf32>
    %96 = tpu.matmul %95, %82, %cst_26 {dimension_numbers = #tpu.dot_dimension_numbers<[2], [1], [1], [2], [0, 0, 0, 1, 1, 2], [0], [0]>} : vector<8x8x8xf32>, vector<8x8x8xf32>, vector<8x8x8xf32> -> vector<8x8x8xf32>
    "tpu.trace_stop"() : () -> ()
    %97 = vector.shape_cast %96 : vector<8x8x8xf32> to vector<4x16x8xf32>
    %98 = vector.extract_strided_slice %97 {offsets = [0, 0, 0], sizes = [1, 16, 8], strides = [1, 1, 1]} : vector<4x16x8xf32> to vector<1x16x8xf32>
    %99 = vector.shape_cast %98 : vector<1x16x8xf32> to vector<16x8xf32>
    %c0_27 = arith.constant 0 : index
    %c0_28 = arith.constant 0 : index
    %100 = vector.load %arg19[%c0_27, %c0_28] : memref<16x32xf32, #tpu.memory_space<vmem>>, vector<16x8xf32>
    tpu.vector_store %arg19[%c0_27, %c0_28], %99 {strides = array<i32>} : memref<16x32xf32, #tpu.memory_space<vmem>>, vector<16x8xf32>,
    %101 = vector.extract_strided_slice %97 {offsets = [1, 0, 0], sizes = [1, 16, 8], strides = [1, 1, 1]} : vector<4x16x8xf32> to vector<1x16x8xf32>
    %102 = vector.shape_cast %101 : vector<1x16x8xf32> to vector<16x8xf32>
    %c0_29 = arith.constant 0 : index
    %c8 = arith.constant 8 : index
    %103 = vector.load %arg19[%c0_29, %c8] : memref<16x32xf32, #tpu.memory_space<vmem>>, vector<16x8xf32>
    tpu.vector_store %arg19[%c0_29, %c8], %102 {strides = array<i32>} : memref<16x32xf32, #tpu.memory_space<vmem>>, vector<16x8xf32>,
    %104 = vector.extract_strided_slice %97 {offsets = [2, 0, 0], sizes = [1, 16, 8], strides = [1, 1, 1]} : vector<4x16x8xf32> to vector<1x16x8xf32>
    %105 = vector.shape_cast %104 : vector<1x16x8xf32> to vector<16x8xf32>
    %c0_30 = arith.constant 0 : index
    %c16 = arith.constant 16 : index
    %106 = vector.load %arg19[%c0_30, %c16] : memref<16x32xf32, #tpu.memory_space<vmem>>, vector<16x8xf32>
    tpu.vector_store %arg19[%c0_30, %c16], %105 {strides = array<i32>} : memref<16x32xf32, #tpu.memory_space<vmem>>, vector<16x8xf32>,
    %107 = vector.extract_strided_slice %97 {offsets = [3, 0, 0], sizes = [1, 16, 8], strides = [1, 1, 1]} : vector<4x16x8xf32> to vector<1x16x8xf32>
    %108 = vector.shape_cast %107 : vector<1x16x8xf32> to vector<16x8xf32>
    %c0_31 = arith.constant 0 : index
    %c24 = arith.constant 24 : index
    %109 = vector.load %arg19[%c0_31, %c24] : memref<16x32xf32, #tpu.memory_space<vmem>>, vector<16x8xf32>
    tpu.vector_store %arg19[%c0_31, %c24], %108 {strides = array<i32>} : memref<16x32xf32, #tpu.memory_space<vmem>>, vector<16x8xf32>,
    %c0_32 = arith.constant 0 : index
    %c0_33 = arith.constant 0 : index
    %110 = vector.load %arg19[%c0_32, %c0_33] : memref<16x32xf32, #tpu.memory_space<vmem>>, vector<16x32xf32>
    %c0_34 = arith.constant 0 : index
    %c0_35 = arith.constant 0 : index
    %c0_36 = arith.constant 0 : index
    %111 = vector.load %arg7[%c0_34, %c0_35, %c0_36] : memref<2x32x32xbf16, #tpu.memory_space<vmem>>, vector<1x32x32xbf16>
    %112 = vector.shape_cast %111 : vector<1x32x32xbf16> to vector<32x32xbf16>
    %113 = arith.extf %112 : vector<32x32xbf16> to vector<32x32xf32>
    %cst_37 = arith.constant dense<0.000000e+00> : vector<16x32xf32>
    %114 = tpu.matmul %110, %113, %cst_37 {dimension_numbers = #tpu.dot_dimension_numbers<[1], [0], [0], [1], [0, 0, 1, 1], [], []>} : vector<16x32xf32>, vector<32x32xf32>, vector<16x32xf32> -> vector<16x32xf32>
    %c0_38 = arith.constant 0 : index
    %c0_39 = arith.constant 0 : index
    %c0_40 = arith.constant 0 : index
    %115 = vector.load %arg8[%c0_38, %c0_39, %c0_40] : memref<2x1x32xf32, #tpu.memory_space<vmem>>, vector<1x1x32xf32>
    %116 = vector.shape_cast %115 : vector<1x1x32xf32> to vector<1x32xf32>
    %117 = vector.broadcast %116 : vector<1x32xf32> to vector<16x32xf32>
    %118 = arith.addf %114, %117 : vector<16x32xf32>
    %119 = arith.addf %15, %118 : vector<16x32xf32>
    %c0_41 = arith.constant 0 : index
    %c0_42 = arith.constant 0 : index
    %c0_43 = arith.constant 0 : index
    %120 = vector.load %arg9[%c0_41, %c0_42, %c0_43] : memref<2x1x32xf32, #tpu.memory_space<vmem>>, vector<1x1x32xf32>
    %121 = vector.shape_cast %120 : vector<1x1x32xf32> to vector<1x32xf32>
    %c0_44 = arith.constant 0 : index
    %c0_45 = arith.constant 0 : index
    %c0_46 = arith.constant 0 : index
    %122 = vector.load %arg10[%c0_44, %c0_45, %c0_46] : memref<2x1x32xf32, #tpu.memory_space<vmem>>, vector<1x1x32xf32>
    %123 = vector.shape_cast %122 : vector<1x1x32xf32> to vector<1x32xf32>
    %cst_47 = arith.constant dense<0.000000e+00> : vector<16xf32>
    %124 = vector.multi_reduction <add>, %119, %cst_47 [1] : vector<16x32xf32> to vector<16xf32>
    %125 = vector.shape_cast %124 : vector<16xf32> to vector<16x1xf32>
    %cst_48 = arith.constant 3.200000e+01 : f32
    %126 = vector.broadcast %cst_48 : f32 to vector<16x1xf32>
    %127 = arith.divf %125, %126 : vector<16x1xf32>
    %128 = vector.broadcast %127 : vector<16x1xf32> to vector<16x32xf32>
    %129 = arith.subf %119, %128 : vector<16x32xf32>
    %130 = arith.mulf %129, %129 : vector<16x32xf32>
    %cst_49 = arith.constant dense<0.000000e+00> : vector<16xf32>
    %131 = vector.multi_reduction <add>, %130, %cst_49 [1] : vector<16x32xf32> to vector<16xf32>
    %132 = vector.shape_cast %131 : vector<16xf32> to vector<16x1xf32>
    %cst_50 = arith.constant 3.200000e+01 : f32
    %133 = vector.broadcast %cst_50 : f32 to vector<16x1xf32>
    %134 = arith.divf %132, %133 : vector<16x1xf32>
    %135 = vector.broadcast %127 : vector<16x1xf32> to vector<16x32xf32>
    %136 = arith.subf %119, %135 : vector<16x32xf32>
    %cst_51 = arith.constant 9.99999974E-6 : f32
    %137 = vector.broadcast %cst_51 : f32 to vector<16x1xf32>
    %138 = arith.addf %134, %137 : vector<16x1xf32>
    %139 = math.rsqrt %138 : vector<16x1xf32>
    %140 = vector.broadcast %139 : vector<16x1xf32> to vector<16x32xf32>
    %141 = arith.mulf %136, %140 : vector<16x32xf32>
    %142 = vector.broadcast %121 : vector<1x32xf32> to vector<16x32xf32>
    %143 = arith.mulf %142, %141 : vector<16x32xf32>
    %144 = vector.broadcast %123 : vector<1x32xf32> to vector<16x32xf32>
    %145 = arith.addf %143, %144 : vector<16x32xf32>
    %c0_52 = arith.constant 0 : index
    %c0_53 = arith.constant 0 : index
    %c0_54 = arith.constant 0 : index
    %146 = vector.load %arg11[%c0_52, %c0_53, %c0_54] : memref<2x32x128xbf16, #tpu.memory_space<vmem>>, vector<1x32x128xbf16>
    %147 = vector.shape_cast %146 : vector<1x32x128xbf16> to vector<32x128xbf16>
    %148 = arith.extf %147 : vector<32x128xbf16> to vector<32x128xf32>
    %cst_55 = arith.constant dense<0.000000e+00> : vector<16x128xf32>
    %149 = tpu.matmul %145, %148, %cst_55 {dimension_numbers = #tpu.dot_dimension_numbers<[1], [0], [0], [1], [0, 0, 1, 1], [], []>} : vector<16x32xf32>, vector<32x128xf32>, vector<16x128xf32> -> vector<16x128xf32>
    %c0_56 = arith.constant 0 : index
    %c0_57 = arith.constant 0 : index
    %c0_58 = arith.constant 0 : index
    %150 = vector.load %arg12[%c0_56, %c0_57, %c0_58] : memref<2x1x128xf32, #tpu.memory_space<vmem>>, vector<1x1x128xf32>
    %151 = vector.shape_cast %150 : vector<1x1x128xf32> to vector<1x128xf32>
    %152 = vector.broadcast %151 : vector<1x128xf32> to vector<16x128xf32>
    %153 = arith.addf %149, %152 : vector<16x128xf32>
    %cst_59 = arith.constant 5.000000e-01 : f32
    %154 = vector.broadcast %cst_59 : f32 to vector<16x128xf32>
    %155 = arith.mulf %154, %153 : vector<16x128xf32>
    %156 = arith.mulf %153, %153 : vector<16x128xf32>
    %157 = arith.mulf %153, %156 : vector<16x128xf32>
    %cst_60 = arith.constant 4.471500e-02 : f32
    %158 = vector.broadcast %cst_60 : f32 to vector<16x128xf32>
    %159 = arith.mulf %158, %157 : vector<16x128xf32>
    %160 = arith.addf %153, %159 : vector<16x128xf32>
    %cst_61 = arith.constant 0.797884583 : f32
    %161 = vector.broadcast %cst_61 : f32 to vector<16x128xf32>
    %162 = arith.mulf %161, %160 : vector<16x128xf32>
    %163 = math.tanh %162 : vector<16x128xf32>
    %cst_62 = arith.constant 1.000000e+00 : f32
    %164 = vector.broadcast %cst_62 : f32 to vector<16x128xf32>
    %165 = arith.addf %164, %163 : vector<16x128xf32>
    %166 = arith.mulf %155, %165 : vector<16x128xf32>
    %c0_63 = arith.constant 0 : index
    %c0_64 = arith.constant 0 : index
    %c0_65 = arith.constant 0 : index
    %167 = vector.load %arg13[%c0_63, %c0_64, %c0_65] : memref<2x128x32xbf16, #tpu.memory_space<vmem>>, vector<1x128x32xbf16>
    %168 = vector.shape_cast %167 : vector<1x128x32xbf16> to vector<128x32xbf16>
    %169 = arith.extf %168 : vector<128x32xbf16> to vector<128x32xf32>
    %cst_66 = arith.constant dense<0.000000e+00> : vector<16x32xf32>
    %170 = tpu.matmul %166, %169, %cst_66 {dimension_numbers = #tpu.dot_dimension_numbers<[1], [0], [0], [1], [0, 0, 1, 1], [], []>} : vector<16x128xf32>, vector<128x32xf32>, vector<16x32xf32> -> vector<16x32xf32>
    %c0_67 = arith.constant 0 : index
    %c0_68 = arith.constant 0 : index
    %c0_69 = arith.constant 0 : index
    %171 = vector.load %arg14[%c0_67, %c0_68, %c0_69] : memref<2x1x32xf32, #tpu.memory_space<vmem>>, vector<1x1x32xf32>
    %172 = vector.shape_cast %171 : vector<1x1x32xf32> to vector<1x32xf32>
    %173 = vector.broadcast %172 : vector<1x32xf32> to vector<16x32xf32>
    %174 = arith.addf %170, %173 : vector<16x32xf32>
    %175 = arith.addf %119, %174 : vector<16x32xf32>
    %c1 = arith.constant 1 : index
    %c0_70 = arith.constant 0 : index
    %c0_71 = arith.constant 0 : index
    %176 = vector.load %arg4[%c1, %c0_70, %c0_71] : memref<2x1x32xf32, #tpu.memory_space<vmem>>, vector<1x1x32xf32>
    %177 = vector.shape_cast %176 : vector<1x1x32xf32> to vector<1x32xf32>
    %c1_72 = arith.constant 1 : index
    %c0_73 = arith.constant 0 : index
    %c0_74 = arith.constant 0 : index
    %178 = vector.load %arg5[%c1_72, %c0_73, %c0_74] : memref<2x1x32xf32, #tpu.memory_space<vmem>>, vector<1x1x32xf32>
    %179 = vector.shape_cast %178 : vector<1x1x32xf32> to vector<1x32xf32>
    %cst_75 = arith.constant dense<0.000000e+00> : vector<16xf32>
    %180 = vector.multi_reduction <add>, %175, %cst_75 [1] : vector<16x32xf32> to vector<16xf32>
    %181 = vector.shape_cast %180 : vector<16xf32> to vector<16x1xf32>
    %cst_76 = arith.constant 3.200000e+01 : f32
    %182 = vector.broadcast %cst_76 : f32 to vector<16x1xf32>
    %183 = arith.divf %181, %182 : vector<16x1xf32>
    %184 = vector.broadcast %183 : vector<16x1xf32> to vector<16x32xf32>
    %185 = arith.subf %175, %184 : vector<16x32xf32>
    %186 = arith.mulf %185, %185 : vector<16x32xf32>
    %cst_77 = arith.constant dense<0.000000e+00> : vector<16xf32>
    %187 = vector.multi_reduction <add>, %186, %cst_77 [1] : vector<16x32xf32> to vector<16xf32>
    %188 = vector.shape_cast %187 : vector<16xf32> to vector<16x1xf32>
    %cst_78 = arith.constant 3.200000e+01 : f32
    %189 = vector.broadcast %cst_78 : f32 to vector<16x1xf32>
    %190 = arith.divf %188, %189 : vector<16x1xf32>
    %191 = vector.broadcast %183 : vector<16x1xf32> to vector<16x32xf32>
    %192 = arith.subf %175, %191 : vector<16x32xf32>
    %cst_79 = arith.constant 9.99999974E-6 : f32
    %193 = vector.broadcast %cst_79 : f32 to vector<16x1xf32>
    %194 = arith.addf %190, %193 : vector<16x1xf32>
    %195 = math.rsqrt %194 : vector<16x1xf32>
    %196 = vector.broadcast %195 : vector<16x1xf32> to vector<16x32xf32>
    %197 = arith.mulf %192, %196 : vector<16x32xf32>
    %198 = vector.broadcast %177 : vector<1x32xf32> to vector<16x32xf32>
    %199 = arith.mulf %198, %197 : vector<16x32xf32>
    %200 = vector.broadcast %179 : vector<1x32xf32> to vector<16x32xf32>
    %201 = arith.addf %199, %200 : vector<16x32xf32>
    %c1_80 = arith.constant 1 : index
    %c0_81 = arith.constant 0 : index
    %c0_82 = arith.constant 0 : index
    %202 = vector.load %arg6[%c1_80, %c0_81, %c0_82] : memref<2x32x96xbf16, #tpu.memory_space<vmem>>, vector<1x32x96xbf16>
    %203 = vector.shape_cast %202 : vector<1x32x96xbf16> to vector<32x96xbf16>
    %204 = arith.extf %203 : vector<32x96xbf16> to vector<32x96xf32>
    %cst_83 = arith.constant dense<0.000000e+00> : vector<16x96xf32>
    %205 = tpu.matmul %201, %204, %cst_83 {dimension_numbers = #tpu.dot_dimension_numbers<[1], [0], [0], [1], [0, 0, 1, 1], [], []>} : vector<16x32xf32>, vector<32x96xf32>, vector<16x96xf32> -> vector<16x96xf32>
    %206 = vector.extract_strided_slice %205 {offsets = [0, 0], sizes = [16, 32], strides = [1, 1]} : vector<16x96xf32> to vector<16x32xf32>
    %cst_84 = arith.constant 0.353553385 : f32
    %207 = vector.broadcast %cst_84 : f32 to vector<16x32xf32>
    %208 = arith.mulf %206, %207 : vector<16x32xf32>
    %209 = vector.extract_strided_slice %205 {offsets = [0, 32], sizes = [16, 32], strides = [1, 1]} : vector<16x96xf32> to vector<16x32xf32>
    %210 = vector.extract_strided_slice %205 {offsets = [0, 64], sizes = [16, 32], strides = [1, 1]} : vector<16x96xf32> to vector<16x32xf32>
    %211 = vector.extract_strided_slice %208 {offsets = [0, 0], sizes = [16, 8], strides = [1, 1]} : vector<16x32xf32> to vector<16x8xf32>
    %212 = vector.extract_strided_slice %208 {offsets = [0, 8], sizes = [16, 8], strides = [1, 1]} : vector<16x32xf32> to vector<16x8xf32>
    %213 = vector.extract_strided_slice %208 {offsets = [0, 16], sizes = [16, 8], strides = [1, 1]} : vector<16x32xf32> to vector<16x8xf32>
    %214 = vector.extract_strided_slice %208 {offsets = [0, 24], sizes = [16, 8], strides = [1, 1]} : vector<16x32xf32> to vector<16x8xf32>
    %215 = vector.shape_cast %211 : vector<16x8xf32> to vector<1x16x8xf32>
    %216 = vector.shape_cast %212 : vector<16x8xf32> to vector<1x16x8xf32>
    %217 = vector.shape_cast %213 : vector<16x8xf32> to vector<1x16x8xf32>
    %218 = vector.shape_cast %214 : vector<16x8xf32> to vector<1x16x8xf32>
    %219 = tpu.concatenate %215, %216, %217, %218 in 0 : vector<1x16x8xf32>, vector<1x16x8xf32>, vector<1x16x8xf32>, vector<1x16x8xf32> -> vector<4x16x8xf32>
    %220 = vector.shape_cast %219 : vector<4x16x8xf32> to vector<8x8x8xf32>
    %221 = vector.extract_strided_slice %209 {offsets = [0, 0], sizes = [16, 8], strides = [1, 1]} : vector<16x32xf32> to vector<16x8xf32>
    %222 = vector.extract_strided_slice %209 {offsets = [0, 8], sizes = [16, 8], strides = [1, 1]} : vector<16x32xf32> to vector<16x8xf32>
    %223 = vector.extract_strided_slice %209 {offsets = [0, 16], sizes = [16, 8], strides = [1, 1]} : vector<16x32xf32> to vector<16x8xf32>
    %224 = vector.extract_strided_slice %209 {offsets = [0, 24], sizes = [16, 8], strides = [1, 1]} : vector<16x32xf32> to vector<16x8xf32>
    %225 = vector.shape_cast %221 : vector<16x8xf32> to vector<1x16x8xf32>
    %226 = vector.shape_cast %222 : vector<16x8xf32> to vector<1x16x8xf32>
    %227 = vector.shape_cast %223 : vector<16x8xf32> to vector<1x16x8xf32>
    %228 = vector.shape_cast %224 : vector<16x8xf32> to vector<1x16x8xf32>
    %229 = tpu.concatenate %225, %226, %227, %228 in 0 : vector<1x16x8xf32>, vector<1x16x8xf32>, vector<1x16x8xf32>, vector<1x16x8xf32> -> vector<4x16x8xf32>
    %230 = vector.shape_cast %229 : vector<4x16x8xf32> to vector<8x8x8xf32>
    %231 = vector.extract_strided_slice %210 {offsets = [0, 0], sizes = [16, 8], strides = [1, 1]} : vector<16x32xf32> to vector<16x8xf32>
    %232 = vector.extract_strided_slice %210 {offsets = [0, 8], sizes = [16, 8], strides = [1, 1]} : vector<16x32xf32> to vector<16x8xf32>
    %233 = vector.extract_strided_slice %210 {offsets = [0, 16], sizes = [16, 8], strides = [1, 1]} : vector<16x32xf32> to vector<16x8xf32>
    %234 = vector.extract_strided_slice %210 {offsets = [0, 24], sizes = [16, 8], strides = [1, 1]} : vector<16x32xf32> to vector<16x8xf32>
    %235 = vector.shape_cast %231 : vector<16x8xf32> to vector<1x16x8xf32>
    %236 = vector.shape_cast %232 : vector<16x8xf32> to vector<1x16x8xf32>
    %237 = vector.shape_cast %233 : vector<16x8xf32> to vector<1x16x8xf32>
    %238 = vector.shape_cast %234 : vector<16x8xf32> to vector<1x16x8xf32>
    %239 = tpu.concatenate %235, %236, %237, %238 in 0 : vector<1x16x8xf32>, vector<1x16x8xf32>, vector<1x16x8xf32>, vector<1x16x8xf32> -> vector<4x16x8xf32>
    %240 = vector.shape_cast %239 : vector<4x16x8xf32> to vector<8x8x8xf32>
    "tpu.trace_start"() <{level = 10 : i32, message = "znd,zmd->znm"}> : () -> ()
    %cst_85 = arith.constant dense<0.000000e+00> : vector<8x8x8xf32>
    %241 = tpu.matmul %220, %230, %cst_85 {dimension_numbers = #tpu.dot_dimension_numbers<[2], [2], [1], [1], [0, 0, 0, 1, 1, 1], [0], [0]>} : vector<8x8x8xf32>, vector<8x8x8xf32>, vector<8x8x8xf32> -> vector<8x8x8xf32>
    "tpu.trace_stop"() : () -> ()
    %242 = vector.broadcast %17 : vector<1x8x8xf32> to vector<8x8x8xf32>
    %243 = arith.addf %241, %242 : vector<8x8x8xf32>
    %cst_86 = arith.constant dense<0xFF800000> : vector<8x8xf32>
    %244 = vector.multi_reduction <maximumf>, %243, %cst_86 [2] : vector<8x8x8xf32> to vector<8x8xf32>
    %245 = vector.shape_cast %244 : vector<8x8xf32> to vector<8x8x1xf32>
    %246 = vector.broadcast %245 : vector<8x8x1xf32> to vector<8x8x8xf32>
    %247 = arith.subf %243, %246 : vector<8x8x8xf32>
    %248 = math.exp %247 : vector<8x8x8xf32>
    %cst_87 = arith.constant dense<0.000000e+00> : vector<8x8xf32>
    %249 = vector.multi_reduction <add>, %248, %cst_87 [2] : vector<8x8x8xf32> to vector<8x8xf32>
    %250 = vector.shape_cast %249 : vector<8x8xf32> to vector<8x8x1xf32>
    %251 = tpu.reciprocal %250 {approx = true} : vector<8x8x1xf32> -> vector<8x8x1xf32>
    %252 = vector.broadcast %251 : vector<8x8x1xf32> to vector<8x8x8xf32>
    %253 = arith.mulf %248, %252 : vector<8x8x8xf32>
    "tpu.trace_start"() <{level = 10 : i32, message = "znm,zmd->znd"}> : () -> ()
    %cst_88 = arith.constant dense<0.000000e+00> : vector<8x8x8xf32>
    %254 = tpu.matmul %253, %240, %cst_88 {dimension_numbers = #tpu.dot_dimension_numbers<[2], [1], [1], [2], [0, 0, 0, 1, 1, 2], [0], [0]>} : vector<8x8x8xf32>, vector<8x8x8xf32>, vector<8x8x8xf32> -> vector<8x8x8xf32>
    "tpu.trace_stop"() : () -> ()
    %255 = vector.shape_cast %254 : vector<8x8x8xf32> to vector<4x16x8xf32>
    %256 = vector.extract_strided_slice %255 {offsets = [0, 0, 0], sizes = [1, 16, 8], strides = [1, 1, 1]} : vector<4x16x8xf32> to vector<1x16x8xf32>
    %257 = vector.shape_cast %256 : vector<1x16x8xf32> to vector<16x8xf32>
    %c0_89 = arith.constant 0 : index
    %c0_90 = arith.constant 0 : index
    %258 = vector.load %arg19[%c0_89, %c0_90] : memref<16x32xf32, #tpu.memory_space<vmem>>, vector<16x8xf32>
    tpu.vector_store %arg19[%c0_89, %c0_90], %257 {strides = array<i32>} : memref<16x32xf32, #tpu.memory_space<vmem>>, vector<16x8xf32>,
    %259 = vector.extract_strided_slice %255 {offsets = [1, 0, 0], sizes = [1, 16, 8], strides = [1, 1, 1]} : vector<4x16x8xf32> to vector<1x16x8xf32>
    %260 = vector.shape_cast %259 : vector<1x16x8xf32> to vector<16x8xf32>
    %c0_91 = arith.constant 0 : index
    %c8_92 = arith.constant 8 : index
    %261 = vector.load %arg19[%c0_91, %c8_92] : memref<16x32xf32, #tpu.memory_space<vmem>>, vector<16x8xf32>
    tpu.vector_store %arg19[%c0_91, %c8_92], %260 {strides = array<i32>} : memref<16x32xf32, #tpu.memory_space<vmem>>, vector<16x8xf32>,
    %262 = vector.extract_strided_slice %255 {offsets = [2, 0, 0], sizes = [1, 16, 8], strides = [1, 1, 1]} : vector<4x16x8xf32> to vector<1x16x8xf32>
    %263 = vector.shape_cast %262 : vector<1x16x8xf32> to vector<16x8xf32>
    %c0_93 = arith.constant 0 : index
    %c16_94 = arith.constant 16 : index
    %264 = vector.load %arg19[%c0_93, %c16_94] : memref<16x32xf32, #tpu.memory_space<vmem>>, vector<16x8xf32>
    tpu.vector_store %arg19[%c0_93, %c16_94], %263 {strides = array<i32>} : memref<16x32xf32, #tpu.memory_space<vmem>>, vector<16x8xf32>,
    %265 = vector.extract_strided_slice %255 {offsets = [3, 0, 0], sizes = [1, 16, 8], strides = [1, 1, 1]} : vector<4x16x8xf32> to vector<1x16x8xf32>
    %266 = vector.shape_cast %265 : vector<1x16x8xf32> to vector<16x8xf32>
    %c0_95 = arith.constant 0 : index
    %c24_96 = arith.constant 24 : index
    %267 = vector.load %arg19[%c0_95, %c24_96] : memref<16x32xf32, #tpu.memory_space<vmem>>, vector<16x8xf32>
    tpu.vector_store %arg19[%c0_95, %c24_96], %266 {strides = array<i32>} : memref<16x32xf32, #tpu.memory_space<vmem>>, vector<16x8xf32>,
    %c0_97 = arith.constant 0 : index
    %c0_98 = arith.constant 0 : index
    %268 = vector.load %arg19[%c0_97, %c0_98] : memref<16x32xf32, #tpu.memory_space<vmem>>, vector<16x32xf32>
    %c1_99 = arith.constant 1 : index
    %c0_100 = arith.constant 0 : index
    %c0_101 = arith.constant 0 : index
    %269 = vector.load %arg7[%c1_99, %c0_100, %c0_101] : memref<2x32x32xbf16, #tpu.memory_space<vmem>>, vector<1x32x32xbf16>
    %270 = vector.shape_cast %269 : vector<1x32x32xbf16> to vector<32x32xbf16>
    %271 = arith.extf %270 : vector<32x32xbf16> to vector<32x32xf32>
    %cst_102 = arith.constant dense<0.000000e+00> : vector<16x32xf32>
    %272 = tpu.matmul %268, %271, %cst_102 {dimension_numbers = #tpu.dot_dimension_numbers<[1], [0], [0], [1], [0, 0, 1, 1], [], []>} : vector<16x32xf32>, vector<32x32xf32>, vector<16x32xf32> -> vector<16x32xf32>
    %c1_103 = arith.constant 1 : index
    %c0_104 = arith.constant 0 : index
    %c0_105 = arith.constant 0 : index
    %273 = vector.load %arg8[%c1_103, %c0_104, %c0_105] : memref<2x1x32xf32, #tpu.memory_space<vmem>>, vector<1x1x32xf32>
    %274 = vector.shape_cast %273 : vector<1x1x32xf32> to vector<1x32xf32>
    %275 = vector.broadcast %274 : vector<1x32xf32> to vector<16x32xf32>
    %276 = arith.addf %272, %275 : vector<16x32xf32>
    %277 = arith.addf %175, %276 : vector<16x32xf32>
    %c1_106 = arith.constant 1 : index
    %c0_107 = arith.constant 0 : index
    %c0_108 = arith.constant 0 : index
    %278 = vector.load %arg9[%c1_106, %c0_107, %c0_108] : memref<2x1x32xf32, #tpu.memory_space<vmem>>, vector<1x1x32xf32>
    %279 = vector.shape_cast %278 : vector<1x1x32xf32> to vector<1x32xf32>
    %c1_109 = arith.constant 1 : index
    %c0_110 = arith.constant 0 : index
    %c0_111 = arith.constant 0 : index
    %280 = vector.load %arg10[%c1_109, %c0_110, %c0_111] : memref<2x1x32xf32, #tpu.memory_space<vmem>>, vector<1x1x32xf32>
    %281 = vector.shape_cast %280 : vector<1x1x32xf32> to vector<1x32xf32>
    %cst_112 = arith.constant dense<0.000000e+00> : vector<16xf32>
    %282 = vector.multi_reduction <add>, %277, %cst_112 [1] : vector<16x32xf32> to vector<16xf32>
    %283 = vector.shape_cast %282 : vector<16xf32> to vector<16x1xf32>
    %cst_113 = arith.constant 3.200000e+01 : f32
    %284 = vector.broadcast %cst_113 : f32 to vector<16x1xf32>
    %285 = arith.divf %283, %284 : vector<16x1xf32>
    %286 = vector.broadcast %285 : vector<16x1xf32> to vector<16x32xf32>
    %287 = arith.subf %277, %286 : vector<16x32xf32>
    %288 = arith.mulf %287, %287 : vector<16x32xf32>
    %cst_114 = arith.constant dense<0.000000e+00> : vector<16xf32>
    %289 = vector.multi_reduction <add>, %288, %cst_114 [1] : vector<16x32xf32> to vector<16xf32>
    %290 = vector.shape_cast %289 : vector<16xf32> to vector<16x1xf32>
    %cst_115 = arith.constant 3.200000e+01 : f32
    %291 = vector.broadcast %cst_115 : f32 to vector<16x1xf32>
    %292 = arith.divf %290, %291 : vector<16x1xf32>
    %293 = vector.broadcast %285 : vector<16x1xf32> to vector<16x32xf32>
    %294 = arith.subf %277, %293 : vector<16x32xf32>
    %cst_116 = arith.constant 9.99999974E-6 : f32
    %295 = vector.broadcast %cst_116 : f32 to vector<16x1xf32>
    %296 = arith.addf %292, %295 : vector<16x1xf32>
    %297 = math.rsqrt %296 : vector<16x1xf32>
    %298 = vector.broadcast %297 : vector<16x1xf32> to vector<16x32xf32>
    %299 = arith.mulf %294, %298 : vector<16x32xf32>
    %300 = vector.broadcast %279 : vector<1x32xf32> to vector<16x32xf32>
    %301 = arith.mulf %300, %299 : vector<16x32xf32>
    %302 = vector.broadcast %281 : vector<1x32xf32> to vector<16x32xf32>
    %303 = arith.addf %301, %302 : vector<16x32xf32>
    %c1_117 = arith.constant 1 : index
    %c0_118 = arith.constant 0 : index
    %c0_119 = arith.constant 0 : index
    %304 = vector.load %arg11[%c1_117, %c0_118, %c0_119] : memref<2x32x128xbf16, #tpu.memory_space<vmem>>, vector<1x32x128xbf16>
    %305 = vector.shape_cast %304 : vector<1x32x128xbf16> to vector<32x128xbf16>
    %306 = arith.extf %305 : vector<32x128xbf16> to vector<32x128xf32>
    %cst_120 = arith.constant dense<0.000000e+00> : vector<16x128xf32>
    %307 = tpu.matmul %303, %306, %cst_120 {dimension_numbers = #tpu.dot_dimension_numbers<[1], [0], [0], [1], [0, 0, 1, 1], [], []>} : vector<16x32xf32>, vector<32x128xf32>, vector<16x128xf32> -> vector<16x128xf32>
    %c1_121 = arith.constant 1 : index
    %c0_122 = arith.constant 0 : index
    %c0_123 = arith.constant 0 : index
    %308 = vector.load %arg12[%c1_121, %c0_122, %c0_123] : memref<2x1x128xf32, #tpu.memory_space<vmem>>, vector<1x1x128xf32>
    %309 = vector.shape_cast %308 : vector<1x1x128xf32> to vector<1x128xf32>
    %310 = vector.broadcast %309 : vector<1x128xf32> to vector<16x128xf32>
    %311 = arith.addf %307, %310 : vector<16x128xf32>
    %cst_124 = arith.constant 5.000000e-01 : f32
    %312 = vector.broadcast %cst_124 : f32 to vector<16x128xf32>
    %313 = arith.mulf %312, %311 : vector<16x128xf32>
    %314 = arith.mulf %311, %311 : vector<16x128xf32>
    %315 = arith.mulf %311, %314 : vector<16x128xf32>
    %cst_125 = arith.constant 4.471500e-02 : f32
    %316 = vector.broadcast %cst_125 : f32 to vector<16x128xf32>
    %317 = arith.mulf %316, %315 : vector<16x128xf32>
    %318 = arith.addf %311, %317 : vector<16x128xf32>
    %cst_126 = arith.constant 0.797884583 : f32
    %319 = vector.broadcast %cst_126 : f32 to vector<16x128xf32>
    %320 = arith.mulf %319, %318 : vector<16x128xf32>
    %321 = math.tanh %320 : vector<16x128xf32>
    %cst_127 = arith.constant 1.000000e+00 : f32
    %322 = vector.broadcast %cst_127 : f32 to vector<16x128xf32>
    %323 = arith.addf %322, %321 : vector<16x128xf32>
    %324 = arith.mulf %313, %323 : vector<16x128xf32>
    %c1_128 = arith.constant 1 : index
    %c0_129 = arith.constant 0 : index
    %c0_130 = arith.constant 0 : index
    %325 = vector.load %arg13[%c1_128, %c0_129, %c0_130] : memref<2x128x32xbf16, #tpu.memory_space<vmem>>, vector<1x128x32xbf16>
    %326 = vector.shape_cast %325 : vector<1x128x32xbf16> to vector<128x32xbf16>
    %327 = arith.extf %326 : vector<128x32xbf16> to vector<128x32xf32>
    %cst_131 = arith.constant dense<0.000000e+00> : vector<16x32xf32>
    %328 = tpu.matmul %324, %327, %cst_131 {dimension_numbers = #tpu.dot_dimension_numbers<[1], [0], [0], [1], [0, 0, 1, 1], [], []>} : vector<16x128xf32>, vector<128x32xf32>, vector<16x32xf32> -> vector<16x32xf32>
    %c1_132 = arith.constant 1 : index
    %c0_133 = arith.constant 0 : index
    %c0_134 = arith.constant 0 : index
    %329 = vector.load %arg14[%c1_132, %c0_133, %c0_134] : memref<2x1x32xf32, #tpu.memory_space<vmem>>, vector<1x1x32xf32>
    %330 = vector.shape_cast %329 : vector<1x1x32xf32> to vector<1x32xf32>
    %331 = vector.broadcast %330 : vector<1x32xf32> to vector<16x32xf32>
    %332 = arith.addf %328, %331 : vector<16x32xf32>
    %333 = arith.addf %277, %332 : vector<16x32xf32>
    %c0_135 = arith.constant 0 : index
    %c0_136 = arith.constant 0 : index
    %334 = vector.load %arg15[%c0_135, %c0_136] : memref<1x32xf32, #tpu.memory_space<vmem>>, vector<1x32xf32>
    %c0_137 = arith.constant 0 : index
    %c0_138 = arith.constant 0 : index
    %335 = vector.load %arg16[%c0_137, %c0_138] : memref<1x32xf32, #tpu.memory_space<vmem>>, vector<1x32xf32>
    %cst_139 = arith.constant dense<0.000000e+00> : vector<16xf32>
    %336 = vector.multi_reduction <add>, %333, %cst_139 [1] : vector<16x32xf32> to vector<16xf32>
    %337 = vector.shape_cast %336 : vector<16xf32> to vector<16x1xf32>
    %cst_140 = arith.constant 3.200000e+01 : f32
    %338 = vector.broadcast %cst_140 : f32 to vector<16x1xf32>
    %339 = arith.divf %337, %338 : vector<16x1xf32>
    %340 = vector.broadcast %339 : vector<16x1xf32> to vector<16x32xf32>
    %341 = arith.subf %333, %340 : vector<16x32xf32>
    %342 = arith.mulf %341, %341 : vector<16x32xf32>
    %cst_141 = arith.constant dense<0.000000e+00> : vector<16xf32>
    %343 = vector.multi_reduction <add>, %342, %cst_141 [1] : vector<16x32xf32> to vector<16xf32>
    %344 = vector.shape_cast %343 : vector<16xf32> to vector<16x1xf32>
    %cst_142 = arith.constant 3.200000e+01 : f32
    %345 = vector.broadcast %cst_142 : f32 to vector<16x1xf32>
    %346 = arith.divf %344, %345 : vector<16x1xf32>
    %347 = vector.broadcast %339 : vector<16x1xf32> to vector<16x32xf32>
    %348 = arith.subf %333, %347 : vector<16x32xf32>
    %cst_143 = arith.constant 9.99999974E-6 : f32
    %349 = vector.broadcast %cst_143 : f32 to vector<16x1xf32>
    %350 = arith.addf %346, %349 : vector<16x1xf32>
    %351 = math.rsqrt %350 : vector<16x1xf32>
    %352 = vector.broadcast %351 : vector<16x1xf32> to vector<16x32xf32>
    %353 = arith.mulf %348, %352 : vector<16x32xf32>
    %354 = vector.broadcast %334 : vector<1x32xf32> to vector<16x32xf32>
    %355 = arith.mulf %354, %353 : vector<16x32xf32>
    %356 = vector.broadcast %335 : vector<1x32xf32> to vector<16x32xf32>
    %357 = arith.addf %355, %356 : vector<16x32xf32>
    %c0_144 = arith.constant 0 : index
    %c0_145 = arith.constant 0 : index
    %358 = vector.load %arg17[%c0_144, %c0_145] : memref<32x256xbf16, #tpu.memory_space<vmem>>, vector<32x256xbf16>
    %359 = arith.extf %358 : vector<32x256xbf16> to vector<32x256xf32>
    %cst_146 = arith.constant dense<0.000000e+00> : vector<16x256xf32>
    %360 = tpu.matmul %357, %359, %cst_146 {dimension_numbers = #tpu.dot_dimension_numbers<[1], [0], [0], [1], [0, 0, 1, 1], [], []>} : vector<16x32xf32>, vector<32x256xf32>, vector<16x256xf32> -> vector<16x256xf32>
    %c0_147 = arith.constant 0 : index
    %c0_148 = arith.constant 0 : index
    %361 = vector.load %arg18[%c0_147, %c0_148] : memref<16x256xf32, #tpu.memory_space<vmem>>, vector<16x256xf32>
    tpu.vector_store %arg18[%c0_147, %c0_148], %360 {strides = array<i32>} : memref<16x256xf32, #tpu.memory_space<vmem>>, vector<16x256xf32>,
    return
  }
}

</mosaic_0001>

<llo_original>
// kernel: tpu_custom_call.1
$region0: #{tpu_custom_call.1}
  #allocation0 [shape = 'u32[]', space=smem, size = 0x4, offset = 0x4, fixed_abs, tag = 'smem constant byte address 0x4 - core index']
  #allocation1 [shape = 'u32[144,128]{1,0:T(1,128)}', space=vmem, size = 0x12000, scoped, tag = 'internal scratch']
  #allocation2 [shape = 'f32[16,32]{1,0:T(8,128)}', space=vmem, size = 0x2000, scoped, tag = 'scratch operand']
  %s0 = inlined_call_operand.vmem [shape: s32[16,1], index: 0, kind: input, shape index: {}]
  %s1 = inlined_call_operand.vmem [shape: bf16[256,32], index: 1, kind: input, shape index: {}]
  %s2 = inlined_call_operand.vmem [shape: bf16[8,32], index: 2, kind: input, shape index: {}]
  %s3 = inlined_call_operand.vmem [shape: f32[8,8], index: 3, kind: input, shape index: {}]
  %s4 = inlined_call_operand.vmem [shape: f32[2,1,32], index: 4, kind: input, shape index: {}]
  %s5 = inlined_call_operand.vmem [shape: f32[2,1,32], index: 5, kind: input, shape index: {}]
  %s6 = inlined_call_operand.vmem [shape: bf16[2,32,96], index: 6, kind: input, shape index: {}]
  %s7 = inlined_call_operand.vmem [shape: bf16[2,32,32], index: 7, kind: input, shape index: {}]
  %s8 = inlined_call_operand.vmem [shape: f32[2,1,32], index: 8, kind: input, shape index: {}]
  %s9 = inlined_call_operand.vmem [shape: f32[2,1,32], index: 9, kind: input, shape index: {}]
  %s10 = inlined_call_operand.vmem [shape: f32[2,1,32], index: 10, kind: input, shape index: {}]
  %s11 = inlined_call_operand.vmem [shape: bf16[2,32,128], index: 11, kind: input, shape index: {}]
  %s12 = inlined_call_operand.vmem [shape: f32[2,1,128], index: 12, kind: input, shape index: {}]
  %s13 = inlined_call_operand.vmem [shape: bf16[2,128,32], index: 13, kind: input, shape index: {}]
  %s14 = inlined_call_operand.vmem [shape: f32[2,1,32], index: 14, kind: input, shape index: {}]
  %s15 = inlined_call_operand.vmem [shape: f32[1,32], index: 15, kind: input, shape index: {}]
  %s16 = inlined_call_operand.vmem [shape: f32[1,32], index: 16, kind: input, shape index: {}]
  %s17 = inlined_call_operand.vmem [shape: bf16[32,256], index: 17, kind: input, shape index: {}]
  %s18 = inlined_call_operand.hbm [shape: f32[16,256], index: 18, kind: output, shape index: {}]
  %s19 = sld [smem:[#allocation0]]
  $region82: #{tpu_custom_call.1} parent=0
    _
  %s21 = ssub.s32 1, %s19
  %s22 = scalar_select 0, %s21, %s19
  $region1: #{tpu_custom_call.1} parent=0
    #allocation3 [shape = 'u8[16384]{0}', space=vmem, size = 0x4000, scoped, tag = 'output window, operand 0, single buffered']
    #allocation4 [shape = 's32[1]{0}', space=sflag, size = 0x4, scoped, tag = 'scoped memory for tpu_custom_call.1']
    %23 = vsyncpa [#allocation4], 0
    // Predicated region
    $region2: #{tpu_custom_call.1} parent=1 // pred_check
      _
    $region3: #{tpu_custom_call.1} parent=1 // pred_check_branch
      %25 = sbr.rel (0) target = $region5
    $region4: #{tpu_custom_call.1} parent=1 // pred_region
      _
    $region5: #{tpu_custom_call.1} parent=1 // pred_fallthru
      _
    // Predicated region
    $region6: #{tpu_custom_call.1} parent=1 // pred_check
      _
    $region7: #{tpu_custom_call.1} parent=1 // pred_check_branch
      %27 = sbr.rel (0) target = $region9
    $region8: #{tpu_custom_call.1} parent=1 // pred_region
      _
    $region9: #{tpu_custom_call.1} parent=1 // pred_fallthru
      _
    // Predicated region
    $region10: #{tpu_custom_call.1} parent=1 // pred_check
      _
    $region11: #{tpu_custom_call.1} parent=1 // pred_check_branch
      %29 = sbr.rel (0) target = $region13
    $region12: #{tpu_custom_call.1} parent=1 // pred_region
      _
    $region13: #{tpu_custom_call.1} parent=1 // pred_fallthru
      _
    // Predicated region
    $region14: #{tpu_custom_call.1} parent=1 // pred_check
      _
    $region15: #{tpu_custom_call.1} parent=1 // pred_check_branch
      %31 = sbr.rel (0) target = $region17
    $region16: #{tpu_custom_call.1} parent=1 // pred_region
      _
    $region17: #{tpu_custom_call.1} parent=1 // pred_fallthru
      _
    // Predicated region
    $region18: #{tpu_custom_call.1} parent=1 // pred_check
      _
    $region19: #{tpu_custom_call.1} parent=1 // pred_check_branch
      %33 = sbr.rel (0) target = $region21
    $region20: #{tpu_custom_call.1} parent=1 // pred_region
      _
    $region21: #{tpu_custom_call.1} parent=1 // pred_fallthru
      _
    // Predicated region
    $region22: #{tpu_custom_call.1} parent=1 // pred_check
      _
    $region23: #{tpu_custom_call.1} parent=1 // pred_check_branch
      %35 = sbr.rel (0) target = $region25
    $region24: #{tpu_custom_call.1} parent=1 // pred_region
      _
    $region25: #{tpu_custom_call.1} parent=1 // pred_fallthru
      _
    // Predicated region
    $region26: #{tpu_custom_call.1} parent=1 // pred_check
      _
    $region27: #{tpu_custom_call.1} parent=1 // pred_check_branch
      %37 = sbr.rel (0) target = $region29
    $region28: #{tpu_custom_call.1} parent=1 // pred_region
      _
    $region29: #{tpu_custom_call.1} parent=1 // pred_fallthru
      _
    // Predicated region
    $region30: #{tpu_custom_call.1} parent=1 // pred_check
      _
    $region31: #{tpu_custom_call.1} parent=1 // pred_check_branch
      %39 = sbr.rel (0) target = $region33
    $region32: #{tpu_custom_call.1} parent=1 // pred_region
      _
    $region33: #{tpu_custom_call.1} parent=1 // pred_fallthru
      _
    // Predicated region
    $region34: #{tpu_custom_call.1} parent=1 // pred_check
      _
    $region35: #{tpu_custom_call.1} parent=1 // pred_check_branch
      %41 = sbr.rel (0) target = $region37
    $region36: #{tpu_custom_call.1} parent=1 // pred_region
      _
    $region37: #{tpu_custom_call.1} parent=1 // pred_fallthru
      _
    // Predicated region
    $region38: #{tpu_custom_call.1} parent=1 // pred_check
      _
    $region39: #{tpu_custom_call.1} parent=1 // pred_check_branch
      %43 = sbr.rel (0) target = $region41
    $region40: #{tpu_custom_call.1} parent=1 // pred_region
      _
    $region41: #{tpu_custom_call.1} parent=1 // pred_fallthru
      _
    // Predicated region
    $region42: #{tpu_custom_call.1} parent=1 // pred_check
      _
    $region43: #{tpu_custom_call.1} parent=1 // pred_check_branch
      %45 = sbr.rel (0) target = $region45
    $region44: #{tpu_custom_call.1} parent=1 // pred_region
      _
    $region45: #{tpu_custom_call.1} parent=1 // pred_fallthru
      _
    // Predicated region
    $region46: #{tpu_custom_call.1} parent=1 // pred_check
      _
    $region47: #{tpu_custom_call.1} parent=1 // pred_check_branch
      %47 = sbr.rel (0) target = $region49
    $region48: #{tpu_custom_call.1} parent=1 // pred_region
      _
    $region49: #{tpu_custom_call.1} parent=1 // pred_fallthru
      _
    // Predicated region
    $region50: #{tpu_custom_call.1} parent=1 // pred_check
      _
    $region51: #{tpu_custom_call.1} parent=1 // pred_check_branch
      %49 = sbr.rel (0) target = $region53
    $region52: #{tpu_custom_call.1} parent=1 // pred_region
      _
    $region53: #{tpu_custom_call.1} parent=1 // pred_fallthru
      _
    // Predicated region
    $region54: #{tpu_custom_call.1} parent=1 // pred_check
      _
    $region55: #{tpu_custom_call.1} parent=1 // pred_check_branch
      %51 = sbr.rel (0) target = $region57
    $region56: #{tpu_custom_call.1} parent=1 // pred_region
      _
    $region57: #{tpu_custom_call.1} parent=1 // pred_fallthru
      _
    // Predicated region
    $region58: #{tpu_custom_call.1} parent=1 // pred_check
      _
    $region59: #{tpu_custom_call.1} parent=1 // pred_check_branch
      %53 = sbr.rel (0) target = $region61
    $region60: #{tpu_custom_call.1} parent=1 // pred_region
      _
    $region61: #{tpu_custom_call.1} parent=1 // pred_fallthru
      _
    // Predicated region
    $region62: #{tpu_custom_call.1} parent=1 // pred_check
      _
    $region63: #{tpu_custom_call.1} parent=1 // pred_check_branch
      %55 = sbr.rel (0) target = $region65
    $region64: #{tpu_custom_call.1} parent=1 // pred_region
      _
    $region65: #{tpu_custom_call.1} parent=1 // pred_fallthru
      _
    // Predicated region
    $region66: #{tpu_custom_call.1} parent=1 // pred_check
      _
    $region67: #{tpu_custom_call.1} parent=1 // pred_check_branch
      %57 = sbr.rel (0) target = $region69
    $region68: #{tpu_custom_call.1} parent=1 // pred_region
      _
    $region69: #{tpu_custom_call.1} parent=1 // pred_fallthru
      _
    // Predicated region
    $region70: #{tpu_custom_call.1} parent=1 // pred_check
      _
    $region71: #{tpu_custom_call.1} parent=1 // pred_check_branch
      %59 = sbr.rel (0) target = $region73
    $region72: #{tpu_custom_call.1} parent=1 // pred_region
      _
    $region73: #{tpu_custom_call.1} parent=1 // pred_fallthru
      _
    %v60 = vld [vmem:[%s0] sm:$0xff]
    %v61 = vld [vmem:[%s0 + $0x8] sm:$0xff]
    %v62 = vlaneseq
    %v63 = vand.u32 %v62, 127
    %v64 = vadd.s32 %v63, 128
    %65 = vset.pattern.permute.xlu0 0
    %66 = vperm.xlu0 %65, %v60
    %v67 = vpop.permute.xlu0 %66
    %68 = vset.pattern.permute.xlu0 0
    %69 = vperm.xlu0 %68, %v61
    %v70 = vpop.permute.xlu0 %69
    %vm71 = vcmp.eq.s32.totalorder %v67, %v63
    %vm72 = vcmp.eq.s32.totalorder %v67, %v64
    %vm73 = vcmp.eq.s32.totalorder %v70, %v63
    %vm74 = vcmp.eq.s32.totalorder %v70, %v64
    %v75 = vsel %vm71, 1, 0
    %v76 = vsel %vm72, 1, 0
    %v77 = vsel %vm73, 1, 0
    %v78 = vsel %vm74, 1, 0
    %v79 = vcvt.s32.f32 %v75
    %v80 = vcvt.s32.f32 %v76
    %v81 = vcvt.s32.f32 %v77
    %v82 = vcvt.s32.f32 %v78
    %v83 = vld [vmem:[%s1] sm:$0xf]
    %v84 = vld [vmem:[%s1 + $0x4] sm:$0xf]
    %v85 = vld [vmem:[%s1 + $0x8] sm:$0xf]
    %v86 = vld [vmem:[%s1 + $0xc] sm:$0xf]
    %v87 = vld [vmem:[%s1 + $0x10] sm:$0xf]
    %v88 = vld [vmem:[%s1 + $0x14] sm:$0xf]
    %v89 = vld [vmem:[%s1 + $0x18] sm:$0xf]
    %v90 = vld [vmem:[%s1 + $0x1c] sm:$0xf]
    %v91 = vld [vmem:[%s1 + $0x20] sm:$0xf]
    %v92 = vld [vmem:[%s1 + $0x24] sm:$0xf]
    %v93 = vld [vmem:[%s1 + $0x28] sm:$0xf]
    %v94 = vld [vmem:[%s1 + $0x2c] sm:$0xf]
    %v95 = vld [vmem:[%s1 + $0x30] sm:$0xf]
    %v96 = vld [vmem:[%s1 + $0x34] sm:$0xf]
    %v97 = vld [vmem:[%s1 + $0x38] sm:$0xf]
    %v98 = vld [vmem:[%s1 + $0x3c] sm:$0xf]
    %v99 = vld [vmem:[%s1 + $0x40] sm:$0xf]
    %v100 = vld [vmem:[%s1 + $0x44] sm:$0xf]
    %v101 = vld [vmem:[%s1 + $0x48] sm:$0xf]
    %v102 = vld [vmem:[%s1 + $0x4c] sm:$0xf]
    %v103 = vld [vmem:[%s1 + $0x50] sm:$0xf]
    %v104 = vld [vmem:[%s1 + $0x54] sm:$0xf]
    %v105 = vld [vmem:[%s1 + $0x58] sm:$0xf]
    %v106 = vld [vmem:[%s1 + $0x5c] sm:$0xf]
    %v107 = vld [vmem:[%s1 + $0x60] sm:$0xf]
    %v108 = vld [vmem:[%s1 + $0x64] sm:$0xf]
    %v109 = vld [vmem:[%s1 + $0x68] sm:$0xf]
    %v110 = vld [vmem:[%s1 + $0x6c] sm:$0xf]
    %v111 = vld [vmem:[%s1 + $0x70] sm:$0xf]
    %v112 = vld [vmem:[%s1 + $0x74] sm:$0xf]
    %v113 = vld [vmem:[%s1 + $0x78] sm:$0xf]
    %v114 = vld [vmem:[%s1 + $0x7c] sm:$0xf]
    %v115 = vunpack.c.l.bf16 %v83
    %v116 = vunpack.c.l.bf16 %v84
    %v117 = vunpack.c.l.bf16 %v85
    %v118 = vunpack.c.l.bf16 %v86
    %v119 = vunpack.c.l.bf16 %v87
    %v120 = vunpack.c.l.bf16 %v88
    %v121 = vunpack.c.l.bf16 %v89
    %v122 = vunpack.c.l.bf16 %v90
    %v123 = vunpack.c.l.bf16 %v91
    %v124 = vunpack.c.l.bf16 %v92
    %v125 = vunpack.c.l.bf16 %v93
    %v126 = vunpack.c.l.bf16 %v94
    %v127 = vunpack.c.l.bf16 %v95
    %v128 = vunpack.c.l.bf16 %v96
    %v129 = vunpack.c.l.bf16 %v97
    %v130 = vunpack.c.l.bf16 %v98
    %v131 = vunpack.c.l.bf16 %v99
    %v132 = vunpack.c.l.bf16 %v100
    %v133 = vunpack.c.l.bf16 %v101
    %v134 = vunpack.c.l.bf16 %v102
    %v135 = vunpack.c.l.bf16 %v103
    %v136 = vunpack.c.l.bf16 %v104
    %v137 = vunpack.c.l.bf16 %v105
    %v138 = vunpack.c.l.bf16 %v106
    %v139 = vunpack.c.l.bf16 %v107
    %v140 = vunpack.c.l.bf16 %v108
    %v141 = vunpack.c.l.bf16 %v109
    %v142 = vunpack.c.l.bf16 %v110
    %v143 = vunpack.c.l.bf16 %v111
    %v144 = vunpack.c.l.bf16 %v112
    %v145 = vunpack.c.l.bf16 %v113
    %v146 = vunpack.c.l.bf16 %v114
    %147 = vmatprep.subr.mxu0 0.0
    %148 = vmatpush1.msra.mxu0 %v130
    %149 = vmatprep.subr.mxu0 0.0
    %150 = vmatpush1.msra.mxu0 %v129
    %151 = vmatprep.subr.mxu0 0.0
    %152 = vmatpush1.msra.mxu0 %v128
    %153 = vmatprep.subr.mxu0 0.0
    %154 = vmatpush1.msra.mxu0 %v127
    %155 = vmatprep.subr.mxu0 0.0
    %156 = vmatpush1.msra.mxu0 %v126
    %157 = vmatprep.subr.mxu0 0.0
    %158 = vmatpush1.msra.mxu0 %v125
    %159 = vmatprep.subr.mxu0 0.0
    %160 = vmatpush1.msra.mxu0 %v124
    %161 = vmatprep.subr.mxu0 0.0
    %162 = vmatpush1.msra.mxu0 %v123
    %163 = vmatprep.subr.mxu0 0.0
    %164 = vmatpush1.msra.mxu0 %v122
    %165 = vmatprep.subr.mxu0 0.0
    %166 = vmatpush1.msra.mxu0 %v121
    %167 = vmatprep.subr.mxu0 0.0
    %168 = vmatpush1.msra.mxu0 %v120
    %169 = vmatprep.subr.mxu0 0.0
    %170 = vmatpush1.msra.mxu0 %v119
    %171 = vmatprep.subr.mxu0 0.0
    %172 = vmatpush1.msra.mxu0 %v118
    %173 = vmatprep.subr.mxu0 0.0
    %174 = vmatpush1.msra.mxu0 %v117
    %175 = vmatprep.subr.mxu0 0.0
    %176 = vmatpush1.msra.mxu0 %v116
    %177 = vmatprep.subr.mxu0 0.0
    %178 = vmatpush1.msra.mxu0 %v115
    %179 = vmatprep.subr.mxu0 0.0
    %180 = vmatpush2.msra.mxu0 %v146
    %181 = vmatprep.subr.mxu0 0.0
    %182 = vmatpush2.msra.mxu0 %v145
    %183 = vmatprep.subr.mxu0 0.0
    %184 = vmatpush2.msra.mxu0 %v144
    %185 = vmatprep.subr.mxu0 0.0
    %186 = vmatpush2.msra.mxu0 %v143
    %187 = vmatprep.subr.mxu0 0.0
    %188 = vmatpush2.msra.mxu0 %v142
    %189 = vmatprep.subr.mxu0 0.0
    %190 = vmatpush2.msra.mxu0 %v141
    %191 = vmatprep.subr.mxu0 0.0
    %192 = vmatpush2.msra.mxu0 %v140
    %193 = vmatprep.subr.mxu0 0.0
    %194 = vmatpush2.msra.mxu0 %v139
    %195 = vmatprep.subr.mxu0 0.0
    %196 = vmatpush2.msra.mxu0 %v138
    %197 = vmatprep.subr.mxu0 0.0
    %198 = vmatpush2.msra.mxu0 %v137
    %199 = vmatprep.subr.mxu0 0.0
    %200 = vmatpush2.msra.mxu0 %v136
    %201 = vmatprep.subr.mxu0 0.0
    %202 = vmatpush2.msra.mxu0 %v135
    %203 = vmatprep.subr.mxu0 0.0
    %204 = vmatpush2.msra.mxu0 %v134
    %205 = vmatprep.subr.mxu0 0.0
    %206 = vmatpush2.msra.mxu0 %v133
    %207 = vmatprep.subr.mxu0 0.0
    %208 = vmatpush2.msra.mxu0 %v132
    %209 = vmatprep.subr.mxu0 0.0
    %210 = vmatpush2.msra.mxu0 %v131
    %211 = vmatprep.mubr.f32.mxu0 %v80
    %212 = vmatmul.mubr.f32.gmra.mxu0 %v79
    %v213 = vpop.f32.mrf.mxu0
    %v214 = vadd.f32 0.0, %v213
    %v215 = vpop.f32.mrf.mxu0
    %216 = vmatprep.mubr.f32.mxu0 %v82
    %217 = vmatmul.mubr.f32.gmra.mxu0 %v81
    %v218 = vpop.f32.mrf.mxu0
    %v219 = vadd.f32 0.0, %v218
    %v220 = vpop.f32.mrf.mxu0
    %221 = vdwg.mxu0
    %v222 = vld [vmem:[%s2] sm:$0xf]
    %v223 = vunpack.c.l.bf16 %v222
    %v224 = vadd.f32 %v214, %v223
    %v225 = vadd.f32 %v219, %v223
    %v226 = vld [vmem:[%s3] sm:$0xff]
    %v227 = vld [vmem:[%s4] sm:$0x1]
    %v228 = vld [vmem:[%s5] sm:$0x1]
    %vm229 = vcmask 261120
    %v230 = vsel %vm229, %v224, 0.0
    %231 = vadd.xlane.f32.xlu0 %v230
    %v232 = vpop.xlane.xlu0 %231
    %v233 = vsel %vm229, %v225, 0.0
    %234 = vadd.xlane.f32.xlu0 %v233
    %v235 = vpop.xlane.xlu0 %234
    %v236 = vrcp.pop 32.0
    %v237 = vmul.f32 %v232, %v236
    %v238 = vmul.f32 %v235, %v236
    %v239 = vsub.f32 %v224, %v237
    %v240 = vsub.f32 %v225, %v238
    %v241 = vmul.f32 %v239, %v239
    %v242 = vmul.f32 %v240, %v240
    %v243 = vsel %vm229, %v241, 0.0
    %244 = vadd.xlane.f32.xlu0 %v243
    %v245 = vpop.xlane.xlu0 %244
    %v246 = vsel %vm229, %v242, 0.0
    %247 = vadd.xlane.f32.xlu0 %v246
    %v248 = vpop.xlane.xlu0 %247
    %v249 = vmul.f32 %v245, %v236
    %v250 = vmul.f32 %v248, %v236
    %v251 = vadd.f32 %v249, 1e-05
    %v252 = vadd.f32 %v250, 1e-05
    %v253 = vrsqrt.pop %v251
    %v254 = vrsqrt.pop %v252
    %v255 = vmul.f32 %v239, %v253
    %v256 = vmul.f32 %v240, %v254
    %v258 = vlaneseq
    %v259 = vshrl.u32 %v258, 7
    %v260 = vsub.s32 0, %v259
    %v261 = vrot.slane %v227, %v260
    %v263 = vmul.f32 %v261, %v255
    %v264 = vmul.f32 %v261, %v256
    %v266 = vlaneseq
    %v267 = vshrl.u32 %v266, 7
    %v268 = vsub.s32 0, %v267
    %v269 = vrot.slane %v228, %v268
    %v271 = vadd.f32 %v263, %v269
    %v272 = vadd.f32 %v264, %v269
    %v273 = vld [vmem:[%s6] sm:$0xf]
    %v274 = vld [vmem:[%s6 + $0x4] sm:$0xf]
    %v275 = vld [vmem:[%s6 + $0x8] sm:$0xf]
    %v276 = vld [vmem:[%s6 + $0xc] sm:$0xf]
    %v277 = vunpack.c.l.bf16 %v273
    %v278 = vunpack.c.l.bf16 %v274
    %v279 = vunpack.c.l.bf16 %v275
    %v280 = vunpack.c.l.bf16 %v276
    %v282 = vsel %vm229, %v271, 0
    %v285 = vsel %vm229, %v272, 0
    %287 = vmatprep.subr.mxu0 0.0
    %288 = vmatpush1.msra.mxu0 0.0
    %289 = vmatprep.subr.mxu0 0.0
    %290 = vmatpush1.msra.mxu0 0.0
    %291 = vmatprep.subr.mxu0 0.0
    %292 = vmatpush1.msra.mxu0 0.0
    %293 = vmatprep.subr.mxu0 0.0
    %294 = vmatpush1.msra.mxu0 0.0
    %295 = vmatprep.subr.mxu0 0.0
    %296 = vmatpush1.msra.mxu0 0.0
    %297 = vmatprep.subr.mxu0 0.0
    %298 = vmatpush1.msra.mxu0 0.0
    %299 = vmatprep.subr.mxu0 0.0
    %300 = vmatpush1.msra.mxu0 0.0
    %301 = vmatprep.subr.mxu0 0.0
    %302 = vmatpush1.msra.mxu0 0.0
    %303 = vmatprep.subr.mxu0 0.0
    %304 = vmatpush1.msra.mxu0 0.0
    %305 = vmatprep.subr.mxu0 0.0
    %306 = vmatpush1.msra.mxu0 0.0
    %307 = vmatprep.subr.mxu0 0.0
    %308 = vmatpush1.msra.mxu0 0.0
    %309 = vmatprep.subr.mxu0 0.0
    %310 = vmatpush1.msra.mxu0 0.0
    %311 = vmatprep.subr.mxu0 0.0
    %312 = vmatpush1.msra.mxu0 %v280
    %313 = vmatprep.subr.mxu0 0.0
    %314 = vmatpush1.msra.mxu0 %v279
    %315 = vmatprep.subr.mxu0 0.0
    %316 = vmatpush1.msra.mxu0 %v278
    %317 = vmatprep.subr.mxu0 0.0
    %318 = vmatpush1.msra.mxu0 %v277
    %319 = vmatprep.subr.mxu0 0.0
    %320 = vmatpush2.msra.mxu0 0.0
    %321 = vmatprep.subr.mxu0 0.0
    %322 = vmatpush2.msra.mxu0 0.0
    %323 = vmatprep.subr.mxu0 0.0
    %324 = vmatpush2.msra.mxu0 0.0
    %325 = vmatprep.subr.mxu0 0.0
    %326 = vmatpush2.msra.mxu0 0.0
    %327 = vmatprep.subr.mxu0 0.0
    %328 = vmatpush2.msra.mxu0 0.0
    %329 = vmatprep.subr.mxu0 0.0
    %330 = vmatpush2.msra.mxu0 0.0
    %331 = vmatprep.subr.mxu0 0.0
    %332 = vmatpush2.msra.mxu0 0.0
    %333 = vmatprep.subr.mxu0 0.0
    %334 = vmatpush2.msra.mxu0 0.0
    %335 = vmatprep.subr.mxu0 0.0
    %336 = vmatpush2.msra.mxu0 0.0
    %337 = vmatprep.subr.mxu0 0.0
    %338 = vmatpush2.msra.mxu0 0.0
    %339 = vmatprep.subr.mxu0 0.0
    %340 = vmatpush2.msra.mxu0 0.0
    %341 = vmatprep.subr.mxu0 0.0
    %342 = vmatpush2.msra.mxu0 0.0
    %343 = vmatprep.subr.mxu0 0.0
    %344 = vmatpush2.msra.mxu0 0.0
    %345 = vmatprep.subr.mxu0 0.0
    %346 = vmatpush2.msra.mxu0 0.0
    %347 = vmatprep.subr.mxu0 0.0
    %348 = vmatpush2.msra.mxu0 0.0
    %349 = vmatprep.subr.mxu0 0.0
    %350 = vmatpush2.msra.mxu0 0.0
    %351 = vmatprep.mubr.f32.mxu0 0.0
    %352 = vmatmul.mubr.f32.gmra.mxu0 %v282
    %v353 = vpop.f32.mrf.mxu0
    %v354 = vadd.f32 0.0, %v353
    %v355 = vpop.f32.mrf.mxu0
    %356 = vmatprep.mubr.f32.mxu0 0.0
    %357 = vmatmul.mubr.f32.gmra.mxu0 %v285
    %v358 = vpop.f32.mrf.mxu0
    %v359 = vadd.f32 0.0, %v358
    %v360 = vpop.f32.mrf.mxu0
    %361 = vdwg.mxu0
    %v362 = vmul.f32 %v354, 0.35355338
    %v363 = vmul.f32 %v359, 0.35355338
    %366 = vrot.lane.b32.xlu0 %v362, 120
    %v367 = vpop.permute.xlu0 %366
    %368 = vrot.lane.b32.xlu0 %v363, 120
    %v369 = vpop.permute.xlu0 %368
    %370 = vrot.lane.b32.xlu0 %v362, 112
    %v371 = vpop.permute.xlu0 %370
    %372 = vrot.lane.b32.xlu0 %v363, 112
    %v373 = vpop.permute.xlu0 %372
    %374 = vrot.lane.b32.xlu0 %v362, 104
    %v375 = vpop.permute.xlu0 %374
    %376 = vrot.lane.b32.xlu0 %v363, 104
    %v377 = vpop.permute.xlu0 %376
    %380 = vrot.lane.b32.xlu0 %v354, 120
    %v381 = vpop.permute.xlu0 %380
    %382 = vrot.lane.b32.xlu0 %v359, 120
    %v383 = vpop.permute.xlu0 %382
    %384 = vrot.lane.b32.xlu0 %v354, 112
    %v385 = vpop.permute.xlu0 %384
    %386 = vrot.lane.b32.xlu0 %v359, 112
    %v387 = vpop.permute.xlu0 %386
    %388 = vrot.lane.b32.xlu0 %v354, 104
    %v389 = vpop.permute.xlu0 %388
    %390 = vrot.lane.b32.xlu0 %v359, 104
    %v391 = vpop.permute.xlu0 %390
    %392 = vrot.lane.b32.xlu0 %v354, 96
    %v393 = vpop.permute.xlu0 %392
    %vm394 = vcmask 64512
    %v395 = vsel %vm394, %v362, 0
    %v397 = vsel %vm394, %v393, 0
    %399 = vmatprep.subr.mxu0 0.0
    %400 = vmatpush1.xpose.msra.mxu0 0.0
    %401 = vmatprep.subr.mxu0 0.0
    %402 = vmatpush1.xpose.msra.mxu0 0.0
    %403 = vmatprep.subr.mxu0 0.0
    %404 = vmatpush1.xpose.msra.mxu0 0.0
    %405 = vmatprep.subr.mxu0 0.0
    %406 = vmatpush1.xpose.msra.mxu0 0.0
    %407 = vmatprep.subr.mxu0 0.0
    %408 = vmatpush1.xpose.msra.mxu0 0.0
    %409 = vmatprep.subr.mxu0 0.0
    %410 = vmatpush1.xpose.msra.mxu0 0.0
    %411 = vmatprep.subr.mxu0 0.0
    %412 = vmatpush1.xpose.msra.mxu0 0.0
    %413 = vmatprep.subr.mxu0 0.0
    %414 = vmatpush1.xpose.msra.mxu0 0.0
    %415 = vmatprep.subr.mxu0 0.0
    %416 = vmatpush1.xpose.msra.mxu0 0.0
    %417 = vmatprep.subr.mxu0 0.0
    %418 = vmatpush1.xpose.msra.mxu0 0.0
    %419 = vmatprep.subr.mxu0 0.0
    %420 = vmatpush1.xpose.msra.mxu0 0.0
    %421 = vmatprep.subr.mxu0 0.0
    %422 = vmatpush1.xpose.msra.mxu0 0.0
    %423 = vmatprep.subr.mxu0 0.0
    %424 = vmatpush1.xpose.msra.mxu0 0.0
    %425 = vmatprep.subr.mxu0 0.0
    %426 = vmatpush1.xpose.msra.mxu0 0.0
    %427 = vmatprep.subr.mxu0 0.0
    %428 = vmatpush1.xpose.msra.mxu0 0.0
    %429 = vmatprep.subr.mxu0 0.0
    %430 = vmatpush1.xpose.msra.mxu0 %v397
    %431 = vmatprep.subr.mxu0 0.0
    %432 = vmatpush2.xpose.msra.mxu0 0.0
    %433 = vmatprep.subr.mxu0 0.0
    %434 = vmatpush2.xpose.msra.mxu0 0.0
    %435 = vmatprep.subr.mxu0 0.0
    %436 = vmatpush2.xpose.msra.mxu0 0.0
    %437 = vmatprep.subr.mxu0 0.0
    %438 = vmatpush2.xpose.msra.mxu0 0.0
    %439 = vmatprep.subr.mxu0 0.0
    %440 = vmatpush2.xpose.msra.mxu0 0.0
    %441 = vmatprep.subr.mxu0 0.0
    %442 = vmatpush2.xpose.msra.mxu0 0.0
    %443 = vmatprep.subr.mxu0 0.0
    %444 = vmatpush2.xpose.msra.mxu0 0.0
    %445 = vmatprep.subr.mxu0 0.0
    %446 = vmatpush2.xpose.msra.mxu0 0.0
    %447 = vmatprep.subr.mxu0 0.0
    %448 = vmatpush2.xpose.msra.mxu0 0.0
    %449 = vmatprep.subr.mxu0 0.0
    %450 = vmatpush2.xpose.msra.mxu0 0.0
    %451 = vmatprep.subr.mxu0 0.0
    %452 = vmatpush2.xpose.msra.mxu0 0.0
    %453 = vmatprep.subr.mxu0 0.0
    %454 = vmatpush2.xpose.msra.mxu0 0.0
    %455 = vmatprep.subr.mxu0 0.0
    %456 = vmatpush2.xpose.msra.mxu0 0.0
    %457 = vmatprep.subr.mxu0 0.0
    %458 = vmatpush2.xpose.msra.mxu0 0.0
    %459 = vmatprep.subr.mxu0 0.0
    %460 = vmatpush2.xpose.msra.mxu0 0.0
    %461 = vmatprep.subr.mxu0 0.0
    %462 = vmatpush2.xpose.msra.mxu0 0.0
    %463 = vmatprep.mubr.f32.mxu0 0.0
    %464 = vmatmul.mubr.f32.gmra.mxu0 %v395
    %v465 = vpop.f32.mrf.mxu0
    %v466 = vadd.f32 %v226, %v465
    %v467 = vpop.f32.mrf.mxu0
    %468 = vdwg.mxu0
    %469 = vrot.lane.b32.xlu0 %v359, 96
    %v470 = vpop.permute.xlu0 %469
    %v471 = vsel %vm394, %v363, 0
    %v473 = vsel %vm394, %v470, 0
    %475 = vmatprep.subr.mxu0 0.0
    %476 = vmatpush1.xpose.msra.mxu0 0.0
    %477 = vmatprep.subr.mxu0 0.0
    %478 = vmatpush1.xpose.msra.mxu0 0.0
    %479 = vmatprep.subr.mxu0 0.0
    %480 = vmatpush1.xpose.msra.mxu0 0.0
    %481 = vmatprep.subr.mxu0 0.0
    %482 = vmatpush1.xpose.msra.mxu0 0.0
    %483 = vmatprep.subr.mxu0 0.0
    %484 = vmatpush1.xpose.msra.mxu0 0.0
    %485 = vmatprep.subr.mxu0 0.0
    %486 = vmatpush1.xpose.msra.mxu0 0.0
    %487 = vmatprep.subr.mxu0 0.0
    %488 = vmatpush1.xpose.msra.mxu0 0.0
    %489 = vmatprep.subr.mxu0 0.0
    %490 = vmatpush1.xpose.msra.mxu0 0.0
    %491 = vmatprep.subr.mxu0 0.0
    %492 = vmatpush1.xpose.msra.mxu0 0.0
    %493 = vmatprep.subr.mxu0 0.0
    %494 = vmatpush1.xpose.msra.mxu0 0.0
    %495 = vmatprep.subr.mxu0 0.0
    %496 = vmatpush1.xpose.msra.mxu0 0.0
    %497 = vmatprep.subr.mxu0 0.0
    %498 = vmatpush1.xpose.msra.mxu0 0.0
    %499 = vmatprep.subr.mxu0 0.0
    %500 = vmatpush1.xpose.msra.mxu0 0.0
    %501 = vmatprep.subr.mxu0 0.0
    %502 = vmatpush1.xpose.msra.mxu0 0.0
    %503 = vmatprep.subr.mxu0 0.0
    %504 = vmatpush1.xpose.msra.mxu0 0.0
    %505 = vmatprep.subr.mxu0 0.0
    %506 = vmatpush1.xpose.msra.mxu0 %v473
    %507 = vmatprep.subr.mxu0 0.0
    %508 = vmatpush2.xpose.msra.mxu0 0.0
    %509 = vmatprep.subr.mxu0 0.0
    %510 = vmatpush2.xpose.msra.mxu0 0.0
    %511 = vmatprep.subr.mxu0 0.0
    %512 = vmatpush2.xpose.msra.mxu0 0.0
    %513 = vmatprep.subr.mxu0 0.0
    %514 = vmatpush2.xpose.msra.mxu0 0.0
    %515 = vmatprep.subr.mxu0 0.0
    %516 = vmatpush2.xpose.msra.mxu0 0.0
    %517 = vmatprep.subr.mxu0 0.0
    %518 = vmatpush2.xpose.msra.mxu0 0.0
    %519 = vmatprep.subr.mxu0 0.0
    %520 = vmatpush2.xpose.msra.mxu0 0.0
    %521 = vmatprep.subr.mxu0 0.0
    %522 = vmatpush2.xpose.msra.mxu0 0.0
    %523 = vmatprep.subr.mxu0 0.0
    %524 = vmatpush2.xpose.msra.mxu0 0.0
    %525 = vmatprep.subr.mxu0 0.0
    %526 = vmatpush2.xpose.msra.mxu0 0.0
    %527 = vmatprep.subr.mxu0 0.0
    %528 = vmatpush2.xpose.msra.mxu0 0.0
    %529 = vmatprep.subr.mxu0 0.0
    %530 = vmatpush2.xpose.msra.mxu0 0.0
    %531 = vmatprep.subr.mxu0 0.0
    %532 = vmatpush2.xpose.msra.mxu0 0.0
    %533 = vmatprep.subr.mxu0 0.0
    %534 = vmatpush2.xpose.msra.mxu0 0.0
    %535 = vmatprep.subr.mxu0 0.0
    %536 = vmatpush2.xpose.msra.mxu0 0.0
    %537 = vmatprep.subr.mxu0 0.0
    %538 = vmatpush2.xpose.msra.mxu0 0.0
    %539 = vmatprep.mubr.f32.mxu0 0.0
    %540 = vmatmul.mubr.f32.gmra.mxu0 %v471
    %v541 = vpop.f32.mrf.mxu0
    %v542 = vadd.f32 %v226, %v541
    %v543 = vpop.f32.mrf.mxu0
    %544 = vdwg.mxu0
    %545 = vrot.lane.b32.xlu0 %v381, 96
    %v546 = vpop.permute.xlu0 %545
    %v547 = vsel %vm394, %v367, 0
    %v549 = vsel %vm394, %v546, 0
    %551 = vmatprep.subr.mxu0 0.0
    %552 = vmatpush1.xpose.msra.mxu0 0.0
    %553 = vmatprep.subr.mxu0 0.0
    %554 = vmatpush1.xpose.msra.mxu0 0.0
    %555 = vmatprep.subr.mxu0 0.0
    %556 = vmatpush1.xpose.msra.mxu0 0.0
    %557 = vmatprep.subr.mxu0 0.0
    %558 = vmatpush1.xpose.msra.mxu0 0.0
    %559 = vmatprep.subr.mxu0 0.0
    %560 = vmatpush1.xpose.msra.mxu0 0.0
    %561 = vmatprep.subr.mxu0 0.0
    %562 = vmatpush1.xpose.msra.mxu0 0.0
    %563 = vmatprep.subr.mxu0 0.0
    %564 = vmatpush1.xpose.msra.mxu0 0.0
    %565 = vmatprep.subr.mxu0 0.0
    %566 = vmatpush1.xpose.msra.mxu0 0.0
    %567 = vmatprep.subr.mxu0 0.0
    %568 = vmatpush1.xpose.msra.mxu0 0.0
    %569 = vmatprep.subr.mxu0 0.0
    %570 = vmatpush1.xpose.msra.mxu0 0.0
    %571 = vmatprep.subr.mxu0 0.0
    %572 = vmatpush1.xpose.msra.mxu0 0.0
    %573 = vmatprep.subr.mxu0 0.0
    %574 = vmatpush1.xpose.msra.mxu0 0.0
    %575 = vmatprep.subr.mxu0 0.0
    %576 = vmatpush1.xpose.msra.mxu0 0.0
    %577 = vmatprep.subr.mxu0 0.0
    %578 = vmatpush1.xpose.msra.mxu0 0.0
    %579 = vmatprep.subr.mxu0 0.0
    %580 = vmatpush1.xpose.msra.mxu0 0.0
    %581 = vmatprep.subr.mxu0 0.0
    %582 = vmatpush1.xpose.msra.mxu0 %v549
    %583 = vmatprep.subr.mxu0 0.0
    %584 = vmatpush2.xpose.msra.mxu0 0.0
    %585 = vmatprep.subr.mxu0 0.0
    %586 = vmatpush2.xpose.msra.mxu0 0.0
    %587 = vmatprep.subr.mxu0 0.0
    %588 = vmatpush2.xpose.msra.mxu0 0.0
    %589 = vmatprep.subr.mxu0 0.0
    %590 = vmatpush2.xpose.msra.mxu0 0.0
    %591 = vmatprep.subr.mxu0 0.0
    %592 = vmatpush2.xpose.msra.mxu0 0.0
    %593 = vmatprep.subr.mxu0 0.0
    %594 = vmatpush2.xpose.msra.mxu0 0.0
    %595 = vmatprep.subr.mxu0 0.0
    %596 = vmatpush2.xpose.msra.mxu0 0.0
    %597 = vmatprep.subr.mxu0 0.0
    %598 = vmatpush2.xpose.msra.mxu0 0.0
    %599 = vmatprep.subr.mxu0 0.0
    %600 = vmatpush2.xpose.msra.mxu0 0.0
    %601 = vmatprep.subr.mxu0 0.0
    %602 = vmatpush2.xpose.msra.mxu0 0.0
    %603 = vmatprep.subr.mxu0 0.0
    %604 = vmatpush2.xpose.msra.mxu0 0.0
    %605 = vmatprep.subr.mxu0 0.0
    %606 = vmatpush2.xpose.msra.mxu0 0.0
    %607 = vmatprep.subr.mxu0 0.0
    %608 = vmatpush2.xpose.msra.mxu0 0.0
    %609 = vmatprep.subr.mxu0 0.0
    %610 = vmatpush2.xpose.msra.mxu0 0.0
    %611 = vmatprep.subr.mxu0 0.0
    %612 = vmatpush2.xpose.msra.mxu0 0.0
    %613 = vmatprep.subr.mxu0 0.0
    %614 = vmatpush2.xpose.msra.mxu0 0.0
    %615 = vmatprep.mubr.f32.mxu0 0.0
    %616 = vmatmul.mubr.f32.gmra.mxu0 %v547
    %v617 = vpop.f32.mrf.mxu0
    %v618 = vadd.f32 %v226, %v617
    %v619 = vpop.f32.mrf.mxu0
    %620 = vdwg.mxu0
    %621 = vrot.lane.b32.xlu0 %v383, 96
    %v622 = vpop.permute.xlu0 %621
    %v623 = vsel %vm394, %v369, 0
    %v625 = vsel %vm394, %v622, 0
    %627 = vmatprep.subr.mxu0 0.0
    %628 = vmatpush1.xpose.msra.mxu0 0.0
    %629 = vmatprep.subr.mxu0 0.0
    %630 = vmatpush1.xpose.msra.mxu0 0.0
    %631 = vmatprep.subr.mxu0 0.0
    %632 = vmatpush1.xpose.msra.mxu0 0.0
    %633 = vmatprep.subr.mxu0 0.0
    %634 = vmatpush1.xpose.msra.mxu0 0.0
    %635 = vmatprep.subr.mxu0 0.0
    %636 = vmatpush1.xpose.msra.mxu0 0.0
    %637 = vmatprep.subr.mxu0 0.0
    %638 = vmatpush1.xpose.msra.mxu0 0.0
    %639 = vmatprep.subr.mxu0 0.0
    %640 = vmatpush1.xpose.msra.mxu0 0.0
    %641 = vmatprep.subr.mxu0 0.0
    %642 = vmatpush1.xpose.msra.mxu0 0.0
    %643 = vmatprep.subr.mxu0 0.0
    %644 = vmatpush1.xpose.msra.mxu0 0.0
    %645 = vmatprep.subr.mxu0 0.0
    %646 = vmatpush1.xpose.msra.mxu0 0.0
    %647 = vmatprep.subr.mxu0 0.0
    %648 = vmatpush1.xpose.msra.mxu0 0.0
    %649 = vmatprep.subr.mxu0 0.0
    %650 = vmatpush1.xpose.msra.mxu0 0.0
    %651 = vmatprep.subr.mxu0 0.0
    %652 = vmatpush1.xpose.msra.mxu0 0.0
    %653 = vmatprep.subr.mxu0 0.0
    %654 = vmatpush1.xpose.msra.mxu0 0.0
    %655 = vmatprep.subr.mxu0 0.0
    %656 = vmatpush1.xpose.msra.mxu0 0.0
    %657 = vmatprep.subr.mxu0 0.0
    %658 = vmatpush1.xpose.msra.mxu0 %v625
    %659 = vmatprep.subr.mxu0 0.0
    %660 = vmatpush2.xpose.msra.mxu0 0.0
    %661 = vmatprep.subr.mxu0 0.0
    %662 = vmatpush2.xpose.msra.mxu0 0.0
    %663 = vmatprep.subr.mxu0 0.0
    %664 = vmatpush2.xpose.msra.mxu0 0.0
    %665 = vmatprep.subr.mxu0 0.0
    %666 = vmatpush2.xpose.msra.mxu0 0.0
    %667 = vmatprep.subr.mxu0 0.0
    %668 = vmatpush2.xpose.msra.mxu0 0.0
    %669 = vmatprep.subr.mxu0 0.0
    %670 = vmatpush2.xpose.msra.mxu0 0.0
    %671 = vmatprep.subr.mxu0 0.0
    %672 = vmatpush2.xpose.msra.mxu0 0.0
    %673 = vmatprep.subr.mxu0 0.0
    %674 = vmatpush2.xpose.msra.mxu0 0.0
    %675 = vmatprep.subr.mxu0 0.0
    %676 = vmatpush2.xpose.msra.mxu0 0.0
    %677 = vmatprep.subr.mxu0 0.0
    %678 = vmatpush2.xpose.msra.mxu0 0.0
    %679 = vmatprep.subr.mxu0 0.0
    %680 = vmatpush2.xpose.msra.mxu0 0.0
    %681 = vmatprep.subr.mxu0 0.0
    %682 = vmatpush2.xpose.msra.mxu0 0.0
    %683 = vmatprep.subr.mxu0 0.0
    %684 = vmatpush2.xpose.msra.mxu0 0.0
    %685 = vmatprep.subr.mxu0 0.0
    %686 = vmatpush2.xpose.msra.mxu0 0.0
    %687 = vmatprep.subr.mxu0 0.0
    %688 = vmatpush2.xpose.msra.mxu0 0.0
    %689 = vmatprep.subr.mxu0 0.0
    %690 = vmatpush2.xpose.msra.mxu0 0.0
    %691 = vmatprep.mubr.f32.mxu0 0.0
    %692 = vmatmul.mubr.f32.gmra.mxu0 %v623
    %v693 = vpop.f32.mrf.mxu0
    %v694 = vadd.f32 %v226, %v693
    %v695 = vpop.f32.mrf.mxu0
    %696 = vdwg.mxu0
    %697 = vrot.lane.b32.xlu0 %v385, 96
    %v698 = vpop.permute.xlu0 %697
    %v699 = vsel %vm394, %v371, 0
    %v701 = vsel %vm394, %v698, 0
    %703 = vmatprep.subr.mxu0 0.0
    %704 = vmatpush1.xpose.msra.mxu0 0.0
    %705 = vmatprep.subr.mxu0 0.0
    %706 = vmatpush1.xpose.msra.mxu0 0.0
    %707 = vmatprep.subr.mxu0 0.0
    %708 = vmatpush1.xpose.msra.mxu0 0.0
    %709 = vmatprep.subr.mxu0 0.0
    %710 = vmatpush1.xpose.msra.mxu0 0.0
    %711 = vmatprep.subr.mxu0 0.0
    %712 = vmatpush1.xpose.msra.mxu0 0.0
    %713 = vmatprep.subr.mxu0 0.0
    %714 = vmatpush1.xpose.msra.mxu0 0.0
    %715 = vmatprep.subr.mxu0 0.0
    %716 = vmatpush1.xpose.msra.mxu0 0.0
    %717 = vmatprep.subr.mxu0 0.0
    %718 = vmatpush1.xpose.msra.mxu0 0.0
    %719 = vmatprep.subr.mxu0 0.0
    %720 = vmatpush1.xpose.msra.mxu0 0.0
    %721 = vmatprep.subr.mxu0 0.0
    %722 = vmatpush1.xpose.msra.mxu0 0.0
    %723 = vmatprep.subr.mxu0 0.0
    %724 = vmatpush1.xpose.msra.mxu0 0.0
    %725 = vmatprep.subr.mxu0 0.0
    %726 = vmatpush1.xpose.msra.mxu0 0.0
    %727 = vmatprep.subr.mxu0 0.0
    %728 = vmatpush1.xpose.msra.mxu0 0.0
    %729 = vmatprep.subr.mxu0 0.0
    %730 = vmatpush1.xpose.msra.mxu0 0.0
    %731 = vmatprep.subr.mxu0 0.0
    %732 = vmatpush1.xpose.msra.mxu0 0.0
    %733 = vmatprep.subr.mxu0 0.0
    %734 = vmatpush1.xpose.msra.mxu0 %v701
    %735 = vmatprep.subr.mxu0 0.0
    %736 = vmatpush2.xpose.msra.mxu0 0.0
    %737 = vmatprep.subr.mxu0 0.0
    %738 = vmatpush2.xpose.msra.mxu0 0.0
    %739 = vmatprep.subr.mxu0 0.0
    %740 = vmatpush2.xpose.msra.mxu0 0.0
    %741 = vmatprep.subr.mxu0 0.0
    %742 = vmatpush2.xpose.msra.mxu0 0.0
    %743 = vmatprep.subr.mxu0 0.0
    %744 = vmatpush2.xpose.msra.mxu0 0.0
    %745 = vmatprep.subr.mxu0 0.0
    %746 = vmatpush2.xpose.msra.mxu0 0.0
    %747 = vmatprep.subr.mxu0 0.0
    %748 = vmatpush2.xpose.msra.mxu0 0.0
    %749 = vmatprep.subr.mxu0 0.0
    %750 = vmatpush2.xpose.msra.mxu0 0.0
    %751 = vmatprep.subr.mxu0 0.0
    %752 = vmatpush2.xpose.msra.mxu0 0.0
    %753 = vmatprep.subr.mxu0 0.0
    %754 = vmatpush2.xpose.msra.mxu0 0.0
    %755 = vmatprep.subr.mxu0 0.0
    %756 = vmatpush2.xpose.msra.mxu0 0.0
    %757 = vmatprep.subr.mxu0 0.0
    %758 = vmatpush2.xpose.msra.mxu0 0.0
    %759 = vmatprep.subr.mxu0 0.0
    %760 = vmatpush2.xpose.msra.mxu0 0.0
    %761 = vmatprep.subr.mxu0 0.0
    %762 = vmatpush2.xpose.msra.mxu0 0.0
    %763 = vmatprep.subr.mxu0 0.0
    %764 = vmatpush2.xpose.msra.mxu0 0.0
    %765 = vmatprep.subr.mxu0 0.0
    %766 = vmatpush2.xpose.msra.mxu0 0.0
    %767 = vmatprep.mubr.f32.mxu0 0.0
    %768 = vmatmul.mubr.f32.gmra.mxu0 %v699
    %v769 = vpop.f32.mrf.mxu0
    %v770 = vadd.f32 %v226, %v769
    %v771 = vpop.f32.mrf.mxu0
    %772 = vdwg.mxu0
    %773 = vrot.lane.b32.xlu0 %v387, 96
    %v774 = vpop.permute.xlu0 %773
    %v775 = vsel %vm394, %v373, 0
    %v777 = vsel %vm394, %v774, 0
    %779 = vmatprep.subr.mxu0 0.0
    %780 = vmatpush1.xpose.msra.mxu0 0.0
    %781 = vmatprep.subr.mxu0 0.0
    %782 = vmatpush1.xpose.msra.mxu0 0.0
    %783 = vmatprep.subr.mxu0 0.0
    %784 = vmatpush1.xpose.msra.mxu0 0.0
    %785 = vmatprep.subr.mxu0 0.0
    %786 = vmatpush1.xpose.msra.mxu0 0.0
    %787 = vmatprep.subr.mxu0 0.0
    %788 = vmatpush1.xpose.msra.mxu0 0.0
    %789 = vmatprep.subr.mxu0 0.0
    %790 = vmatpush1.xpose.msra.mxu0 0.0
    %791 = vmatprep.subr.mxu0 0.0
    %792 = vmatpush1.xpose.msra.mxu0 0.0
    %793 = vmatprep.subr.mxu0 0.0
    %794 = vmatpush1.xpose.msra.mxu0 0.0
    %795 = vmatprep.subr.mxu0 0.0
    %796 = vmatpush1.xpose.msra.mxu0 0.0
    %797 = vmatprep.subr.mxu0 0.0
    %798 = vmatpush1.xpose.msra.mxu0 0.0
    %799 = vmatprep.subr.mxu0 0.0
    %800 = vmatpush1.xpose.msra.mxu0 0.0
    %801 = vmatprep.subr.mxu0 0.0
    %802 = vmatpush1.xpose.msra.mxu0 0.0
    %803 = vmatprep.subr.mxu0 0.0
    %804 = vmatpush1.xpose.msra.mxu0 0.0
    %805 = vmatprep.subr.mxu0 0.0
    %806 = vmatpush1.xpose.msra.mxu0 0.0
    %807 = vmatprep.subr.mxu0 0.0
    %808 = vmatpush1.xpose.msra.mxu0 0.0
    %809 = vmatprep.subr.mxu0 0.0
    %810 = vmatpush1.xpose.msra.mxu0 %v777
    %811 = vmatprep.subr.mxu0 0.0
    %812 = vmatpush2.xpose.msra.mxu0 0.0
    %813 = vmatprep.subr.mxu0 0.0
    %814 = vmatpush2.xpose.msra.mxu0 0.0
    %815 = vmatprep.subr.mxu0 0.0
    %816 = vmatpush2.xpose.msra.mxu0 0.0
    %817 = vmatprep.subr.mxu0 0.0
    %818 = vmatpush2.xpose.msra.mxu0 0.0
    %819 = vmatprep.subr.mxu0 0.0
    %820 = vmatpush2.xpose.msra.mxu0 0.0
    %821 = vmatprep.subr.mxu0 0.0
    %822 = vmatpush2.xpose.msra.mxu0 0.0
    %823 = vmatprep.subr.mxu0 0.0
    %824 = vmatpush2.xpose.msra.mxu0 0.0
    %825 = vmatprep.subr.mxu0 0.0
    %826 = vmatpush2.xpose.msra.mxu0 0.0
    %827 = vmatprep.subr.mxu0 0.0
    %828 = vmatpush2.xpose.msra.mxu0 0.0
    %829 = vmatprep.subr.mxu0 0.0
    %830 = vmatpush2.xpose.msra.mxu0 0.0
    %831 = vmatprep.subr.mxu0 0.0
    %832 = vmatpush2.xpose.msra.mxu0 0.0
    %833 = vmatprep.subr.mxu0 0.0
    %834 = vmatpush2.xpose.msra.mxu0 0.0
    %835 = vmatprep.subr.mxu0 0.0
    %836 = vmatpush2.xpose.msra.mxu0 0.0
    %837 = vmatprep.subr.mxu0 0.0
    %838 = vmatpush2.xpose.msra.mxu0 0.0
    %839 = vmatprep.subr.mxu0 0.0
    %840 = vmatpush2.xpose.msra.mxu0 0.0
    %841 = vmatprep.subr.mxu0 0.0
    %842 = vmatpush2.xpose.msra.mxu0 0.0
    %843 = vmatprep.mubr.f32.mxu0 0.0
    %844 = vmatmul.mubr.f32.gmra.mxu0 %v775
    %v845 = vpop.f32.mrf.mxu0
    %v846 = vadd.f32 %v226, %v845
    %v847 = vpop.f32.mrf.mxu0
    %848 = vdwg.mxu0
    %849 = vrot.lane.b32.xlu0 %v389, 96
    %v850 = vpop.permute.xlu0 %849
    %v851 = vsel %vm394, %v375, 0
    %v853 = vsel %vm394, %v850, 0
    %855 = vmatprep.subr.mxu0 0.0
    %856 = vmatpush1.xpose.msra.mxu0 0.0
    %857 = vmatprep.subr.mxu0 0.0
    %858 = vmatpush1.xpose.msra.mxu0 0.0
    %859 = vmatprep.subr.mxu0 0.0
    %860 = vmatpush1.xpose.msra.mxu0 0.0
    %861 = vmatprep.subr.mxu0 0.0
    %862 = vmatpush1.xpose.msra.mxu0 0.0
    %863 = vmatprep.subr.mxu0 0.0
    %864 = vmatpush1.xpose.msra.mxu0 0.0
    %865 = vmatprep.subr.mxu0 0.0
    %866 = vmatpush1.xpose.msra.mxu0 0.0
    %867 = vmatprep.subr.mxu0 0.0
    %868 = vmatpush1.xpose.msra.mxu0 0.0
    %869 = vmatprep.subr.mxu0 0.0
    %870 = vmatpush1.xpose.msra.mxu0 0.0
    %871 = vmatprep.subr.mxu0 0.0
    %872 = vmatpush1.xpose.msra.mxu0 0.0
    %873 = vmatprep.subr.mxu0 0.0
    %874 = vmatpush1.xpose.msra.mxu0 0.0
    %875 = vmatprep.subr.mxu0 0.0
    %876 = vmatpush1.xpose.msra.mxu0 0.0
    %877 = vmatprep.subr.mxu0 0.0
    %878 = vmatpush1.xpose.msra.mxu0 0.0
    %879 = vmatprep.subr.mxu0 0.0
    %880 = vmatpush1.xpose.msra.mxu0 0.0
    %881 = vmatprep.subr.mxu0 0.0
    %882 = vmatpush1.xpose.msra.mxu0 0.0
    %883 = vmatprep.subr.mxu0 0.0
    %884 = vmatpush1.xpose.msra.mxu0 0.0
    %885 = vmatprep.subr.mxu0 0.0
    %886 = vmatpush1.xpose.msra.mxu0 %v853
    %887 = vmatprep.subr.mxu0 0.0
    %888 = vmatpush2.xpose.msra.mxu0 0.0
    %889 = vmatprep.subr.mxu0 0.0
    %890 = vmatpush2.xpose.msra.mxu0 0.0
    %891 = vmatprep.subr.mxu0 0.0
    %892 = vmatpush2.xpose.msra.mxu0 0.0
    %893 = vmatprep.subr.mxu0 0.0
    %894 = vmatpush2.xpose.msra.mxu0 0.0
    %895 = vmatprep.subr.mxu0 0.0
    %896 = vmatpush2.xpose.msra.mxu0 0.0
    %897 = vmatprep.subr.mxu0 0.0
    %898 = vmatpush2.xpose.msra.mxu0 0.0
    %899 = vmatprep.subr.mxu0 0.0
    %900 = vmatpush2.xpose.msra.mxu0 0.0
    %901 = vmatprep.subr.mxu0 0.0
    %902 = vmatpush2.xpose.msra.mxu0 0.0
    %903 = vmatprep.subr.mxu0 0.0
    %904 = vmatpush2.xpose.msra.mxu0 0.0
    %905 = vmatprep.subr.mxu0 0.0
    %906 = vmatpush2.xpose.msra.mxu0 0.0
    %907 = vmatprep.subr.mxu0 0.0
    %908 = vmatpush2.xpose.msra.mxu0 0.0
    %909 = vmatprep.subr.mxu0 0.0
    %910 = vmatpush2.xpose.msra.mxu0 0.0
    %911 = vmatprep.subr.mxu0 0.0
    %912 = vmatpush2.xpose.msra.mxu0 0.0
    %913 = vmatprep.subr.mxu0 0.0
    %914 = vmatpush2.xpose.msra.mxu0 0.0
    %915 = vmatprep.subr.mxu0 0.0
    %916 = vmatpush2.xpose.msra.mxu0 0.0
    %917 = vmatprep.subr.mxu0 0.0
    %918 = vmatpush2.xpose.msra.mxu0 0.0
    %919 = vmatprep.mubr.f32.mxu0 0.0
    %920 = vmatmul.mubr.f32.gmra.mxu0 %v851
    %v921 = vpop.f32.mrf.mxu0
    %v922 = vadd.f32 %v226, %v921
    %v923 = vpop.f32.mrf.mxu0
    %924 = vdwg.mxu0
    %925 = vrot.lane.b32.xlu0 %v391, 96
    %v926 = vpop.permute.xlu0 %925
    %v927 = vsel %vm394, %v377, 0
    %v929 = vsel %vm394, %v926, 0
    %931 = vmatprep.subr.mxu0 0.0
    %932 = vmatpush1.xpose.msra.mxu0 0.0
    %933 = vmatprep.subr.mxu0 0.0
    %934 = vmatpush1.xpose.msra.mxu0 0.0
    %935 = vmatprep.subr.mxu0 0.0
    %936 = vmatpush1.xpose.msra.mxu0 0.0
    %937 = vmatprep.subr.mxu0 0.0
    %938 = vmatpush1.xpose.msra.mxu0 0.0
    %939 = vmatprep.subr.mxu0 0.0
    %940 = vmatpush1.xpose.msra.mxu0 0.0
    %941 = vmatprep.subr.mxu0 0.0
    %942 = vmatpush1.xpose.msra.mxu0 0.0
    %943 = vmatprep.subr.mxu0 0.0
    %944 = vmatpush1.xpose.msra.mxu0 0.0
    %945 = vmatprep.subr.mxu0 0.0
    %946 = vmatpush1.xpose.msra.mxu0 0.0
    %947 = vmatprep.subr.mxu0 0.0
    %948 = vmatpush1.xpose.msra.mxu0 0.0
    %949 = vmatprep.subr.mxu0 0.0
    %950 = vmatpush1.xpose.msra.mxu0 0.0
    %951 = vmatprep.subr.mxu0 0.0
    %952 = vmatpush1.xpose.msra.mxu0 0.0
    %953 = vmatprep.subr.mxu0 0.0
    %954 = vmatpush1.xpose.msra.mxu0 0.0
    %955 = vmatprep.subr.mxu0 0.0
    %956 = vmatpush1.xpose.msra.mxu0 0.0
    %957 = vmatprep.subr.mxu0 0.0
    %958 = vmatpush1.xpose.msra.mxu0 0.0
    %959 = vmatprep.subr.mxu0 0.0
    %960 = vmatpush1.xpose.msra.mxu0 0.0
    %961 = vmatprep.subr.mxu0 0.0
    %962 = vmatpush1.xpose.msra.mxu0 %v929
    %963 = vmatprep.subr.mxu0 0.0
    %964 = vmatpush2.xpose.msra.mxu0 0.0
    %965 = vmatprep.subr.mxu0 0.0
    %966 = vmatpush2.xpose.msra.mxu0 0.0
    %967 = vmatprep.subr.mxu0 0.0
    %968 = vmatpush2.xpose.msra.mxu0 0.0
    %969 = vmatprep.subr.mxu0 0.0
    %970 = vmatpush2.xpose.msra.mxu0 0.0
    %971 = vmatprep.subr.mxu0 0.0
    %972 = vmatpush2.xpose.msra.mxu0 0.0
    %973 = vmatprep.subr.mxu0 0.0
    %974 = vmatpush2.xpose.msra.mxu0 0.0
    %975 = vmatprep.subr.mxu0 0.0
    %976 = vmatpush2.xpose.msra.mxu0 0.0
    %977 = vmatprep.subr.mxu0 0.0
    %978 = vmatpush2.xpose.msra.mxu0 0.0
    %979 = vmatprep.subr.mxu0 0.0
    %980 = vmatpush2.xpose.msra.mxu0 0.0
    %981 = vmatprep.subr.mxu0 0.0
    %982 = vmatpush2.xpose.msra.mxu0 0.0
    %983 = vmatprep.subr.mxu0 0.0
    %984 = vmatpush2.xpose.msra.mxu0 0.0
    %985 = vmatprep.subr.mxu0 0.0
    %986 = vmatpush2.xpose.msra.mxu0 0.0
    %987 = vmatprep.subr.mxu0 0.0
    %988 = vmatpush2.xpose.msra.mxu0 0.0
    %989 = vmatprep.subr.mxu0 0.0
    %990 = vmatpush2.xpose.msra.mxu0 0.0
    %991 = vmatprep.subr.mxu0 0.0
    %992 = vmatpush2.xpose.msra.mxu0 0.0
    %993 = vmatprep.subr.mxu0 0.0
    %994 = vmatpush2.xpose.msra.mxu0 0.0
    %995 = vmatprep.mubr.f32.mxu0 0.0
    %996 = vmatmul.mubr.f32.gmra.mxu0 %v927
    %v997 = vpop.f32.mrf.mxu0
    %v998 = vadd.f32 %v226, %v997
    %v999 = vpop.f32.mrf.mxu0
    %1000 = vdwg.mxu0
    %v1001 = vsel %vm394, %v466, -inf
    %1002 = vmax.xlane.f32.xlu0 %v1001
    %v1003 = vpop.xlane.xlu0 %1002
    %v1004 = vsel %vm394, %v542, -inf
    %1005 = vmax.xlane.f32.xlu0 %v1004
    %v1006 = vpop.xlane.xlu0 %1005
    %v1007 = vsel %vm394, %v618, -inf
    %1008 = vmax.xlane.f32.xlu0 %v1007
    %v1009 = vpop.xlane.xlu0 %1008
    %v1010 = vsel %vm394, %v694, -inf
    %1011 = vmax.xlane.f32.xlu0 %v1010
    %v1012 = vpop.xlane.xlu0 %1011
    %v1013 = vsel %vm394, %v770, -inf
    %1014 = vmax.xlane.f32.xlu0 %v1013
    %v1015 = vpop.xlane.xlu0 %1014
    %v1016 = vsel %vm394, %v846, -inf
    %1017 = vmax.xlane.f32.xlu0 %v1016
    %v1018 = vpop.xlane.xlu0 %1017
    %v1019 = vsel %vm394, %v922, -inf
    %1020 = vmax.xlane.f32.xlu0 %v1019
    %v1021 = vpop.xlane.xlu0 %1020
    %v1022 = vsel %vm394, %v998, -inf
    %1023 = vmax.xlane.f32.xlu0 %v1022
    %v1024 = vpop.xlane.xlu0 %1023
    %v1025 = vsub.f32 %v466, %v1003
    %v1026 = vsub.f32 %v542, %v1006
    %v1027 = vsub.f32 %v618, %v1009
    %v1028 = vsub.f32 %v694, %v1012
    %v1029 = vsub.f32 %v770, %v1015
    %v1030 = vsub.f32 %v846, %v1018
    %v1031 = vsub.f32 %v922, %v1021
    %v1032 = vsub.f32 %v998, %v1024
    %v1033 = vmul.f32 %v1025, 1.442695
    %v1034 = vpow.pop %v1033
    %v1035 = vmul.f32 %v1026, 1.442695
    %v1036 = vpow.pop %v1035
    %v1037 = vmul.f32 %v1027, 1.442695
    %v1038 = vpow.pop %v1037
    %v1039 = vmul.f32 %v1028, 1.442695
    %v1040 = vpow.pop %v1039
    %v1041 = vmul.f32 %v1029, 1.442695
    %v1042 = vpow.pop %v1041
    %v1043 = vmul.f32 %v1030, 1.442695
    %v1044 = vpow.pop %v1043
    %v1045 = vmul.f32 %v1031, 1.442695
    %v1046 = vpow.pop %v1045
    %v1047 = vmul.f32 %v1032, 1.442695
    %v1048 = vpow.pop %v1047
    %v1049 = vsel %vm394, %v1034, 0.0
    %1050 = vadd.xlane.f32.xlu0 %v1049
    %v1051 = vpop.xlane.xlu0 %1050
    %v1052 = vsel %vm394, %v1036, 0.0
    %1053 = vadd.xlane.f32.xlu0 %v1052
    %v1054 = vpop.xlane.xlu0 %1053
    %v1055 = vsel %vm394, %v1038, 0.0
    %1056 = vadd.xlane.f32.xlu0 %v1055
    %v1057 = vpop.xlane.xlu0 %1056
    %v1058 = vsel %vm394, %v1040, 0.0
    %1059 = vadd.xlane.f32.xlu0 %v1058
    %v1060 = vpop.xlane.xlu0 %1059
    %v1061 = vsel %vm394, %v1042, 0.0
    %1062 = vadd.xlane.f32.xlu0 %v1061
    %v1063 = vpop.xlane.xlu0 %1062
    %v1064 = vsel %vm394, %v1044, 0.0
    %1065 = vadd.xlane.f32.xlu0 %v1064
    %v1066 = vpop.xlane.xlu0 %1065
    %v1067 = vsel %vm394, %v1046, 0.0
    %1068 = vadd.xlane.f32.xlu0 %v1067
    %v1069 = vpop.xlane.xlu0 %1068
    %v1070 = vsel %vm394, %v1048, 0.0
    %1071 = vadd.xlane.f32.xlu0 %v1070
    %v1072 = vpop.xlane.xlu0 %1071
    %v1073 = vrcp.pop %v1051
    %v1074 = vrcp.pop %v1054
    %v1075 = vrcp.pop %v1057
    %v1076 = vrcp.pop %v1060
    %v1077 = vrcp.pop %v1063
    %v1078 = vrcp.pop %v1066
    %v1079 = vrcp.pop %v1069
    %v1080 = vrcp.pop %v1072
    %v1081 = vmul.f32 %v1034, %v1073
    %v1082 = vmul.f32 %v1036, %v1074
    %v1083 = vmul.f32 %v1038, %v1075
    %v1084 = vmul.f32 %v1040, %v1076
    %v1085 = vmul.f32 %v1042, %v1077
    %v1086 = vmul.f32 %v1044, %v1078
    %v1087 = vmul.f32 %v1046, %v1079
    %v1088 = vmul.f32 %v1048, %v1080
    %1089 = vrot.lane.b32.xlu0 %v354, 64
    %v1090 = vpop.permute.xlu0 %1089
    %v1093 = vsel %vm394, %v1081, 0
    %1095 = vmatprep.subr.mxu0 0.0
    %1096 = vmatpush1.msra.mxu0 0.0
    %1097 = vmatprep.subr.mxu0 0.0
    %1098 = vmatpush1.msra.mxu0 0.0
    %1099 = vmatprep.subr.mxu0 0.0
    %1100 = vmatpush1.msra.mxu0 0.0
    %1101 = vmatprep.subr.mxu0 0.0
    %1102 = vmatpush1.msra.mxu0 0.0
    %1103 = vmatprep.subr.mxu0 0.0
    %1104 = vmatpush1.msra.mxu0 0.0
    %1105 = vmatprep.subr.mxu0 0.0
    %1106 = vmatpush1.msra.mxu0 0.0
    %1107 = vmatprep.subr.mxu0 0.0
    %1108 = vmatpush1.msra.mxu0 0.0
    %1109 = vmatprep.subr.mxu0 0.0
    %1110 = vmatpush1.msra.mxu0 0.0
    %1111 = vmatprep.subr.mxu0 0.0
    %1112 = vmatpush1.msra.mxu0 0.0
    %1113 = vmatprep.subr.mxu0 0.0
    %1114 = vmatpush1.msra.mxu0 0.0
    %1115 = vmatprep.subr.mxu0 0.0
    %1116 = vmatpush1.msra.mxu0 0.0
    %1117 = vmatprep.subr.mxu0 0.0
    %1118 = vmatpush1.msra.mxu0 0.0
    %1119 = vmatprep.subr.mxu0 0.0
    %1120 = vmatpush1.msra.mxu0 0.0
    %1121 = vmatprep.subr.mxu0 0.0
    %1122 = vmatpush1.msra.mxu0 0.0
    %1123 = vmatprep.subr.mxu0 0.0
    %1124 = vmatpush1.msra.mxu0 0.0
    %1125 = vmatprep.subr.mxu0 0.0
    %1126 = vmatpush1.msra.mxu0 %v1090
    %1127 = vmatprep.subr.mxu0 0.0
    %1128 = vmatpush2.msra.mxu0 0.0
    %1129 = vmatprep.subr.mxu0 0.0
    %1130 = vmatpush2.msra.mxu0 0.0
    %1131 = vmatprep.subr.mxu0 0.0
    %1132 = vmatpush2.msra.mxu0 0.0
    %1133 = vmatprep.subr.mxu0 0.0
    %1134 = vmatpush2.msra.mxu0 0.0
    %1135 = vmatprep.subr.mxu0 0.0
    %1136 = vmatpush2.msra.mxu0 0.0
    %1137 = vmatprep.subr.mxu0 0.0
    %1138 = vmatpush2.msra.mxu0 0.0
    %1139 = vmatprep.subr.mxu0 0.0
    %1140 = vmatpush2.msra.mxu0 0.0
    %1141 = vmatprep.subr.mxu0 0.0
    %1142 = vmatpush2.msra.mxu0 0.0
    %1143 = vmatprep.subr.mxu0 0.0
    %1144 = vmatpush2.msra.mxu0 0.0
    %1145 = vmatprep.subr.mxu0 0.0
    %1146 = vmatpush2.msra.mxu0 0.0
    %1147 = vmatprep.subr.mxu0 0.0
    %1148 = vmatpush2.msra.mxu0 0.0
    %1149 = vmatprep.subr.mxu0 0.0
    %1150 = vmatpush2.msra.mxu0 0.0
    %1151 = vmatprep.subr.mxu0 0.0
    %1152 = vmatpush2.msra.mxu0 0.0
    %1153 = vmatprep.subr.mxu0 0.0
    %1154 = vmatpush2.msra.mxu0 0.0
    %1155 = vmatprep.subr.mxu0 0.0
    %1156 = vmatpush2.msra.mxu0 0.0
    %1157 = vmatprep.subr.mxu0 0.0
    %1158 = vmatpush2.msra.mxu0 0.0
    %1159 = vmatprep.mubr.f32.mxu0 0.0
    %1160 = vmatmul.mubr.f32.gmra.mxu0 %v1093
    %v1161 = vpop.f32.mrf.mxu0
    %v1162 = vadd.f32 0.0, %v1161
    %v1163 = vpop.f32.mrf.mxu0
    %1164 = vdwg.mxu0
    %1165 = vrot.lane.b32.xlu0 %v359, 64
    %v1166 = vpop.permute.xlu0 %1165
    %v1169 = vsel %vm394, %v1082, 0
    %1171 = vmatprep.subr.mxu0 0.0
    %1172 = vmatpush1.msra.mxu0 0.0
    %1173 = vmatprep.subr.mxu0 0.0
    %1174 = vmatpush1.msra.mxu0 0.0
    %1175 = vmatprep.subr.mxu0 0.0
    %1176 = vmatpush1.msra.mxu0 0.0
    %1177 = vmatprep.subr.mxu0 0.0
    %1178 = vmatpush1.msra.mxu0 0.0
    %1179 = vmatprep.subr.mxu0 0.0
    %1180 = vmatpush1.msra.mxu0 0.0
    %1181 = vmatprep.subr.mxu0 0.0
    %1182 = vmatpush1.msra.mxu0 0.0
    %1183 = vmatprep.subr.mxu0 0.0
    %1184 = vmatpush1.msra.mxu0 0.0
    %1185 = vmatprep.subr.mxu0 0.0
    %1186 = vmatpush1.msra.mxu0 0.0
    %1187 = vmatprep.subr.mxu0 0.0
    %1188 = vmatpush1.msra.mxu0 0.0
    %1189 = vmatprep.subr.mxu0 0.0
    %1190 = vmatpush1.msra.mxu0 0.0
    %1191 = vmatprep.subr.mxu0 0.0
    %1192 = vmatpush1.msra.mxu0 0.0
    %1193 = vmatprep.subr.mxu0 0.0
    %1194 = vmatpush1.msra.mxu0 0.0
    %1195 = vmatprep.subr.mxu0 0.0
    %1196 = vmatpush1.msra.mxu0 0.0
    %1197 = vmatprep.subr.mxu0 0.0
    %1198 = vmatpush1.msra.mxu0 0.0
    %1199 = vmatprep.subr.mxu0 0.0
    %1200 = vmatpush1.msra.mxu0 0.0
    %1201 = vmatprep.subr.mxu0 0.0
    %1202 = vmatpush1.msra.mxu0 %v1166
    %1203 = vmatprep.subr.mxu0 0.0
    %1204 = vmatpush2.msra.mxu0 0.0
    %1205 = vmatprep.subr.mxu0 0.0
    %1206 = vmatpush2.msra.mxu0 0.0
    %1207 = vmatprep.subr.mxu0 0.0
    %1208 = vmatpush2.msra.mxu0 0.0
    %1209 = vmatprep.subr.mxu0 0.0
    %1210 = vmatpush2.msra.mxu0 0.0
    %1211 = vmatprep.subr.mxu0 0.0
    %1212 = vmatpush2.msra.mxu0 0.0
    %1213 = vmatprep.subr.mxu0 0.0
    %1214 = vmatpush2.msra.mxu0 0.0
    %1215 = vmatprep.subr.mxu0 0.0
    %1216 = vmatpush2.msra.mxu0 0.0
    %1217 = vmatprep.subr.mxu0 0.0
    %1218 = vmatpush2.msra.mxu0 0.0
    %1219 = vmatprep.subr.mxu0 0.0
    %1220 = vmatpush2.msra.mxu0 0.0
    %1221 = vmatprep.subr.mxu0 0.0
    %1222 = vmatpush2.msra.mxu0 0.0
    %1223 = vmatprep.subr.mxu0 0.0
    %1224 = vmatpush2.msra.mxu0 0.0
    %1225 = vmatprep.subr.mxu0 0.0
    %1226 = vmatpush2.msra.mxu0 0.0
    %1227 = vmatprep.subr.mxu0 0.0
    %1228 = vmatpush2.msra.mxu0 0.0
    %1229 = vmatprep.subr.mxu0 0.0
    %1230 = vmatpush2.msra.mxu0 0.0
    %1231 = vmatprep.subr.mxu0 0.0
    %1232 = vmatpush2.msra.mxu0 0.0
    %1233 = vmatprep.subr.mxu0 0.0
    %1234 = vmatpush2.msra.mxu0 0.0
    %1235 = vmatprep.mubr.f32.mxu0 0.0
    %1236 = vmatmul.mubr.f32.gmra.mxu0 %v1169
    %v1237 = vpop.f32.mrf.mxu0
    %v1238 = vadd.f32 0.0, %v1237
    %v1239 = vpop.f32.mrf.mxu0
    %1240 = vdwg.mxu0
    %1241 = vrot.lane.b32.xlu0 %v381, 64
    %v1242 = vpop.permute.xlu0 %1241
    %v1245 = vsel %vm394, %v1083, 0
    %1247 = vmatprep.subr.mxu0 0.0
    %1248 = vmatpush1.msra.mxu0 0.0
    %1249 = vmatprep.subr.mxu0 0.0
    %1250 = vmatpush1.msra.mxu0 0.0
    %1251 = vmatprep.subr.mxu0 0.0
    %1252 = vmatpush1.msra.mxu0 0.0
    %1253 = vmatprep.subr.mxu0 0.0
    %1254 = vmatpush1.msra.mxu0 0.0
    %1255 = vmatprep.subr.mxu0 0.0
    %1256 = vmatpush1.msra.mxu0 0.0
    %1257 = vmatprep.subr.mxu0 0.0
    %1258 = vmatpush1.msra.mxu0 0.0
    %1259 = vmatprep.subr.mxu0 0.0
    %1260 = vmatpush1.msra.mxu0 0.0
    %1261 = vmatprep.subr.mxu0 0.0
    %1262 = vmatpush1.msra.mxu0 0.0
    %1263 = vmatprep.subr.mxu0 0.0
    %1264 = vmatpush1.msra.mxu0 0.0
    %1265 = vmatprep.subr.mxu0 0.0
    %1266 = vmatpush1.msra.mxu0 0.0
    %1267 = vmatprep.subr.mxu0 0.0
    %1268 = vmatpush1.msra.mxu0 0.0
    %1269 = vmatprep.subr.mxu0 0.0
    %1270 = vmatpush1.msra.mxu0 0.0
    %1271 = vmatprep.subr.mxu0 0.0
    %1272 = vmatpush1.msra.mxu0 0.0
    %1273 = vmatprep.subr.mxu0 0.0
    %1274 = vmatpush1.msra.mxu0 0.0
    %1275 = vmatprep.subr.mxu0 0.0
    %1276 = vmatpush1.msra.mxu0 0.0
    %1277 = vmatprep.subr.mxu0 0.0
    %1278 = vmatpush1.msra.mxu0 %v1242
    %1279 = vmatprep.subr.mxu0 0.0
    %1280 = vmatpush2.msra.mxu0 0.0
    %1281 = vmatprep.subr.mxu0 0.0
    %1282 = vmatpush2.msra.mxu0 0.0
    %1283 = vmatprep.subr.mxu0 0.0
    %1284 = vmatpush2.msra.mxu0 0.0
    %1285 = vmatprep.subr.mxu0 0.0
    %1286 = vmatpush2.msra.mxu0 0.0
    %1287 = vmatprep.subr.mxu0 0.0
    %1288 = vmatpush2.msra.mxu0 0.0
    %1289 = vmatprep.subr.mxu0 0.0
    %1290 = vmatpush2.msra.mxu0 0.0
    %1291 = vmatprep.subr.mxu0 0.0
    %1292 = vmatpush2.msra.mxu0 0.0
    %1293 = vmatprep.subr.mxu0 0.0
    %1294 = vmatpush2.msra.mxu0 0.0
    %1295 = vmatprep.subr.mxu0 0.0
    %1296 = vmatpush2.msra.mxu0 0.0
    %1297 = vmatprep.subr.mxu0 0.0
    %1298 = vmatpush2.msra.mxu0 0.0
    %1299 = vmatprep.subr.mxu0 0.0
    %1300 = vmatpush2.msra.mxu0 0.0
    %1301 = vmatprep.subr.mxu0 0.0
    %1302 = vmatpush2.msra.mxu0 0.0
    %1303 = vmatprep.subr.mxu0 0.0
    %1304 = vmatpush2.msra.mxu0 0.0
    %1305 = vmatprep.subr.mxu0 0.0
    %1306 = vmatpush2.msra.mxu0 0.0
    %1307 = vmatprep.subr.mxu0 0.0
    %1308 = vmatpush2.msra.mxu0 0.0
    %1309 = vmatprep.subr.mxu0 0.0
    %1310 = vmatpush2.msra.mxu0 0.0
    %1311 = vmatprep.mubr.f32.mxu0 0.0
    %1312 = vmatmul.mubr.f32.gmra.mxu0 %v1245
    %v1313 = vpop.f32.mrf.mxu0
    %v1314 = vadd.f32 0.0, %v1313
    %v1315 = vpop.f32.mrf.mxu0
    %1316 = vdwg.mxu0
    %1317 = vrot.lane.b32.xlu0 %v383, 64
    %v1318 = vpop.permute.xlu0 %1317
    %v1321 = vsel %vm394, %v1084, 0
    %1323 = vmatprep.subr.mxu0 0.0
    %1324 = vmatpush1.msra.mxu0 0.0
    %1325 = vmatprep.subr.mxu0 0.0
    %1326 = vmatpush1.msra.mxu0 0.0
    %1327 = vmatprep.subr.mxu0 0.0
    %1328 = vmatpush1.msra.mxu0 0.0
    %1329 = vmatprep.subr.mxu0 0.0
    %1330 = vmatpush1.msra.mxu0 0.0
    %1331 = vmatprep.subr.mxu0 0.0
    %1332 = vmatpush1.msra.mxu0 0.0
    %1333 = vmatprep.subr.mxu0 0.0
    %1334 = vmatpush1.msra.mxu0 0.0
    %1335 = vmatprep.subr.mxu0 0.0
    %1336 = vmatpush1.msra.mxu0 0.0
    %1337 = vmatprep.subr.mxu0 0.0
    %1338 = vmatpush1.msra.mxu0 0.0
    %1339 = vmatprep.subr.mxu0 0.0
    %1340 = vmatpush1.msra.mxu0 0.0
    %1341 = vmatprep.subr.mxu0 0.0
    %1342 = vmatpush1.msra.mxu0 0.0
    %1343 = vmatprep.subr.mxu0 0.0
    %1344 = vmatpush1.msra.mxu0 0.0
    %1345 = vmatprep.subr.mxu0 0.0
    %1346 = vmatpush1.msra.mxu0 0.0
    %1347 = vmatprep.subr.mxu0 0.0
    %1348 = vmatpush1.msra.mxu0 0.0
    %1349 = vmatprep.subr.mxu0 0.0
    %1350 = vmatpush1.msra.mxu0 0.0
    %1351 = vmatprep.subr.mxu0 0.0
    %1352 = vmatpush1.msra.mxu0 0.0
    %1353 = vmatprep.subr.mxu0 0.0
    %1354 = vmatpush1.msra.mxu0 %v1318
    %1355 = vmatprep.subr.mxu0 0.0
    %1356 = vmatpush2.msra.mxu0 0.0
    %1357 = vmatprep.subr.mxu0 0.0
    %1358 = vmatpush2.msra.mxu0 0.0
    %1359 = vmatprep.subr.mxu0 0.0
    %1360 = vmatpush2.msra.mxu0 0.0
    %1361 = vmatprep.subr.mxu0 0.0
    %1362 = vmatpush2.msra.mxu0 0.0
    %1363 = vmatprep.subr.mxu0 0.0
    %1364 = vmatpush2.msra.mxu0 0.0
    %1365 = vmatprep.subr.mxu0 0.0
    %1366 = vmatpush2.msra.mxu0 0.0
    %1367 = vmatprep.subr.mxu0 0.0
    %1368 = vmatpush2.msra.mxu0 0.0
    %1369 = vmatprep.subr.mxu0 0.0
    %1370 = vmatpush2.msra.mxu0 0.0
    %1371 = vmatprep.subr.mxu0 0.0
    %1372 = vmatpush2.msra.mxu0 0.0
    %1373 = vmatprep.subr.mxu0 0.0
    %1374 = vmatpush2.msra.mxu0 0.0
    %1375 = vmatprep.subr.mxu0 0.0
    %1376 = vmatpush2.msra.mxu0 0.0
    %1377 = vmatprep.subr.mxu0 0.0
    %1378 = vmatpush2.msra.mxu0 0.0
    %1379 = vmatprep.subr.mxu0 0.0
    %1380 = vmatpush2.msra.mxu0 0.0
    %1381 = vmatprep.subr.mxu0 0.0
    %1382 = vmatpush2.msra.mxu0 0.0
    %1383 = vmatprep.subr.mxu0 0.0
    %1384 = vmatpush2.msra.mxu0 0.0
    %1385 = vmatprep.subr.mxu0 0.0
    %1386 = vmatpush2.msra.mxu0 0.0
    %1387 = vmatprep.mubr.f32.mxu0 0.0
    %1388 = vmatmul.mubr.f32.gmra.mxu0 %v1321
    %v1389 = vpop.f32.mrf.mxu0
    %v1390 = vadd.f32 0.0, %v1389
    %v1391 = vpop.f32.mrf.mxu0
    %1392 = vdwg.mxu0
    %1393 = vrot.lane.b32.xlu0 %v385, 64
    %v1394 = vpop.permute.xlu0 %1393
    %v1397 = vsel %vm394, %v1085, 0
    %1399 = vmatprep.subr.mxu0 0.0
    %1400 = vmatpush1.msra.mxu0 0.0
    %1401 = vmatprep.subr.mxu0 0.0
    %1402 = vmatpush1.msra.mxu0 0.0
    %1403 = vmatprep.subr.mxu0 0.0
    %1404 = vmatpush1.msra.mxu0 0.0
    %1405 = vmatprep.subr.mxu0 0.0
    %1406 = vmatpush1.msra.mxu0 0.0
    %1407 = vmatprep.subr.mxu0 0.0
    %1408 = vmatpush1.msra.mxu0 0.0
    %1409 = vmatprep.subr.mxu0 0.0
    %1410 = vmatpush1.msra.mxu0 0.0
    %1411 = vmatprep.subr.mxu0 0.0
    %1412 = vmatpush1.msra.mxu0 0.0
    %1413 = vmatprep.subr.mxu0 0.0
    %1414 = vmatpush1.msra.mxu0 0.0
    %1415 = vmatprep.subr.mxu0 0.0
    %1416 = vmatpush1.msra.mxu0 0.0
    %1417 = vmatprep.subr.mxu0 0.0
    %1418 = vmatpush1.msra.mxu0 0.0
    %1419 = vmatprep.subr.mxu0 0.0
    %1420 = vmatpush1.msra.mxu0 0.0
    %1421 = vmatprep.subr.mxu0 0.0
    %1422 = vmatpush1.msra.mxu0 0.0
    %1423 = vmatprep.subr.mxu0 0.0
    %1424 = vmatpush1.msra.mxu0 0.0
    %1425 = vmatprep.subr.mxu0 0.0
    %1426 = vmatpush1.msra.mxu0 0.0
    %1427 = vmatprep.subr.mxu0 0.0
    %1428 = vmatpush1.msra.mxu0 0.0
    %1429 = vmatprep.subr.mxu0 0.0
    %1430 = vmatpush1.msra.mxu0 %v1394
    %1431 = vmatprep.subr.mxu0 0.0
    %1432 = vmatpush2.msra.mxu0 0.0
    %1433 = vmatprep.subr.mxu0 0.0
    %1434 = vmatpush2.msra.mxu0 0.0
    %1435 = vmatprep.subr.mxu0 0.0
    %1436 = vmatpush2.msra.mxu0 0.0
    %1437 = vmatprep.subr.mxu0 0.0
    %1438 = vmatpush2.msra.mxu0 0.0
    %1439 = vmatprep.subr.mxu0 0.0
    %1440 = vmatpush2.msra.mxu0 0.0
    %1441 = vmatprep.subr.mxu0 0.0
    %1442 = vmatpush2.msra.mxu0 0.0
    %1443 = vmatprep.subr.mxu0 0.0
    %1444 = vmatpush2.msra.mxu0 0.0
    %1445 = vmatprep.subr.mxu0 0.0
    %1446 = vmatpush2.msra.mxu0 0.0
    %1447 = vmatprep.subr.mxu0 0.0
    %1448 = vmatpush2.msra.mxu0 0.0
    %1449 = vmatprep.subr.mxu0 0.0
    %1450 = vmatpush2.msra.mxu0 0.0
    %1451 = vmatprep.subr.mxu0 0.0
    %1452 = vmatpush2.msra.mxu0 0.0
    %1453 = vmatprep.subr.mxu0 0.0
    %1454 = vmatpush2.msra.mxu0 0.0
    %1455 = vmatprep.subr.mxu0 0.0
    %1456 = vmatpush2.msra.mxu0 0.0
    %1457 = vmatprep.subr.mxu0 0.0
    %1458 = vmatpush2.msra.mxu0 0.0
    %1459 = vmatprep.subr.mxu0 0.0
    %1460 = vmatpush2.msra.mxu0 0.0
    %1461 = vmatprep.subr.mxu0 0.0
    %1462 = vmatpush2.msra.mxu0 0.0
    %1463 = vmatprep.mubr.f32.mxu0 0.0
    %1464 = vmatmul.mubr.f32.gmra.mxu0 %v1397
    %v1465 = vpop.f32.mrf.mxu0
    %v1466 = vadd.f32 0.0, %v1465
    %v1467 = vpop.f32.mrf.mxu0
    %1468 = vdwg.mxu0
    %1469 = vrot.lane.b32.xlu0 %v387, 64
    %v1470 = vpop.permute.xlu0 %1469
    %v1473 = vsel %vm394, %v1086, 0
    %1475 = vmatprep.subr.mxu0 0.0
    %1476 = vmatpush1.msra.mxu0 0.0
    %1477 = vmatprep.subr.mxu0 0.0
    %1478 = vmatpush1.msra.mxu0 0.0
    %1479 = vmatprep.subr.mxu0 0.0
    %1480 = vmatpush1.msra.mxu0 0.0
    %1481 = vmatprep.subr.mxu0 0.0
    %1482 = vmatpush1.msra.mxu0 0.0
    %1483 = vmatprep.subr.mxu0 0.0
    %1484 = vmatpush1.msra.mxu0 0.0
    %1485 = vmatprep.subr.mxu0 0.0
    %1486 = vmatpush1.msra.mxu0 0.0
    %1487 = vmatprep.subr.mxu0 0.0
    %1488 = vmatpush1.msra.mxu0 0.0
    %1489 = vmatprep.subr.mxu0 0.0
    %1490 = vmatpush1.msra.mxu0 0.0
    %1491 = vmatprep.subr.mxu0 0.0
    %1492 = vmatpush1.msra.mxu0 0.0
    %1493 = vmatprep.subr.mxu0 0.0
    %1494 = vmatpush1.msra.mxu0 0.0
    %1495 = vmatprep.subr.mxu0 0.0
    %1496 = vmatpush1.msra.mxu0 0.0
    %1497 = vmatprep.subr.mxu0 0.0
    %1498 = vmatpush1.msra.mxu0 0.0
    %1499 = vmatprep.subr.mxu0 0.0
    %1500 = vmatpush1.msra.mxu0 0.0
    %1501 = vmatprep.subr.mxu0 0.0
    %1502 = vmatpush1.msra.mxu0 0.0
    %1503 = vmatprep.subr.mxu0 0.0
    %1504 = vmatpush1.msra.mxu0 0.0
    %1505 = vmatprep.subr.mxu0 0.0
    %1506 = vmatpush1.msra.mxu0 %v1470
    %1507 = vmatprep.subr.mxu0 0.0
    %1508 = vmatpush2.msra.mxu0 0.0
    %1509 = vmatprep.subr.mxu0 0.0
    %1510 = vmatpush2.msra.mxu0 0.0
    %1511 = vmatprep.subr.mxu0 0.0
    %1512 = vmatpush2.msra.mxu0 0.0
    %1513 = vmatprep.subr.mxu0 0.0
    %1514 = vmatpush2.msra.mxu0 0.0
    %1515 = vmatprep.subr.mxu0 0.0
    %1516 = vmatpush2.msra.mxu0 0.0
    %1517 = vmatprep.subr.mxu0 0.0
    %1518 = vmatpush2.msra.mxu0 0.0
    %1519 = vmatprep.subr.mxu0 0.0
    %1520 = vmatpush2.msra.mxu0 0.0
    %1521 = vmatprep.subr.mxu0 0.0
    %1522 = vmatpush2.msra.mxu0 0.0
    %1523 = vmatprep.subr.mxu0 0.0
    %1524 = vmatpush2.msra.mxu0 0.0
    %1525 = vmatprep.subr.mxu0 0.0
    %1526 = vmatpush2.msra.mxu0 0.0
    %1527 = vmatprep.subr.mxu0 0.0
    %1528 = vmatpush2.msra.mxu0 0.0
    %1529 = vmatprep.subr.mxu0 0.0
    %1530 = vmatpush2.msra.mxu0 0.0
    %1531 = vmatprep.subr.mxu0 0.0
    %1532 = vmatpush2.msra.mxu0 0.0
    %1533 = vmatprep.subr.mxu0 0.0
    %1534 = vmatpush2.msra.mxu0 0.0
    %1535 = vmatprep.subr.mxu0 0.0
    %1536 = vmatpush2.msra.mxu0 0.0
    %1537 = vmatprep.subr.mxu0 0.0
    %1538 = vmatpush2.msra.mxu0 0.0
    %1539 = vmatprep.mubr.f32.mxu0 0.0
    %1540 = vmatmul.mubr.f32.gmra.mxu0 %v1473
    %v1541 = vpop.f32.mrf.mxu0
    %v1542 = vadd.f32 0.0, %v1541
    %v1543 = vpop.f32.mrf.mxu0
    %1544 = vdwg.mxu0
    %1545 = vrot.lane.b32.xlu0 %v389, 64
    %v1546 = vpop.permute.xlu0 %1545
    %v1549 = vsel %vm394, %v1087, 0
    %1551 = vmatprep.subr.mxu0 0.0
    %1552 = vmatpush1.msra.mxu0 0.0
    %1553 = vmatprep.subr.mxu0 0.0
    %1554 = vmatpush1.msra.mxu0 0.0
    %1555 = vmatprep.subr.mxu0 0.0
    %1556 = vmatpush1.msra.mxu0 0.0
    %1557 = vmatprep.subr.mxu0 0.0
    %1558 = vmatpush1.msra.mxu0 0.0
    %1559 = vmatprep.subr.mxu0 0.0
    %1560 = vmatpush1.msra.mxu0 0.0
    %1561 = vmatprep.subr.mxu0 0.0
    %1562 = vmatpush1.msra.mxu0 0.0
    %1563 = vmatprep.subr.mxu0 0.0
    %1564 = vmatpush1.msra.mxu0 0.0
    %1565 = vmatprep.subr.mxu0 0.0
    %1566 = vmatpush1.msra.mxu0 0.0
    %1567 = vmatprep.subr.mxu0 0.0
    %1568 = vmatpush1.msra.mxu0 0.0
    %1569 = vmatprep.subr.mxu0 0.0
    %1570 = vmatpush1.msra.mxu0 0.0
    %1571 = vmatprep.subr.mxu0 0.0
    %1572 = vmatpush1.msra.mxu0 0.0
    %1573 = vmatprep.subr.mxu0 0.0
    %1574 = vmatpush1.msra.mxu0 0.0
    %1575 = vmatprep.subr.mxu0 0.0
    %1576 = vmatpush1.msra.mxu0 0.0
    %1577 = vmatprep.subr.mxu0 0.0
    %1578 = vmatpush1.msra.mxu0 0.0
    %1579 = vmatprep.subr.mxu0 0.0
    %1580 = vmatpush1.msra.mxu0 0.0
    %1581 = vmatprep.subr.mxu0 0.0
    %1582 = vmatpush1.msra.mxu0 %v1546
    %1583 = vmatprep.subr.mxu0 0.0
    %1584 = vmatpush2.msra.mxu0 0.0
    %1585 = vmatprep.subr.mxu0 0.0
    %1586 = vmatpush2.msra.mxu0 0.0
    %1587 = vmatprep.subr.mxu0 0.0
    %1588 = vmatpush2.msra.mxu0 0.0
    %1589 = vmatprep.subr.mxu0 0.0
    %1590 = vmatpush2.msra.mxu0 0.0
    %1591 = vmatprep.subr.mxu0 0.0
    %1592 = vmatpush2.msra.mxu0 0.0
    %1593 = vmatprep.subr.mxu0 0.0
    %1594 = vmatpush2.msra.mxu0 0.0
    %1595 = vmatprep.subr.mxu0 0.0
    %1596 = vmatpush2.msra.mxu0 0.0
    %1597 = vmatprep.subr.mxu0 0.0
    %1598 = vmatpush2.msra.mxu0 0.0
    %1599 = vmatprep.subr.mxu0 0.0
    %1600 = vmatpush2.msra.mxu0 0.0
    %1601 = vmatprep.subr.mxu0 0.0
    %1602 = vmatpush2.msra.mxu0 0.0
    %1603 = vmatprep.subr.mxu0 0.0
    %1604 = vmatpush2.msra.mxu0 0.0
    %1605 = vmatprep.subr.mxu0 0.0
    %1606 = vmatpush2.msra.mxu0 0.0
    %1607 = vmatprep.subr.mxu0 0.0
    %1608 = vmatpush2.msra.mxu0 0.0
    %1609 = vmatprep.subr.mxu0 0.0
    %1610 = vmatpush2.msra.mxu0 0.0
    %1611 = vmatprep.subr.mxu0 0.0
    %1612 = vmatpush2.msra.mxu0 0.0
    %1613 = vmatprep.subr.mxu0 0.0
    %1614 = vmatpush2.msra.mxu0 0.0
    %1615 = vmatprep.mubr.f32.mxu0 0.0
    %1616 = vmatmul.mubr.f32.gmra.mxu0 %v1549
    %v1617 = vpop.f32.mrf.mxu0
    %v1618 = vadd.f32 0.0, %v1617
    %v1619 = vpop.f32.mrf.mxu0
    %1620 = vdwg.mxu0
    %1621 = vrot.lane.b32.xlu0 %v391, 64
    %v1622 = vpop.permute.xlu0 %1621
    %v1625 = vsel %vm394, %v1088, 0
    %1627 = vmatprep.subr.mxu0 0.0
    %1628 = vmatpush1.msra.mxu0 0.0
    %1629 = vmatprep.subr.mxu0 0.0
    %1630 = vmatpush1.msra.mxu0 0.0
    %1631 = vmatprep.subr.mxu0 0.0
    %1632 = vmatpush1.msra.mxu0 0.0
    %1633 = vmatprep.subr.mxu0 0.0
    %1634 = vmatpush1.msra.mxu0 0.0
    %1635 = vmatprep.subr.mxu0 0.0
    %1636 = vmatpush1.msra.mxu0 0.0
    %1637 = vmatprep.subr.mxu0 0.0
    %1638 = vmatpush1.msra.mxu0 0.0
    %1639 = vmatprep.subr.mxu0 0.0
    %1640 = vmatpush1.msra.mxu0 0.0
    %1641 = vmatprep.subr.mxu0 0.0
    %1642 = vmatpush1.msra.mxu0 0.0
    %1643 = vmatprep.subr.mxu0 0.0
    %1644 = vmatpush1.msra.mxu0 0.0
    %1645 = vmatprep.subr.mxu0 0.0
    %1646 = vmatpush1.msra.mxu0 0.0
    %1647 = vmatprep.subr.mxu0 0.0
    %1648 = vmatpush1.msra.mxu0 0.0
    %1649 = vmatprep.subr.mxu0 0.0
    %1650 = vmatpush1.msra.mxu0 0.0
    %1651 = vmatprep.subr.mxu0 0.0
    %1652 = vmatpush1.msra.mxu0 0.0
    %1653 = vmatprep.subr.mxu0 0.0
    %1654 = vmatpush1.msra.mxu0 0.0
    %1655 = vmatprep.subr.mxu0 0.0
    %1656 = vmatpush1.msra.mxu0 0.0
    %1657 = vmatprep.subr.mxu0 0.0
    %1658 = vmatpush1.msra.mxu0 %v1622
    %1659 = vmatprep.subr.mxu0 0.0
    %1660 = vmatpush2.msra.mxu0 0.0
    %1661 = vmatprep.subr.mxu0 0.0
    %1662 = vmatpush2.msra.mxu0 0.0
    %1663 = vmatprep.subr.mxu0 0.0
    %1664 = vmatpush2.msra.mxu0 0.0
    %1665 = vmatprep.subr.mxu0 0.0
    %1666 = vmatpush2.msra.mxu0 0.0
    %1667 = vmatprep.subr.mxu0 0.0
    %1668 = vmatpush2.msra.mxu0 0.0
    %1669 = vmatprep.subr.mxu0 0.0
    %1670 = vmatpush2.msra.mxu0 0.0
    %1671 = vmatprep.subr.mxu0 0.0
    %1672 = vmatpush2.msra.mxu0 0.0
    %1673 = vmatprep.subr.mxu0 0.0
    %1674 = vmatpush2.msra.mxu0 0.0
    %1675 = vmatprep.subr.mxu0 0.0
    %1676 = vmatpush2.msra.mxu0 0.0
    %1677 = vmatprep.subr.mxu0 0.0
    %1678 = vmatpush2.msra.mxu0 0.0
    %1679 = vmatprep.subr.mxu0 0.0
    %1680 = vmatpush2.msra.mxu0 0.0
    %1681 = vmatprep.subr.mxu0 0.0
    %1682 = vmatpush2.msra.mxu0 0.0
    %1683 = vmatprep.subr.mxu0 0.0
    %1684 = vmatpush2.msra.mxu0 0.0
    %1685 = vmatprep.subr.mxu0 0.0
    %1686 = vmatpush2.msra.mxu0 0.0
    %1687 = vmatprep.subr.mxu0 0.0
    %1688 = vmatpush2.msra.mxu0 0.0
    %1689 = vmatprep.subr.mxu0 0.0
    %1690 = vmatpush2.msra.mxu0 0.0
    %1691 = vmatprep.mubr.f32.mxu0 0.0
    %1692 = vmatmul.mubr.f32.gmra.mxu0 %v1625
    %v1693 = vpop.f32.mrf.mxu0
    %v1694 = vadd.f32 0.0, %v1693
    %v1695 = vpop.f32.mrf.mxu0
    %1696 = vdwg.mxu0
    %1697 = vst.msk [vmem:[#allocation2] sm:$0xff] %vm394, %v1162
    %1698 = vst.msk [vmem:[#allocation2 + $0x8] sm:$0xff] %vm394, %v1238
    %1701 = vrot.lane.b32.xlu0 %v1314, 8
    %v1702 = vpop.permute.xlu0 %1701
    %1703 = vrot.lane.b32.xlu0 %v1390, 8
    %v1704 = vpop.permute.xlu0 %1703
    %vm1707 = vcmask 130112
    %1708 = vst.msk [vmem:[#allocation2] sm:$0xff] %vm1707, %v1702
    %1709 = vst.msk [vmem:[#allocation2 + $0x8] sm:$0xff] %vm1707, %v1704
    %1712 = vrot.lane.b32.xlu0 %v1466, 16
    %v1713 = vpop.permute.xlu0 %1712
    %1714 = vrot.lane.b32.xlu0 %v1542, 16
    %v1715 = vpop.permute.xlu0 %1714
    %vm1718 = vcmask 195712
    %1719 = vst.msk [vmem:[#allocation2] sm:$0xff] %vm1718, %v1713
    %1720 = vst.msk [vmem:[#allocation2 + $0x8] sm:$0xff] %vm1718, %v1715
    %1723 = vrot.lane.b32.xlu0 %v1618, 24
    %v1724 = vpop.permute.xlu0 %1723
    %1725 = vrot.lane.b32.xlu0 %v1694, 24
    %v1726 = vpop.permute.xlu0 %1725
    %vm1729 = vcmask 261312
    %1730 = vst.msk [vmem:[#allocation2] sm:$0xff] %vm1729, %v1724
    %1731 = vst.msk [vmem:[#allocation2 + $0x8] sm:$0xff] %vm1729, %v1726
    %v1732 = vld [vmem:[#allocation2] sm:$0xff]
    %v1733 = vld [vmem:[#allocation2 + $0x8] sm:$0xff]
    %v1734 = vld [vmem:[%s7] sm:$0xf]
    %v1735 = vld [vmem:[%s7 + $0x4] sm:$0xf]
    %v1736 = vld [vmem:[%s7 + $0x8] sm:$0xf]
    %v1737 = vld [vmem:[%s7 + $0xc] sm:$0xf]
    %v1738 = vunpack.c.l.bf16 %v1734
    %v1739 = vunpack.c.l.bf16 %v1735
    %v1740 = vunpack.c.l.bf16 %v1736
    %v1741 = vunpack.c.l.bf16 %v1737
    %v1742 = vld [vmem:[%s8] sm:$0x1]
    %v1744 = vlaneseq
    %v1745 = vshrl.u32 %v1744, 7
    %v1746 = vsub.s32 0, %v1745
    %v1747 = vrot.slane %v1742, %v1746
    %v1750 = vsel %vm229, %v1732, 0
    %v1753 = vsel %vm229, %v1733, 0
    %1755 = vmatprep.subr.mxu0 0.0
    %1756 = vmatpush1.msra.mxu0 0.0
    %1757 = vmatprep.subr.mxu0 0.0
    %1758 = vmatpush1.msra.mxu0 0.0
    %1759 = vmatprep.subr.mxu0 0.0
    %1760 = vmatpush1.msra.mxu0 0.0
    %1761 = vmatprep.subr.mxu0 0.0
    %1762 = vmatpush1.msra.mxu0 0.0
    %1763 = vmatprep.subr.mxu0 0.0
    %1764 = vmatpush1.msra.mxu0 0.0
    %1765 = vmatprep.subr.mxu0 0.0
    %1766 = vmatpush1.msra.mxu0 0.0
    %1767 = vmatprep.subr.mxu0 0.0
    %1768 = vmatpush1.msra.mxu0 0.0
    %1769 = vmatprep.subr.mxu0 0.0
    %1770 = vmatpush1.msra.mxu0 0.0
    %1771 = vmatprep.subr.mxu0 0.0
    %1772 = vmatpush1.msra.mxu0 0.0
    %1773 = vmatprep.subr.mxu0 0.0
    %1774 = vmatpush1.msra.mxu0 0.0
    %1775 = vmatprep.subr.mxu0 0.0
    %1776 = vmatpush1.msra.mxu0 0.0
    %1777 = vmatprep.subr.mxu0 0.0
    %1778 = vmatpush1.msra.mxu0 0.0
    %1779 = vmatprep.subr.mxu0 0.0
    %1780 = vmatpush1.msra.mxu0 %v1741
    %1781 = vmatprep.subr.mxu0 0.0
    %1782 = vmatpush1.msra.mxu0 %v1740
    %1783 = vmatprep.subr.mxu0 0.0
    %1784 = vmatpush1.msra.mxu0 %v1739
    %1785 = vmatprep.subr.mxu0 0.0
    %1786 = vmatpush1.msra.mxu0 %v1738
    %1787 = vmatprep.subr.mxu0 0.0
    %1788 = vmatpush2.msra.mxu0 0.0
    %1789 = vmatprep.subr.mxu0 0.0
    %1790 = vmatpush2.msra.mxu0 0.0
    %1791 = vmatprep.subr.mxu0 0.0
    %1792 = vmatpush2.msra.mxu0 0.0
    %1793 = vmatprep.subr.mxu0 0.0
    %1794 = vmatpush2.msra.mxu0 0.0
    %1795 = vmatprep.subr.mxu0 0.0
    %1796 = vmatpush2.msra.mxu0 0.0
    %1797 = vmatprep.subr.mxu0 0.0
    %1798 = vmatpush2.msra.mxu0 0.0
    %1799 = vmatprep.subr.mxu0 0.0
    %1800 = vmatpush2.msra.mxu0 0.0
    %1801 = vmatprep.subr.mxu0 0.0
    %1802 = vmatpush2.msra.mxu0 0.0
    %1803 = vmatprep.subr.mxu0 0.0
    %1804 = vmatpush2.msra.mxu0 0.0
    %1805 = vmatprep.subr.mxu0 0.0
    %1806 = vmatpush2.msra.mxu0 0.0
    %1807 = vmatprep.subr.mxu0 0.0
    %1808 = vmatpush2.msra.mxu0 0.0
    %1809 = vmatprep.subr.mxu0 0.0
    %1810 = vmatpush2.msra.mxu0 0.0
    %1811 = vmatprep.subr.mxu0 0.0
    %1812 = vmatpush2.msra.mxu0 0.0
    %1813 = vmatprep.subr.mxu0 0.0
    %1814 = vmatpush2.msra.mxu0 0.0
    %1815 = vmatprep.subr.mxu0 0.0
    %1816 = vmatpush2.msra.mxu0 0.0
    %1817 = vmatprep.subr.mxu0 0.0
    %1818 = vmatpush2.msra.mxu0 0.0
    %1819 = vmatprep.mubr.f32.mxu0 0.0
    %1820 = vmatmul.mubr.f32.gmra.mxu0 %v1750
    %v1821 = vpop.f32.mrf.mxu0
    %v1822 = vadd.f32 %v1747, %v1821
    %v1823 = vpop.f32.mrf.mxu0
    %1824 = vmatprep.mubr.f32.mxu0 0.0
    %1825 = vmatmul.mubr.f32.gmra.mxu0 %v1753
    %v1826 = vpop.f32.mrf.mxu0
    %v1827 = vadd.f32 %v1747, %v1826
    %v1828 = vpop.f32.mrf.mxu0
    %1829 = vdwg.mxu0
    %v1830 = vadd.f32 %v224, %v1822
    %v1831 = vadd.f32 %v225, %v1827
    %v1832 = vld [vmem:[%s9] sm:$0x1]
    %v1833 = vld [vmem:[%s10] sm:$0x1]
    %v1834 = vsel %vm229, %v1830, 0.0
    %1835 = vadd.xlane.f32.xlu0 %v1834
    %v1836 = vpop.xlane.xlu0 %1835
    %v1837 = vsel %vm229, %v1831, 0.0
    %1838 = vadd.xlane.f32.xlu0 %v1837
    %v1839 = vpop.xlane.xlu0 %1838
    %v1840 = vmul.f32 %v1836, %v236
    %v1841 = vmul.f32 %v1839, %v236
    %v1842 = vsub.f32 %v1830, %v1840
    %v1843 = vsub.f32 %v1831, %v1841
    %v1844 = vmul.f32 %v1842, %v1842
    %v1845 = vmul.f32 %v1843, %v1843
    %v1846 = vsel %vm229, %v1844, 0.0
    %1847 = vadd.xlane.f32.xlu0 %v1846
    %v1848 = vpop.xlane.xlu0 %1847
    %v1849 = vsel %vm229, %v1845, 0.0
    %1850 = vadd.xlane.f32.xlu0 %v1849
    %v1851 = vpop.xlane.xlu0 %1850
    %v1852 = vmul.f32 %v1848, %v236
    %v1853 = vmul.f32 %v1851, %v236
    %v1854 = vadd.f32 %v1852, 1e-05
    %v1855 = vadd.f32 %v1853, 1e-05
    %v1856 = vrsqrt.pop %v1854
    %v1857 = vrsqrt.pop %v1855
    %v1858 = vmul.f32 %v1842, %v1856
    %v1859 = vmul.f32 %v1843, %v1857
    %v1861 = vlaneseq
    %v1862 = vshrl.u32 %v1861, 7
    %v1863 = vsub.s32 0, %v1862
    %v1864 = vrot.slane %v1832, %v1863
    %v1866 = vmul.f32 %v1864, %v1858
    %v1867 = vmul.f32 %v1864, %v1859
    %v1869 = vlaneseq
    %v1870 = vshrl.u32 %v1869, 7
    %v1871 = vsub.s32 0, %v1870
    %v1872 = vrot.slane %v1833, %v1871
    %v1874 = vadd.f32 %v1866, %v1872
    %v1875 = vadd.f32 %v1867, %v1872
    %v1876 = vld [vmem:[%s11] sm:$0xf]
    %v1877 = vld [vmem:[%s11 + $0x4] sm:$0xf]
    %v1878 = vld [vmem:[%s11 + $0x8] sm:$0xf]
    %v1879 = vld [vmem:[%s11 + $0xc] sm:$0xf]
    %v1880 = vunpack.c.l.bf16 %v1876
    %v1881 = vunpack.c.l.bf16 %v1877
    %v1882 = vunpack.c.l.bf16 %v1878
    %v1883 = vunpack.c.l.bf16 %v1879
    %v1884 = vld [vmem:[%s12] sm:$0x1]
    %v1886 = vlaneseq
    %v1887 = vshrl.u32 %v1886, 7
    %v1888 = vsub.s32 0, %v1887
    %v1889 = vrot.slane %v1884, %v1888
    %v1892 = vsel %vm229, %v1874, 0
    %v1895 = vsel %vm229, %v1875, 0
    %1897 = vmatprep.subr.mxu0 0.0
    %1898 = vmatpush1.msra.mxu0 0.0
    %1899 = vmatprep.subr.mxu0 0.0
    %1900 = vmatpush1.msra.mxu0 0.0
    %1901 = vmatprep.subr.mxu0 0.0
    %1902 = vmatpush1.msra.mxu0 0.0
    %1903 = vmatprep.subr.mxu0 0.0
    %1904 = vmatpush1.msra.mxu0 0.0
    %1905 = vmatprep.subr.mxu0 0.0
    %1906 = vmatpush1.msra.mxu0 0.0
    %1907 = vmatprep.subr.mxu0 0.0
    %1908 = vmatpush1.msra.mxu0 0.0
    %1909 = vmatprep.subr.mxu0 0.0
    %1910 = vmatpush1.msra.mxu0 0.0
    %1911 = vmatprep.subr.mxu0 0.0
    %1912 = vmatpush1.msra.mxu0 0.0
    %1913 = vmatprep.subr.mxu0 0.0
    %1914 = vmatpush1.msra.mxu0 0.0
    %1915 = vmatprep.subr.mxu0 0.0
    %1916 = vmatpush1.msra.mxu0 0.0
    %1917 = vmatprep.subr.mxu0 0.0
    %1918 = vmatpush1.msra.mxu0 0.0
    %1919 = vmatprep.subr.mxu0 0.0
    %1920 = vmatpush1.msra.mxu0 0.0
    %1921 = vmatprep.subr.mxu0 0.0
    %1922 = vmatpush1.msra.mxu0 %v1883
    %1923 = vmatprep.subr.mxu0 0.0
    %1924 = vmatpush1.msra.mxu0 %v1882
    %1925 = vmatprep.subr.mxu0 0.0
    %1926 = vmatpush1.msra.mxu0 %v1881
    %1927 = vmatprep.subr.mxu0 0.0
    %1928 = vmatpush1.msra.mxu0 %v1880
    %1929 = vmatprep.subr.mxu0 0.0
    %1930 = vmatpush2.msra.mxu0 0.0
    %1931 = vmatprep.subr.mxu0 0.0
    %1932 = vmatpush2.msra.mxu0 0.0
    %1933 = vmatprep.subr.mxu0 0.0
    %1934 = vmatpush2.msra.mxu0 0.0
    %1935 = vmatprep.subr.mxu0 0.0
    %1936 = vmatpush2.msra.mxu0 0.0
    %1937 = vmatprep.subr.mxu0 0.0
    %1938 = vmatpush2.msra.mxu0 0.0
    %1939 = vmatprep.subr.mxu0 0.0
    %1940 = vmatpush2.msra.mxu0 0.0
    %1941 = vmatprep.subr.mxu0 0.0
    %1942 = vmatpush2.msra.mxu0 0.0
    %1943 = vmatprep.subr.mxu0 0.0
    %1944 = vmatpush2.msra.mxu0 0.0
    %1945 = vmatprep.subr.mxu0 0.0
    %1946 = vmatpush2.msra.mxu0 0.0
    %1947 = vmatprep.subr.mxu0 0.0
    %1948 = vmatpush2.msra.mxu0 0.0
    %1949 = vmatprep.subr.mxu0 0.0
    %1950 = vmatpush2.msra.mxu0 0.0
    %1951 = vmatprep.subr.mxu0 0.0
    %1952 = vmatpush2.msra.mxu0 0.0
    %1953 = vmatprep.subr.mxu0 0.0
    %1954 = vmatpush2.msra.mxu0 0.0
    %1955 = vmatprep.subr.mxu0 0.0
    %1956 = vmatpush2.msra.mxu0 0.0
    %1957 = vmatprep.subr.mxu0 0.0
    %1958 = vmatpush2.msra.mxu0 0.0
    %1959 = vmatprep.subr.mxu0 0.0
    %1960 = vmatpush2.msra.mxu0 0.0
    %1961 = vmatprep.mubr.f32.mxu0 0.0
    %1962 = vmatmul.mubr.f32.gmra.mxu0 %v1892
    %v1963 = vpop.f32.mrf.mxu0
    %v1964 = vadd.f32 %v1889, %v1963
    %v1965 = vpop.f32.mrf.mxu0
    %1966 = vmatprep.mubr.f32.mxu0 0.0
    %1967 = vmatmul.mubr.f32.gmra.mxu0 %v1895
    %v1968 = vpop.f32.mrf.mxu0
    %v1969 = vadd.f32 %v1889, %v1968
    %v1970 = vpop.f32.mrf.mxu0
    %1971 = vdwg.mxu0
    %v1972 = vmul.f32 %v1964, 0.5
    %v1973 = vmul.f32 %v1969, 0.5
    %v1974 = vmul.f32 %v1964, %v1964
    %v1975 = vmul.f32 %v1969, %v1969
    %v1976 = vmul.f32 %v1964, %v1974
    %v1977 = vmul.f32 %v1969, %v1975
    %v1978 = vmul.f32 %v1976, 0.044715
    %v1979 = vmul.f32 %v1977, 0.044715
    %v1980 = vadd.f32 %v1964, %v1978
    %v1981 = vadd.f32 %v1969, %v1979
    %v1982 = vmul.f32 %v1980, 0.7978846
    %v1983 = vmul.f32 %v1981, 0.7978846
    %v1984 = vtanh.pop %v1982
    %v1985 = vtanh.pop %v1983
    %v1986 = vadd.f32 %v1984, 1.0
    %v1987 = vadd.f32 %v1985, 1.0
    %v1988 = vmul.f32 %v1972, %v1986
    %v1989 = vmul.f32 %v1973, %v1987
    %v1990 = vld [vmem:[%s13] sm:$0xf]
    %v1991 = vld [vmem:[%s13 + $0x4] sm:$0xf]
    %v1992 = vld [vmem:[%s13 + $0x8] sm:$0xf]
    %v1993 = vld [vmem:[%s13 + $0xc] sm:$0xf]
    %v1994 = vld [vmem:[%s13 + $0x10] sm:$0xf]
    %v1995 = vld [vmem:[%s13 + $0x14] sm:$0xf]
    %v1996 = vld [vmem:[%s13 + $0x18] sm:$0xf]
    %v1997 = vld [vmem:[%s13 + $0x1c] sm:$0xf]
    %v1998 = vld [vmem:[%s13 + $0x20] sm:$0xf]
    %v1999 = vld [vmem:[%s13 + $0x24] sm:$0xf]
    %v2000 = vld [vmem:[%s13 + $0x28] sm:$0xf]
    %v2001 = vld [vmem:[%s13 + $0x2c] sm:$0xf]
    %v2002 = vld [vmem:[%s13 + $0x30] sm:$0xf]
    %v2003 = vld [vmem:[%s13 + $0x34] sm:$0xf]
    %v2004 = vld [vmem:[%s13 + $0x38] sm:$0xf]
    %v2005 = vld [vmem:[%s13 + $0x3c] sm:$0xf]
    %v2006 = vunpack.c.l.bf16 %v1990
    %v2007 = vunpack.c.l.bf16 %v1991
    %v2008 = vunpack.c.l.bf16 %v1992
    %v2009 = vunpack.c.l.bf16 %v1993
    %v2010 = vunpack.c.l.bf16 %v1994
    %v2011 = vunpack.c.l.bf16 %v1995
    %v2012 = vunpack.c.l.bf16 %v1996
    %v2013 = vunpack.c.l.bf16 %v1997
    %v2014 = vunpack.c.l.bf16 %v1998
    %v2015 = vunpack.c.l.bf16 %v1999
    %v2016 = vunpack.c.l.bf16 %v2000
    %v2017 = vunpack.c.l.bf16 %v2001
    %v2018 = vunpack.c.l.bf16 %v2002
    %v2019 = vunpack.c.l.bf16 %v2003
    %v2020 = vunpack.c.l.bf16 %v2004
    %v2021 = vunpack.c.l.bf16 %v2005
    %v2022 = vld [vmem:[%s14] sm:$0x1]
    %v2024 = vlaneseq
    %v2025 = vshrl.u32 %v2024, 7
    %v2026 = vsub.s32 0, %v2025
    %v2027 = vrot.slane %v2022, %v2026
    %2029 = vmatprep.subr.mxu0 0.0
    %2030 = vmatpush1.msra.mxu0 %v2021
    %2031 = vmatprep.subr.mxu0 0.0
    %2032 = vmatpush1.msra.mxu0 %v2020
    %2033 = vmatprep.subr.mxu0 0.0
    %2034 = vmatpush1.msra.mxu0 %v2019
    %2035 = vmatprep.subr.mxu0 0.0
    %2036 = vmatpush1.msra.mxu0 %v2018
    %2037 = vmatprep.subr.mxu0 0.0
    %2038 = vmatpush1.msra.mxu0 %v2017
    %2039 = vmatprep.subr.mxu0 0.0
    %2040 = vmatpush1.msra.mxu0 %v2016
    %2041 = vmatprep.subr.mxu0 0.0
    %2042 = vmatpush1.msra.mxu0 %v2015
    %2043 = vmatprep.subr.mxu0 0.0
    %2044 = vmatpush1.msra.mxu0 %v2014
    %2045 = vmatprep.subr.mxu0 0.0
    %2046 = vmatpush1.msra.mxu0 %v2013
    %2047 = vmatprep.subr.mxu0 0.0
    %2048 = vmatpush1.msra.mxu0 %v2012
    %2049 = vmatprep.subr.mxu0 0.0
    %2050 = vmatpush1.msra.mxu0 %v2011
    %2051 = vmatprep.subr.mxu0 0.0
    %2052 = vmatpush1.msra.mxu0 %v2010
    %2053 = vmatprep.subr.mxu0 0.0
    %2054 = vmatpush1.msra.mxu0 %v2009
    %2055 = vmatprep.subr.mxu0 0.0
    %2056 = vmatpush1.msra.mxu0 %v2008
    %2057 = vmatprep.subr.mxu0 0.0
    %2058 = vmatpush1.msra.mxu0 %v2007
    %2059 = vmatprep.subr.mxu0 0.0
    %2060 = vmatpush1.msra.mxu0 %v2006
    %2061 = vmatprep.subr.mxu0 0.0
    %2062 = vmatpush2.msra.mxu0 0.0
    %2063 = vmatprep.subr.mxu0 0.0
    %2064 = vmatpush2.msra.mxu0 0.0
    %2065 = vmatprep.subr.mxu0 0.0
    %2066 = vmatpush2.msra.mxu0 0.0
    %2067 = vmatprep.subr.mxu0 0.0
    %2068 = vmatpush2.msra.mxu0 0.0
    %2069 = vmatprep.subr.mxu0 0.0
    %2070 = vmatpush2.msra.mxu0 0.0
    %2071 = vmatprep.subr.mxu0 0.0
    %2072 = vmatpush2.msra.mxu0 0.0
    %2073 = vmatprep.subr.mxu0 0.0
    %2074 = vmatpush2.msra.mxu0 0.0
    %2075 = vmatprep.subr.mxu0 0.0
    %2076 = vmatpush2.msra.mxu0 0.0
    %2077 = vmatprep.subr.mxu0 0.0
    %2078 = vmatpush2.msra.mxu0 0.0
    %2079 = vmatprep.subr.mxu0 0.0
    %2080 = vmatpush2.msra.mxu0 0.0
    %2081 = vmatprep.subr.mxu0 0.0
    %2082 = vmatpush2.msra.mxu0 0.0
    %2083 = vmatprep.subr.mxu0 0.0
    %2084 = vmatpush2.msra.mxu0 0.0
    %2085 = vmatprep.subr.mxu0 0.0
    %2086 = vmatpush2.msra.mxu0 0.0
    %2087 = vmatprep.subr.mxu0 0.0
    %2088 = vmatpush2.msra.mxu0 0.0
    %2089 = vmatprep.subr.mxu0 0.0
    %2090 = vmatpush2.msra.mxu0 0.0
    %2091 = vmatprep.subr.mxu0 0.0
    %2092 = vmatpush2.msra.mxu0 0.0
    %2093 = vmatprep.mubr.f32.mxu0 0.0
    %2094 = vmatmul.mubr.f32.gmra.mxu0 %v1988
    %v2095 = vpop.f32.mrf.mxu0
    %v2096 = vadd.f32 %v2027, %v2095
    %v2097 = vpop.f32.mrf.mxu0
    %2098 = vmatprep.mubr.f32.mxu0 0.0
    %2099 = vmatmul.mubr.f32.gmra.mxu0 %v1989
    %v2100 = vpop.f32.mrf.mxu0
    %v2101 = vadd.f32 %v2027, %v2100
    %v2102 = vpop.f32.mrf.mxu0
    %2103 = vdwg.mxu0
    %v2104 = vadd.f32 %v1830, %v2096
    %v2105 = vadd.f32 %v1831, %v2101
    %s2106 = scalar_lea.vmem %s4, 1
    %v2107 = vld [vmem:[%s2106] sm:$0x1]
    %s2108 = scalar_lea.vmem %s5, 1
    %v2109 = vld [vmem:[%s2108] sm:$0x1]
    %v2110 = vsel %vm229, %v2104, 0.0
    %2111 = vadd.xlane.f32.xlu0 %v2110
    %v2112 = vpop.xlane.xlu0 %2111
    %v2113 = vsel %vm229, %v2105, 0.0
    %2114 = vadd.xlane.f32.xlu0 %v2113
    %v2115 = vpop.xlane.xlu0 %2114
    %v2116 = vmul.f32 %v2112, %v236
    %v2117 = vmul.f32 %v2115, %v236
    %v2118 = vsub.f32 %v2104, %v2116
    %v2119 = vsub.f32 %v2105, %v2117
    %v2120 = vmul.f32 %v2118, %v2118
    %v2121 = vmul.f32 %v2119, %v2119
    %v2122 = vsel %vm229, %v2120, 0.0
    %2123 = vadd.xlane.f32.xlu0 %v2122
    %v2124 = vpop.xlane.xlu0 %2123
    %v2125 = vsel %vm229, %v2121, 0.0
    %2126 = vadd.xlane.f32.xlu0 %v2125
    %v2127 = vpop.xlane.xlu0 %2126
    %v2128 = vmul.f32 %v2124, %v236
    %v2129 = vmul.f32 %v2127, %v236
    %v2130 = vadd.f32 %v2128, 1e-05
    %v2131 = vadd.f32 %v2129, 1e-05
    %v2132 = vrsqrt.pop %v2130
    %v2133 = vrsqrt.pop %v2131
    %v2134 = vmul.f32 %v2118, %v2132
    %v2135 = vmul.f32 %v2119, %v2133
    %v2137 = vlaneseq
    %v2138 = vshrl.u32 %v2137, 7
    %v2139 = vsub.s32 0, %v2138
    %v2140 = vrot.slane %v2107, %v2139
    %v2142 = vmul.f32 %v2140, %v2134
    %v2143 = vmul.f32 %v2140, %v2135
    %v2145 = vlaneseq
    %v2146 = vshrl.u32 %v2145, 7
    %v2147 = vsub.s32 0, %v2146
    %v2148 = vrot.slane %v2109, %v2147
    %v2150 = vadd.f32 %v2142, %v2148
    %v2151 = vadd.f32 %v2143, %v2148
    %s2152 = scalar_lea.vmem %s6, 16
    %v2153 = vld [vmem:[%s2152] sm:$0xf]
    %v2154 = vld [vmem:[%s2152 + $0x4] sm:$0xf]
    %v2155 = vld [vmem:[%s2152 + $0x8] sm:$0xf]
    %v2156 = vld [vmem:[%s2152 + $0xc] sm:$0xf]
    %v2157 = vunpack.c.l.bf16 %v2153
    %v2158 = vunpack.c.l.bf16 %v2154
    %v2159 = vunpack.c.l.bf16 %v2155
    %v2160 = vunpack.c.l.bf16 %v2156
    %v2162 = vsel %vm229, %v2150, 0
    %v2165 = vsel %vm229, %v2151, 0
    %2167 = vmatprep.subr.mxu0 0.0
    %2168 = vmatpush1.msra.mxu0 0.0
    %2169 = vmatprep.subr.mxu0 0.0
    %2170 = vmatpush1.msra.mxu0 0.0
    %2171 = vmatprep.subr.mxu0 0.0
    %2172 = vmatpush1.msra.mxu0 0.0
    %2173 = vmatprep.subr.mxu0 0.0
    %2174 = vmatpush1.msra.mxu0 0.0
    %2175 = vmatprep.subr.mxu0 0.0
    %2176 = vmatpush1.msra.mxu0 0.0
    %2177 = vmatprep.subr.mxu0 0.0
    %2178 = vmatpush1.msra.mxu0 0.0
    %2179 = vmatprep.subr.mxu0 0.0
    %2180 = vmatpush1.msra.mxu0 0.0
    %2181 = vmatprep.subr.mxu0 0.0
    %2182 = vmatpush1.msra.mxu0 0.0
    %2183 = vmatprep.subr.mxu0 0.0
    %2184 = vmatpush1.msra.mxu0 0.0
    %2185 = vmatprep.subr.mxu0 0.0
    %2186 = vmatpush1.msra.mxu0 0.0
    %2187 = vmatprep.subr.mxu0 0.0
    %2188 = vmatpush1.msra.mxu0 0.0
    %2189 = vmatprep.subr.mxu0 0.0
    %2190 = vmatpush1.msra.mxu0 0.0
    %2191 = vmatprep.subr.mxu0 0.0
    %2192 = vmatpush1.msra.mxu0 %v2160
    %2193 = vmatprep.subr.mxu0 0.0
    %2194 = vmatpush1.msra.mxu0 %v2159
    %2195 = vmatprep.subr.mxu0 0.0
    %2196 = vmatpush1.msra.mxu0 %v2158
    %2197 = vmatprep.subr.mxu0 0.0
    %2198 = vmatpush1.msra.mxu0 %v2157
    %2199 = vmatprep.subr.mxu0 0.0
    %2200 = vmatpush2.msra.mxu0 0.0
    %2201 = vmatprep.subr.mxu0 0.0
    %2202 = vmatpush2.msra.mxu0 0.0
    %2203 = vmatprep.subr.mxu0 0.0
    %2204 = vmatpush2.msra.mxu0 0.0
    %2205 = vmatprep.subr.mxu0 0.0
    %2206 = vmatpush2.msra.mxu0 0.0
    %2207 = vmatprep.subr.mxu0 0.0
    %2208 = vmatpush2.msra.mxu0 0.0
    %2209 = vmatprep.subr.mxu0 0.0
    %2210 = vmatpush2.msra.mxu0 0.0
    %2211 = vmatprep.subr.mxu0 0.0
    %2212 = vmatpush2.msra.mxu0 0.0
    %2213 = vmatprep.subr.mxu0 0.0
    %2214 = vmatpush2.msra.mxu0 0.0
    %2215 = vmatprep.subr.mxu0 0.0
    %2216 = vmatpush2.msra.mxu0 0.0
    %2217 = vmatprep.subr.mxu0 0.0
    %2218 = vmatpush2.msra.mxu0 0.0
    %2219 = vmatprep.subr.mxu0 0.0
    %2220 = vmatpush2.msra.mxu0 0.0
    %2221 = vmatprep.subr.mxu0 0.0
    %2222 = vmatpush2.msra.mxu0 0.0
    %2223 = vmatprep.subr.mxu0 0.0
    %2224 = vmatpush2.msra.mxu0 0.0
    %2225 = vmatprep.subr.mxu0 0.0
    %2226 = vmatpush2.msra.mxu0 0.0
    %2227 = vmatprep.subr.mxu0 0.0
    %2228 = vmatpush2.msra.mxu0 0.0
    %2229 = vmatprep.subr.mxu0 0.0
    %2230 = vmatpush2.msra.mxu0 0.0
    %2231 = vmatprep.mubr.f32.mxu0 0.0
    %2232 = vmatmul.mubr.f32.gmra.mxu0 %v2162
    %v2233 = vpop.f32.mrf.mxu0
    %v2234 = vadd.f32 0.0, %v2233
    %v2235 = vpop.f32.mrf.mxu0
    %2236 = vmatprep.mubr.f32.mxu0 0.0
    %2237 = vmatmul.mubr.f32.gmra.mxu0 %v2165
    %v2238 = vpop.f32.mrf.mxu0
    %v2239 = vadd.f32 0.0, %v2238
    %v2240 = vpop.f32.mrf.mxu0
    %2241 = vdwg.mxu0
    %v2242 = vmul.f32 %v2234, 0.35355338
    %v2243 = vmul.f32 %v2239, 0.35355338
    %2246 = vrot.lane.b32.xlu0 %v2242, 120
    %v2247 = vpop.permute.xlu0 %2246
    %2248 = vrot.lane.b32.xlu0 %v2243, 120
    %v2249 = vpop.permute.xlu0 %2248
    %2250 = vrot.lane.b32.xlu0 %v2242, 112
    %v2251 = vpop.permute.xlu0 %2250
    %2252 = vrot.lane.b32.xlu0 %v2243, 112
    %v2253 = vpop.permute.xlu0 %2252
    %2254 = vrot.lane.b32.xlu0 %v2242, 104
    %v2255 = vpop.permute.xlu0 %2254
    %2256 = vrot.lane.b32.xlu0 %v2243, 104
    %v2257 = vpop.permute.xlu0 %2256
    %2260 = vrot.lane.b32.xlu0 %v2234, 120
    %v2261 = vpop.permute.xlu0 %2260
    %2262 = vrot.lane.b32.xlu0 %v2239, 120
    %v2263 = vpop.permute.xlu0 %2262
    %2264 = vrot.lane.b32.xlu0 %v2234, 112
    %v2265 = vpop.permute.xlu0 %2264
    %2266 = vrot.lane.b32.xlu0 %v2239, 112
    %v2267 = vpop.permute.xlu0 %2266
    %2268 = vrot.lane.b32.xlu0 %v2234, 104
    %v2269 = vpop.permute.xlu0 %2268
    %2270 = vrot.lane.b32.xlu0 %v2239, 104
    %v2271 = vpop.permute.xlu0 %2270
    %2272 = vrot.lane.b32.xlu0 %v2234, 96
    %v2273 = vpop.permute.xlu0 %2272
    %v2274 = vsel %vm394, %v2242, 0
    %v2276 = vsel %vm394, %v2273, 0
    %2278 = vmatprep.subr.mxu0 0.0
    %2279 = vmatpush1.xpose.msra.mxu0 0.0
    %2280 = vmatprep.subr.mxu0 0.0
    %2281 = vmatpush1.xpose.msra.mxu0 0.0
    %2282 = vmatprep.subr.mxu0 0.0
    %2283 = vmatpush1.xpose.msra.mxu0 0.0
    %2284 = vmatprep.subr.mxu0 0.0
    %2285 = vmatpush1.xpose.msra.mxu0 0.0
    %2286 = vmatprep.subr.mxu0 0.0
    %2287 = vmatpush1.xpose.msra.mxu0 0.0
    %2288 = vmatprep.subr.mxu0 0.0
    %2289 = vmatpush1.xpose.msra.mxu0 0.0
    %2290 = vmatprep.subr.mxu0 0.0
    %2291 = vmatpush1.xpose.msra.mxu0 0.0
    %2292 = vmatprep.subr.mxu0 0.0
    %2293 = vmatpush1.xpose.msra.mxu0 0.0
    %2294 = vmatprep.subr.mxu0 0.0
    %2295 = vmatpush1.xpose.msra.mxu0 0.0
    %2296 = vmatprep.subr.mxu0 0.0
    %2297 = vmatpush1.xpose.msra.mxu0 0.0
    %2298 = vmatprep.subr.mxu0 0.0
    %2299 = vmatpush1.xpose.msra.mxu0 0.0
    %2300 = vmatprep.subr.mxu0 0.0
    %2301 = vmatpush1.xpose.msra.mxu0 0.0
    %2302 = vmatprep.subr.mxu0 0.0
    %2303 = vmatpush1.xpose.msra.mxu0 0.0
    %2304 = vmatprep.subr.mxu0 0.0
    %2305 = vmatpush1.xpose.msra.mxu0 0.0
    %2306 = vmatprep.subr.mxu0 0.0
    %2307 = vmatpush1.xpose.msra.mxu0 0.0
    %2308 = vmatprep.subr.mxu0 0.0
    %2309 = vmatpush1.xpose.msra.mxu0 %v2276
    %2310 = vmatprep.subr.mxu0 0.0
    %2311 = vmatpush2.xpose.msra.mxu0 0.0
    %2312 = vmatprep.subr.mxu0 0.0
    %2313 = vmatpush2.xpose.msra.mxu0 0.0
    %2314 = vmatprep.subr.mxu0 0.0
    %2315 = vmatpush2.xpose.msra.mxu0 0.0
    %2316 = vmatprep.subr.mxu0 0.0
    %2317 = vmatpush2.xpose.msra.mxu0 0.0
    %2318 = vmatprep.subr.mxu0 0.0
    %2319 = vmatpush2.xpose.msra.mxu0 0.0
    %2320 = vmatprep.subr.mxu0 0.0
    %2321 = vmatpush2.xpose.msra.mxu0 0.0
    %2322 = vmatprep.subr.mxu0 0.0
    %2323 = vmatpush2.xpose.msra.mxu0 0.0
    %2324 = vmatprep.subr.mxu0 0.0
    %2325 = vmatpush2.xpose.msra.mxu0 0.0
    %2326 = vmatprep.subr.mxu0 0.0
    %2327 = vmatpush2.xpose.msra.mxu0 0.0
    %2328 = vmatprep.subr.mxu0 0.0
    %2329 = vmatpush2.xpose.msra.mxu0 0.0
    %2330 = vmatprep.subr.mxu0 0.0
    %2331 = vmatpush2.xpose.msra.mxu0 0.0
    %2332 = vmatprep.subr.mxu0 0.0
    %2333 = vmatpush2.xpose.msra.mxu0 0.0
    %2334 = vmatprep.subr.mxu0 0.0
    %2335 = vmatpush2.xpose.msra.mxu0 0.0
    %2336 = vmatprep.subr.mxu0 0.0
    %2337 = vmatpush2.xpose.msra.mxu0 0.0
    %2338 = vmatprep.subr.mxu0 0.0
    %2339 = vmatpush2.xpose.msra.mxu0 0.0
    %2340 = vmatprep.subr.mxu0 0.0
    %2341 = vmatpush2.xpose.msra.mxu0 0.0
    %2342 = vmatprep.mubr.f32.mxu0 0.0
    %2343 = vmatmul.mubr.f32.gmra.mxu0 %v2274
    %v2344 = vpop.f32.mrf.mxu0
    %v2345 = vadd.f32 %v226, %v2344
    %v2346 = vpop.f32.mrf.mxu0
    %2347 = vdwg.mxu0
    %2348 = vrot.lane.b32.xlu0 %v2239, 96
    %v2349 = vpop.permute.xlu0 %2348
    %v2350 = vsel %vm394, %v2243, 0
    %v2352 = vsel %vm394, %v2349, 0
    %2354 = vmatprep.subr.mxu0 0.0
    %2355 = vmatpush1.xpose.msra.mxu0 0.0
    %2356 = vmatprep.subr.mxu0 0.0
    %2357 = vmatpush1.xpose.msra.mxu0 0.0
    %2358 = vmatprep.subr.mxu0 0.0
    %2359 = vmatpush1.xpose.msra.mxu0 0.0
    %2360 = vmatprep.subr.mxu0 0.0
    %2361 = vmatpush1.xpose.msra.mxu0 0.0
    %2362 = vmatprep.subr.mxu0 0.0
    %2363 = vmatpush1.xpose.msra.mxu0 0.0
    %2364 = vmatprep.subr.mxu0 0.0
    %2365 = vmatpush1.xpose.msra.mxu0 0.0
    %2366 = vmatprep.subr.mxu0 0.0
    %2367 = vmatpush1.xpose.msra.mxu0 0.0
    %2368 = vmatprep.subr.mxu0 0.0
    %2369 = vmatpush1.xpose.msra.mxu0 0.0
    %2370 = vmatprep.subr.mxu0 0.0
    %2371 = vmatpush1.xpose.msra.mxu0 0.0
    %2372 = vmatprep.subr.mxu0 0.0
    %2373 = vmatpush1.xpose.msra.mxu0 0.0
    %2374 = vmatprep.subr.mxu0 0.0
    %2375 = vmatpush1.xpose.msra.mxu0 0.0
    %2376 = vmatprep.subr.mxu0 0.0
    %2377 = vmatpush1.xpose.msra.mxu0 0.0
    %2378 = vmatprep.subr.mxu0 0.0
    %2379 = vmatpush1.xpose.msra.mxu0 0.0
    %2380 = vmatprep.subr.mxu0 0.0
    %2381 = vmatpush1.xpose.msra.mxu0 0.0
    %2382 = vmatprep.subr.mxu0 0.0
    %2383 = vmatpush1.xpose.msra.mxu0 0.0
    %2384 = vmatprep.subr.mxu0 0.0
    %2385 = vmatpush1.xpose.msra.mxu0 %v2352
    %2386 = vmatprep.subr.mxu0 0.0
    %2387 = vmatpush2.xpose.msra.mxu0 0.0
    %2388 = vmatprep.subr.mxu0 0.0
    %2389 = vmatpush2.xpose.msra.mxu0 0.0
    %2390 = vmatprep.subr.mxu0 0.0
    %2391 = vmatpush2.xpose.msra.mxu0 0.0
    %2392 = vmatprep.subr.mxu0 0.0
    %2393 = vmatpush2.xpose.msra.mxu0 0.0
    %2394 = vmatprep.subr.mxu0 0.0
    %2395 = vmatpush2.xpose.msra.mxu0 0.0
    %2396 = vmatprep.subr.mxu0 0.0
    %2397 = vmatpush2.xpose.msra.mxu0 0.0
    %2398 = vmatprep.subr.mxu0 0.0
    %2399 = vmatpush2.xpose.msra.mxu0 0.0
    %2400 = vmatprep.subr.mxu0 0.0
    %2401 = vmatpush2.xpose.msra.mxu0 0.0
    %2402 = vmatprep.subr.mxu0 0.0
    %2403 = vmatpush2.xpose.msra.mxu0 0.0
    %2404 = vmatprep.subr.mxu0 0.0
    %2405 = vmatpush2.xpose.msra.mxu0 0.0
    %2406 = vmatprep.subr.mxu0 0.0
    %2407 = vmatpush2.xpose.msra.mxu0 0.0
    %2408 = vmatprep.subr.mxu0 0.0
    %2409 = vmatpush2.xpose.msra.mxu0 0.0
    %2410 = vmatprep.subr.mxu0 0.0
    %2411 = vmatpush2.xpose.msra.mxu0 0.0
    %2412 = vmatprep.subr.mxu0 0.0
    %2413 = vmatpush2.xpose.msra.mxu0 0.0
    %2414 = vmatprep.subr.mxu0 0.0
    %2415 = vmatpush2.xpose.msra.mxu0 0.0
    %2416 = vmatprep.subr.mxu0 0.0
    %2417 = vmatpush2.xpose.msra.mxu0 0.0
    %2418 = vmatprep.mubr.f32.mxu0 0.0
    %2419 = vmatmul.mubr.f32.gmra.mxu0 %v2350
    %v2420 = vpop.f32.mrf.mxu0
    %v2421 = vadd.f32 %v226, %v2420
    %v2422 = vpop.f32.mrf.mxu0
    %2423 = vdwg.mxu0
    %2424 = vrot.lane.b32.xlu0 %v2261, 96
    %v2425 = vpop.permute.xlu0 %2424
    %v2426 = vsel %vm394, %v2247, 0
    %v2428 = vsel %vm394, %v2425, 0
    %2430 = vmatprep.subr.mxu0 0.0
    %2431 = vmatpush1.xpose.msra.mxu0 0.0
    %2432 = vmatprep.subr.mxu0 0.0
    %2433 = vmatpush1.xpose.msra.mxu0 0.0
    %2434 = vmatprep.subr.mxu0 0.0
    %2435 = vmatpush1.xpose.msra.mxu0 0.0
    %2436 = vmatprep.subr.mxu0 0.0
    %2437 = vmatpush1.xpose.msra.mxu0 0.0
    %2438 = vmatprep.subr.mxu0 0.0
    %2439 = vmatpush1.xpose.msra.mxu0 0.0
    %2440 = vmatprep.subr.mxu0 0.0
    %2441 = vmatpush1.xpose.msra.mxu0 0.0
    %2442 = vmatprep.subr.mxu0 0.0
    %2443 = vmatpush1.xpose.msra.mxu0 0.0
    %2444 = vmatprep.subr.mxu0 0.0
    %2445 = vmatpush1.xpose.msra.mxu0 0.0
    %2446 = vmatprep.subr.mxu0 0.0
    %2447 = vmatpush1.xpose.msra.mxu0 0.0
    %2448 = vmatprep.subr.mxu0 0.0
    %2449 = vmatpush1.xpose.msra.mxu0 0.0
    %2450 = vmatprep.subr.mxu0 0.0
    %2451 = vmatpush1.xpose.msra.mxu0 0.0
    %2452 = vmatprep.subr.mxu0 0.0
    %2453 = vmatpush1.xpose.msra.mxu0 0.0
    %2454 = vmatprep.subr.mxu0 0.0
    %2455 = vmatpush1.xpose.msra.mxu0 0.0
    %2456 = vmatprep.subr.mxu0 0.0
    %2457 = vmatpush1.xpose.msra.mxu0 0.0
    %2458 = vmatprep.subr.mxu0 0.0
    %2459 = vmatpush1.xpose.msra.mxu0 0.0
    %2460 = vmatprep.subr.mxu0 0.0
    %2461 = vmatpush1.xpose.msra.mxu0 %v2428
    %2462 = vmatprep.subr.mxu0 0.0
    %2463 = vmatpush2.xpose.msra.mxu0 0.0
    %2464 = vmatprep.subr.mxu0 0.0
    %2465 = vmatpush2.xpose.msra.mxu0 0.0
    %2466 = vmatprep.subr.mxu0 0.0
    %2467 = vmatpush2.xpose.msra.mxu0 0.0
    %2468 = vmatprep.subr.mxu0 0.0
    %2469 = vmatpush2.xpose.msra.mxu0 0.0
    %2470 = vmatprep.subr.mxu0 0.0
    %2471 = vmatpush2.xpose.msra.mxu0 0.0
    %2472 = vmatprep.subr.mxu0 0.0
    %2473 = vmatpush2.xpose.msra.mxu0 0.0
    %2474 = vmatprep.subr.mxu0 0.0
    %2475 = vmatpush2.xpose.msra.mxu0 0.0
    %2476 = vmatprep.subr.mxu0 0.0
    %2477 = vmatpush2.xpose.msra.mxu0 0.0
    %2478 = vmatprep.subr.mxu0 0.0
    %2479 = vmatpush2.xpose.msra.mxu0 0.0
    %2480 = vmatprep.subr.mxu0 0.0
    %2481 = vmatpush2.xpose.msra.mxu0 0.0
    %2482 = vmatprep.subr.mxu0 0.0
    %2483 = vmatpush2.xpose.msra.mxu0 0.0
    %2484 = vmatprep.subr.mxu0 0.0
    %2485 = vmatpush2.xpose.msra.mxu0 0.0
    %2486 = vmatprep.subr.mxu0 0.0
    %2487 = vmatpush2.xpose.msra.mxu0 0.0
    %2488 = vmatprep.subr.mxu0 0.0
    %2489 = vmatpush2.xpose.msra.mxu0 0.0
    %2490 = vmatprep.subr.mxu0 0.0
    %2491 = vmatpush2.xpose.msra.mxu0 0.0
    %2492 = vmatprep.subr.mxu0 0.0
    %2493 = vmatpush2.xpose.msra.mxu0 0.0
    %2494 = vmatprep.mubr.f32.mxu0 0.0
    %2495 = vmatmul.mubr.f32.gmra.mxu0 %v2426
    %v2496 = vpop.f32.mrf.mxu0
    %v2497 = vadd.f32 %v226, %v2496
    %v2498 = vpop.f32.mrf.mxu0
    %2499 = vdwg.mxu0
    %2500 = vrot.lane.b32.xlu0 %v2263, 96
    %v2501 = vpop.permute.xlu0 %2500
    %v2502 = vsel %vm394, %v2249, 0
    %v2504 = vsel %vm394, %v2501, 0
    %2506 = vmatprep.subr.mxu0 0.0
    %2507 = vmatpush1.xpose.msra.mxu0 0.0
    %2508 = vmatprep.subr.mxu0 0.0
    %2509 = vmatpush1.xpose.msra.mxu0 0.0
    %2510 = vmatprep.subr.mxu0 0.0
    %2511 = vmatpush1.xpose.msra.mxu0 0.0
    %2512 = vmatprep.subr.mxu0 0.0
    %2513 = vmatpush1.xpose.msra.mxu0 0.0
    %2514 = vmatprep.subr.mxu0 0.0
    %2515 = vmatpush1.xpose.msra.mxu0 0.0
    %2516 = vmatprep.subr.mxu0 0.0
    %2517 = vmatpush1.xpose.msra.mxu0 0.0
    %2518 = vmatprep.subr.mxu0 0.0
    %2519 = vmatpush1.xpose.msra.mxu0 0.0
    %2520 = vmatprep.subr.mxu0 0.0
    %2521 = vmatpush1.xpose.msra.mxu0 0.0
    %2522 = vmatprep.subr.mxu0 0.0
    %2523 = vmatpush1.xpose.msra.mxu0 0.0
    %2524 = vmatprep.subr.mxu0 0.0
    %2525 = vmatpush1.xpose.msra.mxu0 0.0
    %2526 = vmatprep.subr.mxu0 0.0
    %2527 = vmatpush1.xpose.msra.mxu0 0.0
    %2528 = vmatprep.subr.mxu0 0.0
    %2529 = vmatpush1.xpose.msra.mxu0 0.0
    %2530 = vmatprep.subr.mxu0 0.0
    %2531 = vmatpush1.xpose.msra.mxu0 0.0
    %2532 = vmatprep.subr.mxu0 0.0
    %2533 = vmatpush1.xpose.msra.mxu0 0.0
    %2534 = vmatprep.subr.mxu0 0.0
    %2535 = vmatpush1.xpose.msra.mxu0 0.0
    %2536 = vmatprep.subr.mxu0 0.0
    %2537 = vmatpush1.xpose.msra.mxu0 %v2504
    %2538 = vmatprep.subr.mxu0 0.0
    %2539 = vmatpush2.xpose.msra.mxu0 0.0
    %2540 = vmatprep.subr.mxu0 0.0
    %2541 = vmatpush2.xpose.msra.mxu0 0.0
    %2542 = vmatprep.subr.mxu0 0.0
    %2543 = vmatpush2.xpose.msra.mxu0 0.0
    %2544 = vmatprep.subr.mxu0 0.0
    %2545 = vmatpush2.xpose.msra.mxu0 0.0
    %2546 = vmatprep.subr.mxu0 0.0
    %2547 = vmatpush2.xpose.msra.mxu0 0.0
    %2548 = vmatprep.subr.mxu0 0.0
    %2549 = vmatpush2.xpose.msra.mxu0 0.0
    %2550 = vmatprep.subr.mxu0 0.0
    %2551 = vmatpush2.xpose.msra.mxu0 0.0
    %2552 = vmatprep.subr.mxu0 0.0
    %2553 = vmatpush2.xpose.msra.mxu0 0.0
    %2554 = vmatprep.subr.mxu0 0.0
    %2555 = vmatpush2.xpose.msra.mxu0 0.0
    %2556 = vmatprep.subr.mxu0 0.0
    %2557 = vmatpush2.xpose.msra.mxu0 0.0
    %2558 = vmatprep.subr.mxu0 0.0
    %2559 = vmatpush2.xpose.msra.mxu0 0.0
    %2560 = vmatprep.subr.mxu0 0.0
    %2561 = vmatpush2.xpose.msra.mxu0 0.0
    %2562 = vmatprep.subr.mxu0 0.0
    %2563 = vmatpush2.xpose.msra.mxu0 0.0
    %2564 = vmatprep.subr.mxu0 0.0
    %2565 = vmatpush2.xpose.msra.mxu0 0.0
    %2566 = vmatprep.subr.mxu0 0.0
    %2567 = vmatpush2.xpose.msra.mxu0 0.0
    %2568 = vmatprep.subr.mxu0 0.0
    %2569 = vmatpush2.xpose.msra.mxu0 0.0
    %2570 = vmatprep.mubr.f32.mxu0 0.0
    %2571 = vmatmul.mubr.f32.gmra.mxu0 %v2502
    %v2572 = vpop.f32.mrf.mxu0
    %v2573 = vadd.f32 %v226, %v2572
    %v2574 = vpop.f32.mrf.mxu0
    %2575 = vdwg.mxu0
    %2576 = vrot.lane.b32.xlu0 %v2265, 96
    %v2577 = vpop.permute.xlu0 %2576
    %v2578 = vsel %vm394, %v2251, 0
    %v2580 = vsel %vm394, %v2577, 0
    %2582 = vmatprep.subr.mxu0 0.0
    %2583 = vmatpush1.xpose.msra.mxu0 0.0
    %2584 = vmatprep.subr.mxu0 0.0
    %2585 = vmatpush1.xpose.msra.mxu0 0.0
    %2586 = vmatprep.subr.mxu0 0.0
    %2587 = vmatpush1.xpose.msra.mxu0 0.0
    %2588 = vmatprep.subr.mxu0 0.0
    %2589 = vmatpush1.xpose.msra.mxu0 0.0
    %2590 = vmatprep.subr.mxu0 0.0
    %2591 = vmatpush1.xpose.msra.mxu0 0.0
    %2592 = vmatprep.subr.mxu0 0.0
    %2593 = vmatpush1.xpose.msra.mxu0 0.0
    %2594 = vmatprep.subr.mxu0 0.0
    %2595 = vmatpush1.xpose.msra.mxu0 0.0
    %2596 = vmatprep.subr.mxu0 0.0
    %2597 = vmatpush1.xpose.msra.mxu0 0.0
    %2598 = vmatprep.subr.mxu0 0.0
    %2599 = vmatpush1.xpose.msra.mxu0 0.0
    %2600 = vmatprep.subr.mxu0 0.0
    %2601 = vmatpush1.xpose.msra.mxu0 0.0
    %2602 = vmatprep.subr.mxu0 0.0
    %2603 = vmatpush1.xpose.msra.mxu0 0.0
    %2604 = vmatprep.subr.mxu0 0.0
    %2605 = vmatpush1.xpose.msra.mxu0 0.0
    %2606 = vmatprep.subr.mxu0 0.0
    %2607 = vmatpush1.xpose.msra.mxu0 0.0
    %2608 = vmatprep.subr.mxu0 0.0
    %2609 = vmatpush1.xpose.msra.mxu0 0.0
    %2610 = vmatprep.subr.mxu0 0.0
    %2611 = vmatpush1.xpose.msra.mxu0 0.0
    %2612 = vmatprep.subr.mxu0 0.0
    %2613 = vmatpush1.xpose.msra.mxu0 %v2580
    %2614 = vmatprep.subr.mxu0 0.0
    %2615 = vmatpush2.xpose.msra.mxu0 0.0
    %2616 = vmatprep.subr.mxu0 0.0
    %2617 = vmatpush2.xpose.msra.mxu0 0.0
    %2618 = vmatprep.subr.mxu0 0.0
    %2619 = vmatpush2.xpose.msra.mxu0 0.0
    %2620 = vmatprep.subr.mxu0 0.0
    %2621 = vmatpush2.xpose.msra.mxu0 0.0
    %2622 = vmatprep.subr.mxu0 0.0
    %2623 = vmatpush2.xpose.msra.mxu0 0.0
    %2624 = vmatprep.subr.mxu0 0.0
    %2625 = vmatpush2.xpose.msra.mxu0 0.0
    %2626 = vmatprep.subr.mxu0 0.0
    %2627 = vmatpush2.xpose.msra.mxu0 0.0
    %2628 = vmatprep.subr.mxu0 0.0
    %2629 = vmatpush2.xpose.msra.mxu0 0.0
    %2630 = vmatprep.subr.mxu0 0.0
    %2631 = vmatpush2.xpose.msra.mxu0 0.0
    %2632 = vmatprep.subr.mxu0 0.0
    %2633 = vmatpush2.xpose.msra.mxu0 0.0
    %2634 = vmatprep.subr.mxu0 0.0
    %2635 = vmatpush2.xpose.msra.mxu0 0.0
    %2636 = vmatprep.subr.mxu0 0.0
    %2637 = vmatpush2.xpose.msra.mxu0 0.0
    %2638 = vmatprep.subr.mxu0 0.0
    %2639 = vmatpush2.xpose.msra.mxu0 0.0
    %2640 = vmatprep.subr.mxu0 0.0
    %2641 = vmatpush2.xpose.msra.mxu0 0.0
    %2642 = vmatprep.subr.mxu0 0.0
    %2643 = vmatpush2.xpose.msra.mxu0 0.0
    %2644 = vmatprep.subr.mxu0 0.0
    %2645 = vmatpush2.xpose.msra.mxu0 0.0
    %2646 = vmatprep.mubr.f32.mxu0 0.0
    %2647 = vmatmul.mubr.f32.gmra.mxu0 %v2578
    %v2648 = vpop.f32.mrf.mxu0
    %v2649 = vadd.f32 %v226, %v2648
    %v2650 = vpop.f32.mrf.mxu0
    %2651 = vdwg.mxu0
    %2652 = vrot.lane.b32.xlu0 %v2267, 96
    %v2653 = vpop.permute.xlu0 %2652
    %v2654 = vsel %vm394, %v2253, 0
    %v2656 = vsel %vm394, %v2653, 0
    %2658 = vmatprep.subr.mxu0 0.0
    %2659 = vmatpush1.xpose.msra.mxu0 0.0
    %2660 = vmatprep.subr.mxu0 0.0
    %2661 = vmatpush1.xpose.msra.mxu0 0.0
    %2662 = vmatprep.subr.mxu0 0.0
    %2663 = vmatpush1.xpose.msra.mxu0 0.0
    %2664 = vmatprep.subr.mxu0 0.0
    %2665 = vmatpush1.xpose.msra.mxu0 0.0
    %2666 = vmatprep.subr.mxu0 0.0
    %2667 = vmatpush1.xpose.msra.mxu0 0.0
    %2668 = vmatprep.subr.mxu0 0.0
    %2669 = vmatpush1.xpose.msra.mxu0 0.0
    %2670 = vmatprep.subr.mxu0 0.0
    %2671 = vmatpush1.xpose.msra.mxu0 0.0
    %2672 = vmatprep.subr.mxu0 0.0
    %2673 = vmatpush1.xpose.msra.mxu0 0.0
    %2674 = vmatprep.subr.mxu0 0.0
    %2675 = vmatpush1.xpose.msra.mxu0 0.0
    %2676 = vmatprep.subr.mxu0 0.0
    %2677 = vmatpush1.xpose.msra.mxu0 0.0
    %2678 = vmatprep.subr.mxu0 0.0
    %2679 = vmatpush1.xpose.msra.mxu0 0.0
    %2680 = vmatprep.subr.mxu0 0.0
    %2681 = vmatpush1.xpose.msra.mxu0 0.0
    %2682 = vmatprep.subr.mxu0 0.0
    %2683 = vmatpush1.xpose.msra.mxu0 0.0
    %2684 = vmatprep.subr.mxu0 0.0
    %2685 = vmatpush1.xpose.msra.mxu0 0.0
    %2686 = vmatprep.subr.mxu0 0.0
    %2687 = vmatpush1.xpose.msra.mxu0 0.0
    %2688 = vmatprep.subr.mxu0 0.0
    %2689 = vmatpush1.xpose.msra.mxu0 %v2656
    %2690 = vmatprep.subr.mxu0 0.0
    %2691 = vmatpush2.xpose.msra.mxu0 0.0
    %2692 = vmatprep.subr.mxu0 0.0
    %2693 = vmatpush2.xpose.msra.mxu0 0.0
    %2694 = vmatprep.subr.mxu0 0.0
    %2695 = vmatpush2.xpose.msra.mxu0 0.0
    %2696 = vmatprep.subr.mxu0 0.0
    %2697 = vmatpush2.xpose.msra.mxu0 0.0
    %2698 = vmatprep.subr.mxu0 0.0
    %2699 = vmatpush2.xpose.msra.mxu0 0.0
    %2700 = vmatprep.subr.mxu0 0.0
    %2701 = vmatpush2.xpose.msra.mxu0 0.0
    %2702 = vmatprep.subr.mxu0 0.0
    %2703 = vmatpush2.xpose.msra.mxu0 0.0
    %2704 = vmatprep.subr.mxu0 0.0
    %2705 = vmatpush2.xpose.msra.mxu0 0.0
    %2706 = vmatprep.subr.mxu0 0.0
    %2707 = vmatpush2.xpose.msra.mxu0 0.0
    %2708 = vmatprep.subr.mxu0 0.0
    %2709 = vmatpush2.xpose.msra.mxu0 0.0
    %2710 = vmatprep.subr.mxu0 0.0
    %2711 = vmatpush2.xpose.msra.mxu0 0.0
    %2712 = vmatprep.subr.mxu0 0.0
    %2713 = vmatpush2.xpose.msra.mxu0 0.0
    %2714 = vmatprep.subr.mxu0 0.0
    %2715 = vmatpush2.xpose.msra.mxu0 0.0
    %2716 = vmatprep.subr.mxu0 0.0
    %2717 = vmatpush2.xpose.msra.mxu0 0.0
    %2718 = vmatprep.subr.mxu0 0.0
    %2719 = vmatpush2.xpose.msra.mxu0 0.0
    %2720 = vmatprep.subr.mxu0 0.0
    %2721 = vmatpush2.xpose.msra.mxu0 0.0
    %2722 = vmatprep.mubr.f32.mxu0 0.0
    %2723 = vmatmul.mubr.f32.gmra.mxu0 %v2654
    %v2724 = vpop.f32.mrf.mxu0
    %v2725 = vadd.f32 %v226, %v2724
    %v2726 = vpop.f32.mrf.mxu0
    %2727 = vdwg.mxu0
    %2728 = vrot.lane.b32.xlu0 %v2269, 96
    %v2729 = vpop.permute.xlu0 %2728
    %v2730 = vsel %vm394, %v2255, 0
    %v2732 = vsel %vm394, %v2729, 0
    %2734 = vmatprep.subr.mxu0 0.0
    %2735 = vmatpush1.xpose.msra.mxu0 0.0
    %2736 = vmatprep.subr.mxu0 0.0
    %2737 = vmatpush1.xpose.msra.mxu0 0.0
    %2738 = vmatprep.subr.mxu0 0.0
    %2739 = vmatpush1.xpose.msra.mxu0 0.0
    %2740 = vmatprep.subr.mxu0 0.0
    %2741 = vmatpush1.xpose.msra.mxu0 0.0
    %2742 = vmatprep.subr.mxu0 0.0
    %2743 = vmatpush1.xpose.msra.mxu0 0.0
    %2744 = vmatprep.subr.mxu0 0.0
    %2745 = vmatpush1.xpose.msra.mxu0 0.0
    %2746 = vmatprep.subr.mxu0 0.0
    %2747 = vmatpush1.xpose.msra.mxu0 0.0
    %2748 = vmatprep.subr.mxu0 0.0
    %2749 = vmatpush1.xpose.msra.mxu0 0.0
    %2750 = vmatprep.subr.mxu0 0.0
    %2751 = vmatpush1.xpose.msra.mxu0 0.0
    %2752 = vmatprep.subr.mxu0 0.0
    %2753 = vmatpush1.xpose.msra.mxu0 0.0
    %2754 = vmatprep.subr.mxu0 0.0
    %2755 = vmatpush1.xpose.msra.mxu0 0.0
    %2756 = vmatprep.subr.mxu0 0.0
    %2757 = vmatpush1.xpose.msra.mxu0 0.0
    %2758 = vmatprep.subr.mxu0 0.0
    %2759 = vmatpush1.xpose.msra.mxu0 0.0
    %2760 = vmatprep.subr.mxu0 0.0
    %2761 = vmatpush1.xpose.msra.mxu0 0.0
    %2762 = vmatprep.subr.mxu0 0.0
    %2763 = vmatpush1.xpose.msra.mxu0 0.0
    %2764 = vmatprep.subr.mxu0 0.0
    %2765 = vmatpush1.xpose.msra.mxu0 %v2732
    %2766 = vmatprep.subr.mxu0 0.0
    %2767 = vmatpush2.xpose.msra.mxu0 0.0
    %2768 = vmatprep.subr.mxu0 0.0
    %2769 = vmatpush2.xpose.msra.mxu0 0.0
    %2770 = vmatprep.subr.mxu0 0.0
    %2771 = vmatpush2.xpose.msra.mxu0 0.0
    %2772 = vmatprep.subr.mxu0 0.0
    %2773 = vmatpush2.xpose.msra.mxu0 0.0
    %2774 = vmatprep.subr.mxu0 0.0
    %2775 = vmatpush2.xpose.msra.mxu0 0.0
    %2776 = vmatprep.subr.mxu0 0.0
    %2777 = vmatpush2.xpose.msra.mxu0 0.0
    %2778 = vmatprep.subr.mxu0 0.0
    %2779 = vmatpush2.xpose.msra.mxu0 0.0
    %2780 = vmatprep.subr.mxu0 0.0
    %2781 = vmatpush2.xpose.msra.mxu0 0.0
    %2782 = vmatprep.subr.mxu0 0.0
    %2783 = vmatpush2.xpose.msra.mxu0 0.0
    %2784 = vmatprep.subr.mxu0 0.0
    %2785 = vmatpush2.xpose.msra.mxu0 0.0
    %2786 = vmatprep.subr.mxu0 0.0
    %2787 = vmatpush2.xpose.msra.mxu0 0.0
    %2788 = vmatprep.subr.mxu0 0.0
    %2789 = vmatpush2.xpose.msra.mxu0 0.0
    %2790 = vmatprep.subr.mxu0 0.0
    %2791 = vmatpush2.xpose.msra.mxu0 0.0
    %2792 = vmatprep.subr.mxu0 0.0
    %2793 = vmatpush2.xpose.msra.mxu0 0.0
    %2794 = vmatprep.subr.mxu0 0.0
    %2795 = vmatpush2.xpose.msra.mxu0 0.0
    %2796 = vmatprep.subr.mxu0 0.0
    %2797 = vmatpush2.xpose.msra.mxu0 0.0
    %2798 = vmatprep.mubr.f32.mxu0 0.0
    %2799 = vmatmul.mubr.f32.gmra.mxu0 %v2730
    %v2800 = vpop.f32.mrf.mxu0
    %v2801 = vadd.f32 %v226, %v2800
    %v2802 = vpop.f32.mrf.mxu0
    %2803 = vdwg.mxu0
    %2804 = vrot.lane.b32.xlu0 %v2271, 96
    %v2805 = vpop.permute.xlu0 %2804
    %v2806 = vsel %vm394, %v2257, 0
    %v2808 = vsel %vm394, %v2805, 0
    %2810 = vmatprep.subr.mxu0 0.0
    %2811 = vmatpush1.xpose.msra.mxu0 0.0
    %2812 = vmatprep.subr.mxu0 0.0
    %2813 = vmatpush1.xpose.msra.mxu0 0.0
    %2814 = vmatprep.subr.mxu0 0.0
    %2815 = vmatpush1.xpose.msra.mxu0 0.0
    %2816 = vmatprep.subr.mxu0 0.0
    %2817 = vmatpush1.xpose.msra.mxu0 0.0
    %2818 = vmatprep.subr.mxu0 0.0
    %2819 = vmatpush1.xpose.msra.mxu0 0.0
    %2820 = vmatprep.subr.mxu0 0.0
    %2821 = vmatpush1.xpose.msra.mxu0 0.0
    %2822 = vmatprep.subr.mxu0 0.0
    %2823 = vmatpush1.xpose.msra.mxu0 0.0
    %2824 = vmatprep.subr.mxu0 0.0
    %2825 = vmatpush1.xpose.msra.mxu0 0.0
    %2826 = vmatprep.subr.mxu0 0.0
    %2827 = vmatpush1.xpose.msra.mxu0 0.0
    %2828 = vmatprep.subr.mxu0 0.0
    %2829 = vmatpush1.xpose.msra.mxu0 0.0
    %2830 = vmatprep.subr.mxu0 0.0
    %2831 = vmatpush1.xpose.msra.mxu0 0.0
    %2832 = vmatprep.subr.mxu0 0.0
    %2833 = vmatpush1.xpose.msra.mxu0 0.0
    %2834 = vmatprep.subr.mxu0 0.0
    %2835 = vmatpush1.xpose.msra.mxu0 0.0
    %2836 = vmatprep.subr.mxu0 0.0
    %2837 = vmatpush1.xpose.msra.mxu0 0.0
    %2838 = vmatprep.subr.mxu0 0.0
    %2839 = vmatpush1.xpose.msra.mxu0 0.0
    %2840 = vmatprep.subr.mxu0 0.0
    %2841 = vmatpush1.xpose.msra.mxu0 %v2808
    %2842 = vmatprep.subr.mxu0 0.0
    %2843 = vmatpush2.xpose.msra.mxu0 0.0
    %2844 = vmatprep.subr.mxu0 0.0
    %2845 = vmatpush2.xpose.msra.mxu0 0.0
    %2846 = vmatprep.subr.mxu0 0.0
    %2847 = vmatpush2.xpose.msra.mxu0 0.0
    %2848 = vmatprep.subr.mxu0 0.0
    %2849 = vmatpush2.xpose.msra.mxu0 0.0
    %2850 = vmatprep.subr.mxu0 0.0
    %2851 = vmatpush2.xpose.msra.mxu0 0.0
    %2852 = vmatprep.subr.mxu0 0.0
    %2853 = vmatpush2.xpose.msra.mxu0 0.0
    %2854 = vmatprep.subr.mxu0 0.0
    %2855 = vmatpush2.xpose.msra.mxu0 0.0
    %2856 = vmatprep.subr.mxu0 0.0
    %2857 = vmatpush2.xpose.msra.mxu0 0.0
    %2858 = vmatprep.subr.mxu0 0.0
    %2859 = vmatpush2.xpose.msra.mxu0 0.0
    %2860 = vmatprep.subr.mxu0 0.0
    %2861 = vmatpush2.xpose.msra.mxu0 0.0
    %2862 = vmatprep.subr.mxu0 0.0
    %2863 = vmatpush2.xpose.msra.mxu0 0.0
    %2864 = vmatprep.subr.mxu0 0.0
    %2865 = vmatpush2.xpose.msra.mxu0 0.0
    %2866 = vmatprep.subr.mxu0 0.0
    %2867 = vmatpush2.xpose.msra.mxu0 0.0
    %2868 = vmatprep.subr.mxu0 0.0
    %2869 = vmatpush2.xpose.msra.mxu0 0.0
    %2870 = vmatprep.subr.mxu0 0.0
    %2871 = vmatpush2.xpose.msra.mxu0 0.0
    %2872 = vmatprep.subr.mxu0 0.0
    %2873 = vmatpush2.xpose.msra.mxu0 0.0
    %2874 = vmatprep.mubr.f32.mxu0 0.0
    %2875 = vmatmul.mubr.f32.gmra.mxu0 %v2806
    %v2876 = vpop.f32.mrf.mxu0
    %v2877 = vadd.f32 %v226, %v2876
    %v2878 = vpop.f32.mrf.mxu0
    %2879 = vdwg.mxu0
    %v2880 = vsel %vm394, %v2345, -inf
    %2881 = vmax.xlane.f32.xlu0 %v2880
    %v2882 = vpop.xlane.xlu0 %2881
    %v2883 = vsel %vm394, %v2421, -inf
    %2884 = vmax.xlane.f32.xlu0 %v2883
    %v2885 = vpop.xlane.xlu0 %2884
    %v2886 = vsel %vm394, %v2497, -inf
    %2887 = vmax.xlane.f32.xlu0 %v2886
    %v2888 = vpop.xlane.xlu0 %2887
    %v2889 = vsel %vm394, %v2573, -inf
    %2890 = vmax.xlane.f32.xlu0 %v2889
    %v2891 = vpop.xlane.xlu0 %2890
    %v2892 = vsel %vm394, %v2649, -inf
    %2893 = vmax.xlane.f32.xlu0 %v2892
    %v2894 = vpop.xlane.xlu0 %2893
    %v2895 = vsel %vm394, %v2725, -inf
    %2896 = vmax.xlane.f32.xlu0 %v2895
    %v2897 = vpop.xlane.xlu0 %2896
    %v2898 = vsel %vm394, %v2801, -inf
    %2899 = vmax.xlane.f32.xlu0 %v2898
    %v2900 = vpop.xlane.xlu0 %2899
    %v2901 = vsel %vm394, %v2877, -inf
    %2902 = vmax.xlane.f32.xlu0 %v2901
    %v2903 = vpop.xlane.xlu0 %2902
    %v2904 = vsub.f32 %v2345, %v2882
    %v2905 = vsub.f32 %v2421, %v2885
    %v2906 = vsub.f32 %v2497, %v2888
    %v2907 = vsub.f32 %v2573, %v2891
    %v2908 = vsub.f32 %v2649, %v2894
    %v2909 = vsub.f32 %v2725, %v2897
    %v2910 = vsub.f32 %v2801, %v2900
    %v2911 = vsub.f32 %v2877, %v2903
    %v2912 = vmul.f32 %v2904, 1.442695
    %v2913 = vpow.pop %v2912
    %v2914 = vmul.f32 %v2905, 1.442695
    %v2915 = vpow.pop %v2914
    %v2916 = vmul.f32 %v2906, 1.442695
    %v2917 = vpow.pop %v2916
    %v2918 = vmul.f32 %v2907, 1.442695
    %v2919 = vpow.pop %v2918
    %v2920 = vmul.f32 %v2908, 1.442695
    %v2921 = vpow.pop %v2920
    %v2922 = vmul.f32 %v2909, 1.442695
    %v2923 = vpow.pop %v2922
    %v2924 = vmul.f32 %v2910, 1.442695
    %v2925 = vpow.pop %v2924
    %v2926 = vmul.f32 %v2911, 1.442695
    %v2927 = vpow.pop %v2926
    %v2928 = vsel %vm394, %v2913, 0.0
    %2929 = vadd.xlane.f32.xlu0 %v2928
    %v2930 = vpop.xlane.xlu0 %2929
    %v2931 = vsel %vm394, %v2915, 0.0
    %2932 = vadd.xlane.f32.xlu0 %v2931
    %v2933 = vpop.xlane.xlu0 %2932
    %v2934 = vsel %vm394, %v2917, 0.0
    %2935 = vadd.xlane.f32.xlu0 %v2934
    %v2936 = vpop.xlane.xlu0 %2935
    %v2937 = vsel %vm394, %v2919, 0.0
    %2938 = vadd.xlane.f32.xlu0 %v2937
    %v2939 = vpop.xlane.xlu0 %2938
    %v2940 = vsel %vm394, %v2921, 0.0
    %2941 = vadd.xlane.f32.xlu0 %v2940
    %v2942 = vpop.xlane.xlu0 %2941
    %v2943 = vsel %vm394, %v2923, 0.0
    %2944 = vadd.xlane.f32.xlu0 %v2943
    %v2945 = vpop.xlane.xlu0 %2944
    %v2946 = vsel %vm394, %v2925, 0.0
    %2947 = vadd.xlane.f32.xlu0 %v2946
    %v2948 = vpop.xlane.xlu0 %2947
    %v2949 = vsel %vm394, %v2927, 0.0
    %2950 = vadd.xlane.f32.xlu0 %v2949
    %v2951 = vpop.xlane.xlu0 %2950
    %v2952 = vrcp.pop %v2930
    %v2953 = vrcp.pop %v2933
    %v2954 = vrcp.pop %v2936
    %v2955 = vrcp.pop %v2939
    %v2956 = vrcp.pop %v2942
    %v2957 = vrcp.pop %v2945
    %v2958 = vrcp.pop %v2948
    %v2959 = vrcp.pop %v2951
    %v2960 = vmul.f32 %v2913, %v2952
    %v2961 = vmul.f32 %v2915, %v2953
    %v2962 = vmul.f32 %v2917, %v2954
    %v2963 = vmul.f32 %v2919, %v2955
    %v2964 = vmul.f32 %v2921, %v2956
    %v2965 = vmul.f32 %v2923, %v2957
    %v2966 = vmul.f32 %v2925, %v2958
    %v2967 = vmul.f32 %v2927, %v2959
    %2968 = vrot.lane.b32.xlu0 %v2234, 64
    %v2969 = vpop.permute.xlu0 %2968
    %v2972 = vsel %vm394, %v2960, 0
    %2974 = vmatprep.subr.mxu0 0.0
    %2975 = vmatpush1.msra.mxu0 0.0
    %2976 = vmatprep.subr.mxu0 0.0
    %2977 = vmatpush1.msra.mxu0 0.0
    %2978 = vmatprep.subr.mxu0 0.0
    %2979 = vmatpush1.msra.mxu0 0.0
    %2980 = vmatprep.subr.mxu0 0.0
    %2981 = vmatpush1.msra.mxu0 0.0
    %2982 = vmatprep.subr.mxu0 0.0
    %2983 = vmatpush1.msra.mxu0 0.0
    %2984 = vmatprep.subr.mxu0 0.0
    %2985 = vmatpush1.msra.mxu0 0.0
    %2986 = vmatprep.subr.mxu0 0.0
    %2987 = vmatpush1.msra.mxu0 0.0
    %2988 = vmatprep.subr.mxu0 0.0
    %2989 = vmatpush1.msra.mxu0 0.0
    %2990 = vmatprep.subr.mxu0 0.0
    %2991 = vmatpush1.msra.mxu0 0.0
    %2992 = vmatprep.subr.mxu0 0.0
    %2993 = vmatpush1.msra.mxu0 0.0
    %2994 = vmatprep.subr.mxu0 0.0
    %2995 = vmatpush1.msra.mxu0 0.0
    %2996 = vmatprep.subr.mxu0 0.0
    %2997 = vmatpush1.msra.mxu0 0.0
    %2998 = vmatprep.subr.mxu0 0.0
    %2999 = vmatpush1.msra.mxu0 0.0
    %3000 = vmatprep.subr.mxu0 0.0
    %3001 = vmatpush1.msra.mxu0 0.0
    %3002 = vmatprep.subr.mxu0 0.0
    %3003 = vmatpush1.msra.mxu0 0.0
    %3004 = vmatprep.subr.mxu0 0.0
    %3005 = vmatpush1.msra.mxu0 %v2969
    %3006 = vmatprep.subr.mxu0 0.0
    %3007 = vmatpush2.msra.mxu0 0.0
    %3008 = vmatprep.subr.mxu0 0.0
    %3009 = vmatpush2.msra.mxu0 0.0
    %3010 = vmatprep.subr.mxu0 0.0
    %3011 = vmatpush2.msra.mxu0 0.0
    %3012 = vmatprep.subr.mxu0 0.0
    %3013 = vmatpush2.msra.mxu0 0.0
    %3014 = vmatprep.subr.mxu0 0.0
    %3015 = vmatpush2.msra.mxu0 0.0
    %3016 = vmatprep.subr.mxu0 0.0
    %3017 = vmatpush2.msra.mxu0 0.0
    %3018 = vmatprep.subr.mxu0 0.0
    %3019 = vmatpush2.msra.mxu0 0.0
    %3020 = vmatprep.subr.mxu0 0.0
    %3021 = vmatpush2.msra.mxu0 0.0
    %3022 = vmatprep.subr.mxu0 0.0
    %3023 = vmatpush2.msra.mxu0 0.0
    %3024 = vmatprep.subr.mxu0 0.0
    %3025 = vmatpush2.msra.mxu0 0.0
    %3026 = vmatprep.subr.mxu0 0.0
    %3027 = vmatpush2.msra.mxu0 0.0
    %3028 = vmatprep.subr.mxu0 0.0
    %3029 = vmatpush2.msra.mxu0 0.0
    %3030 = vmatprep.subr.mxu0 0.0
    %3031 = vmatpush2.msra.mxu0 0.0
    %3032 = vmatprep.subr.mxu0 0.0
    %3033 = vmatpush2.msra.mxu0 0.0
    %3034 = vmatprep.subr.mxu0 0.0
    %3035 = vmatpush2.msra.mxu0 0.0
    %3036 = vmatprep.subr.mxu0 0.0
    %3037 = vmatpush2.msra.mxu0 0.0
    %3038 = vmatprep.mubr.f32.mxu0 0.0
    %3039 = vmatmul.mubr.f32.gmra.mxu0 %v2972
    %v3040 = vpop.f32.mrf.mxu0
    %v3041 = vadd.f32 0.0, %v3040
    %v3042 = vpop.f32.mrf.mxu0
    %3043 = vdwg.mxu0
    %3044 = vrot.lane.b32.xlu0 %v2239, 64
    %v3045 = vpop.permute.xlu0 %3044
    %v3048 = vsel %vm394, %v2961, 0
    %3050 = vmatprep.subr.mxu0 0.0
    %3051 = vmatpush1.msra.mxu0 0.0
    %3052 = vmatprep.subr.mxu0 0.0
    %3053 = vmatpush1.msra.mxu0 0.0
    %3054 = vmatprep.subr.mxu0 0.0
    %3055 = vmatpush1.msra.mxu0 0.0
    %3056 = vmatprep.subr.mxu0 0.0
    %3057 = vmatpush1.msra.mxu0 0.0
    %3058 = vmatprep.subr.mxu0 0.0
    %3059 = vmatpush1.msra.mxu0 0.0
    %3060 = vmatprep.subr.mxu0 0.0
    %3061 = vmatpush1.msra.mxu0 0.0
    %3062 = vmatprep.subr.mxu0 0.0
    %3063 = vmatpush1.msra.mxu0 0.0
    %3064 = vmatprep.subr.mxu0 0.0
    %3065 = vmatpush1.msra.mxu0 0.0
    %3066 = vmatprep.subr.mxu0 0.0
    %3067 = vmatpush1.msra.mxu0 0.0
    %3068 = vmatprep.subr.mxu0 0.0
    %3069 = vmatpush1.msra.mxu0 0.0
    %3070 = vmatprep.subr.mxu0 0.0
    %3071 = vmatpush1.msra.mxu0 0.0
    %3072 = vmatprep.subr.mxu0 0.0
    %3073 = vmatpush1.msra.mxu0 0.0
    %3074 = vmatprep.subr.mxu0 0.0
    %3075 = vmatpush1.msra.mxu0 0.0
    %3076 = vmatprep.subr.mxu0 0.0
    %3077 = vmatpush1.msra.mxu0 0.0
    %3078 = vmatprep.subr.mxu0 0.0
    %3079 = vmatpush1.msra.mxu0 0.0
    %3080 = vmatprep.subr.mxu0 0.0
    %3081 = vmatpush1.msra.mxu0 %v3045
    %3082 = vmatprep.subr.mxu0 0.0
    %3083 = vmatpush2.msra.mxu0 0.0
    %3084 = vmatprep.subr.mxu0 0.0
    %3085 = vmatpush2.msra.mxu0 0.0
    %3086 = vmatprep.subr.mxu0 0.0
    %3087 = vmatpush2.msra.mxu0 0.0
    %3088 = vmatprep.subr.mxu0 0.0
    %3089 = vmatpush2.msra.mxu0 0.0
    %3090 = vmatprep.subr.mxu0 0.0
    %3091 = vmatpush2.msra.mxu0 0.0
    %3092 = vmatprep.subr.mxu0 0.0
    %3093 = vmatpush2.msra.mxu0 0.0
    %3094 = vmatprep.subr.mxu0 0.0
    %3095 = vmatpush2.msra.mxu0 0.0
    %3096 = vmatprep.subr.mxu0 0.0
    %3097 = vmatpush2.msra.mxu0 0.0
    %3098 = vmatprep.subr.mxu0 0.0
    %3099 = vmatpush2.msra.mxu0 0.0
    %3100 = vmatprep.subr.mxu0 0.0
    %3101 = vmatpush2.msra.mxu0 0.0
    %3102 = vmatprep.subr.mxu0 0.0
    %3103 = vmatpush2.msra.mxu0 0.0
    %3104 = vmatprep.subr.mxu0 0.0
    %3105 = vmatpush2.msra.mxu0 0.0
    %3106 = vmatprep.subr.mxu0 0.0
    %3107 = vmatpush2.msra.mxu0 0.0
    %3108 = vmatprep.subr.mxu0 0.0
    %3109 = vmatpush2.msra.mxu0 0.0
    %3110 = vmatprep.subr.mxu0 0.0
    %3111 = vmatpush2.msra.mxu0 0.0
    %3112 = vmatprep.subr.mxu0 0.0
    %3113 = vmatpush2.msra.mxu0 0.0
    %3114 = vmatprep.mubr.f32.mxu0 0.0
    %3115 = vmatmul.mubr.f32.gmra.mxu0 %v3048
    %v3116 = vpop.f32.mrf.mxu0
    %v3117 = vadd.f32 0.0, %v3116
    %v3118 = vpop.f32.mrf.mxu0
    %3119 = vdwg.mxu0
    %3120 = vrot.lane.b32.xlu0 %v2261, 64
    %v3121 = vpop.permute.xlu0 %3120
    %v3124 = vsel %vm394, %v2962, 0
    %3126 = vmatprep.subr.mxu0 0.0
    %3127 = vmatpush1.msra.mxu0 0.0
    %3128 = vmatprep.subr.mxu0 0.0
    %3129 = vmatpush1.msra.mxu0 0.0
    %3130 = vmatprep.subr.mxu0 0.0
    %3131 = vmatpush1.msra.mxu0 0.0
    %3132 = vmatprep.subr.mxu0 0.0
    %3133 = vmatpush1.msra.mxu0 0.0
    %3134 = vmatprep.subr.mxu0 0.0
    %3135 = vmatpush1.msra.mxu0 0.0
    %3136 = vmatprep.subr.mxu0 0.0
    %3137 = vmatpush1.msra.mxu0 0.0
    %3138 = vmatprep.subr.mxu0 0.0
    %3139 = vmatpush1.msra.mxu0 0.0
    %3140 = vmatprep.subr.mxu0 0.0
    %3141 = vmatpush1.msra.mxu0 0.0
    %3142 = vmatprep.subr.mxu0 0.0
    %3143 = vmatpush1.msra.mxu0 0.0
    %3144 = vmatprep.subr.mxu0 0.0
    %3145 = vmatpush1.msra.mxu0 0.0
    %3146 = vmatprep.subr.mxu0 0.0
    %3147 = vmatpush1.msra.mxu0 0.0
    %3148 = vmatprep.subr.mxu0 0.0
    %3149 = vmatpush1.msra.mxu0 0.0
    %3150 = vmatprep.subr.mxu0 0.0
    %3151 = vmatpush1.msra.mxu0 0.0
    %3152 = vmatprep.subr.mxu0 0.0
    %3153 = vmatpush1.msra.mxu0 0.0
    %3154 = vmatprep.subr.mxu0 0.0
    %3155 = vmatpush1.msra.mxu0 0.0
    %3156 = vmatprep.subr.mxu0 0.0
    %3157 = vmatpush1.msra.mxu0 %v3121
    %3158 = vmatprep.subr.mxu0 0.0
    %3159 = vmatpush2.msra.mxu0 0.0
    %3160 = vmatprep.subr.mxu0 0.0
    %3161 = vmatpush2.msra.mxu0 0.0
    %3162 = vmatprep.subr.mxu0 0.0
    %3163 = vmatpush2.msra.mxu0 0.0
    %3164 = vmatprep.subr.mxu0 0.0
    %3165 = vmatpush2.msra.mxu0 0.0
    %3166 = vmatprep.subr.mxu0 0.0
    %3167 = vmatpush2.msra.mxu0 0.0
    %3168 = vmatprep.subr.mxu0 0.0
    %3169 = vmatpush2.msra.mxu0 0.0
    %3170 = vmatprep.subr.mxu0 0.0
    %3171 = vmatpush2.msra.mxu0 0.0
    %3172 = vmatprep.subr.mxu0 0.0
    %3173 = vmatpush2.msra.mxu0 0.0
    %3174 = vmatprep.subr.mxu0 0.0
    %3175 = vmatpush2.msra.mxu0 0.0
    %3176 = vmatprep.subr.mxu0 0.0
    %3177 = vmatpush2.msra.mxu0 0.0
    %3178 = vmatprep.subr.mxu0 0.0
    %3179 = vmatpush2.msra.mxu0 0.0
    %3180 = vmatprep.subr.mxu0 0.0
    %3181 = vmatpush2.msra.mxu0 0.0
    %3182 = vmatprep.subr.mxu0 0.0
    %3183 = vmatpush2.msra.mxu0 0.0
    %3184 = vmatprep.subr.mxu0 0.0
    %3185 = vmatpush2.msra.mxu0 0.0
    %3186 = vmatprep.subr.mxu0 0.0
    %3187 = vmatpush2.msra.mxu0 0.0
    %3188 = vmatprep.subr.mxu0 0.0
    %3189 = vmatpush2.msra.mxu0 0.0
    %3190 = vmatprep.mubr.f32.mxu0 0.0
    %3191 = vmatmul.mubr.f32.gmra.mxu0 %v3124
    %v3192 = vpop.f32.mrf.mxu0
    %v3193 = vadd.f32 0.0, %v3192
    %v3194 = vpop.f32.mrf.mxu0
    %3195 = vdwg.mxu0
    %3196 = vrot.lane.b32.xlu0 %v2263, 64
    %v3197 = vpop.permute.xlu0 %3196
    %v3200 = vsel %vm394, %v2963, 0
    %3202 = vmatprep.subr.mxu0 0.0
    %3203 = vmatpush1.msra.mxu0 0.0
    %3204 = vmatprep.subr.mxu0 0.0
    %3205 = vmatpush1.msra.mxu0 0.0
    %3206 = vmatprep.subr.mxu0 0.0
    %3207 = vmatpush1.msra.mxu0 0.0
    %3208 = vmatprep.subr.mxu0 0.0
    %3209 = vmatpush1.msra.mxu0 0.0
    %3210 = vmatprep.subr.mxu0 0.0
    %3211 = vmatpush1.msra.mxu0 0.0
    %3212 = vmatprep.subr.mxu0 0.0
    %3213 = vmatpush1.msra.mxu0 0.0
    %3214 = vmatprep.subr.mxu0 0.0
    %3215 = vmatpush1.msra.mxu0 0.0
    %3216 = vmatprep.subr.mxu0 0.0
    %3217 = vmatpush1.msra.mxu0 0.0
    %3218 = vmatprep.subr.mxu0 0.0
    %3219 = vmatpush1.msra.mxu0 0.0
    %3220 = vmatprep.subr.mxu0 0.0
    %3221 = vmatpush1.msra.mxu0 0.0
    %3222 = vmatprep.subr.mxu0 0.0
    %3223 = vmatpush1.msra.mxu0 0.0
    %3224 = vmatprep.subr.mxu0 0.0
    %3225 = vmatpush1.msra.mxu0 0.0
    %3226 = vmatprep.subr.mxu0 0.0
    %3227 = vmatpush1.msra.mxu0 0.0
    %3228 = vmatprep.subr.mxu0 0.0
    %3229 = vmatpush1.msra.mxu0 0.0
    %3230 = vmatprep.subr.mxu0 0.0
    %3231 = vmatpush1.msra.mxu0 0.0
    %3232 = vmatprep.subr.mxu0 0.0
    %3233 = vmatpush1.msra.mxu0 %v3197
    %3234 = vmatprep.subr.mxu0 0.0
    %3235 = vmatpush2.msra.mxu0 0.0
    %3236 = vmatprep.subr.mxu0 0.0
    %3237 = vmatpush2.msra.mxu0 0.0
    %3238 = vmatprep.subr.mxu0 0.0
    %3239 = vmatpush2.msra.mxu0 0.0
    %3240 = vmatprep.subr.mxu0 0.0
    %3241 = vmatpush2.msra.mxu0 0.0
    %3242 = vmatprep.subr.mxu0 0.0
    %3243 = vmatpush2.msra.mxu0 0.0
    %3244 = vmatprep.subr.mxu0 0.0
    %3245 = vmatpush2.msra.mxu0 0.0
    %3246 = vmatprep.subr.mxu0 0.0
    %3247 = vmatpush2.msra.mxu0 0.0
    %3248 = vmatprep.subr.mxu0 0.0
    %3249 = vmatpush2.msra.mxu0 0.0
    %3250 = vmatprep.subr.mxu0 0.0
    %3251 = vmatpush2.msra.mxu0 0.0
    %3252 = vmatprep.subr.mxu0 0.0
    %3253 = vmatpush2.msra.mxu0 0.0
    %3254 = vmatprep.subr.mxu0 0.0
    %3255 = vmatpush2.msra.mxu0 0.0
    %3256 = vmatprep.subr.mxu0 0.0
    %3257 = vmatpush2.msra.mxu0 0.0
    %3258 = vmatprep.subr.mxu0 0.0
    %3259 = vmatpush2.msra.mxu0 0.0
    %3260 = vmatprep.subr.mxu0 0.0
    %3261 = vmatpush2.msra.mxu0 0.0
    %3262 = vmatprep.subr.mxu0 0.0
    %3263 = vmatpush2.msra.mxu0 0.0
    %3264 = vmatprep.subr.mxu0 0.0
    %3265 = vmatpush2.msra.mxu0 0.0
    %3266 = vmatprep.mubr.f32.mxu0 0.0
    %3267 = vmatmul.mubr.f32.gmra.mxu0 %v3200
    %v3268 = vpop.f32.mrf.mxu0
    %v3269 = vadd.f32 0.0, %v3268
    %v3270 = vpop.f32.mrf.mxu0
    %3271 = vdwg.mxu0
    %3272 = vrot.lane.b32.xlu0 %v2265, 64
    %v3273 = vpop.permute.xlu0 %3272
    %v3276 = vsel %vm394, %v2964, 0
    %3278 = vmatprep.subr.mxu0 0.0
    %3279 = vmatpush1.msra.mxu0 0.0
    %3280 = vmatprep.subr.mxu0 0.0
    %3281 = vmatpush1.msra.mxu0 0.0
    %3282 = vmatprep.subr.mxu0 0.0
    %3283 = vmatpush1.msra.mxu0 0.0
    %3284 = vmatprep.subr.mxu0 0.0
    %3285 = vmatpush1.msra.mxu0 0.0
    %3286 = vmatprep.subr.mxu0 0.0
    %3287 = vmatpush1.msra.mxu0 0.0
    %3288 = vmatprep.subr.mxu0 0.0
    %3289 = vmatpush1.msra.mxu0 0.0
    %3290 = vmatprep.subr.mxu0 0.0
    %3291 = vmatpush1.msra.mxu0 0.0
    %3292 = vmatprep.subr.mxu0 0.0
    %3293 = vmatpush1.msra.mxu0 0.0
    %3294 = vmatprep.subr.mxu0 0.0
    %3295 = vmatpush1.msra.mxu0 0.0
    %3296 = vmatprep.subr.mxu0 0.0
    %3297 = vmatpush1.msra.mxu0 0.0
    %3298 = vmatprep.subr.mxu0 0.0
    %3299 = vmatpush1.msra.mxu0 0.0
    %3300 = vmatprep.subr.mxu0 0.0
    %3301 = vmatpush1.msra.mxu0 0.0
    %3302 = vmatprep.subr.mxu0 0.0
    %3303 = vmatpush1.msra.mxu0 0.0
    %3304 = vmatprep.subr.mxu0 0.0
    %3305 = vmatpush1.msra.mxu0 0.0
    %3306 = vmatprep.subr.mxu0 0.0
    %3307 = vmatpush1.msra.mxu0 0.0
    %3308 = vmatprep.subr.mxu0 0.0
    %3309 = vmatpush1.msra.mxu0 %v3273
    %3310 = vmatprep.subr.mxu0 0.0
    %3311 = vmatpush2.msra.mxu0 0.0
    %3312 = vmatprep.subr.mxu0 0.0
    %3313 = vmatpush2.msra.mxu0 0.0
    %3314 = vmatprep.subr.mxu0 0.0
    %3315 = vmatpush2.msra.mxu0 0.0
    %3316 = vmatprep.subr.mxu0 0.0
    %3317 = vmatpush2.msra.mxu0 0.0
    %3318 = vmatprep.subr.mxu0 0.0
    %3319 = vmatpush2.msra.mxu0 0.0
    %3320 = vmatprep.subr.mxu0 0.0
    %3321 = vmatpush2.msra.mxu0 0.0
    %3322 = vmatprep.subr.mxu0 0.0
    %3323 = vmatpush2.msra.mxu0 0.0
    %3324 = vmatprep.subr.mxu0 0.0
    %3325 = vmatpush2.msra.mxu0 0.0
    %3326 = vmatprep.subr.mxu0 0.0
    %3327 = vmatpush2.msra.mxu0 0.0
    %3328 = vmatprep.subr.mxu0 0.0
    %3329 = vmatpush2.msra.mxu0 0.0
    %3330 = vmatprep.subr.mxu0 0.0
    %3331 = vmatpush2.msra.mxu0 0.0
    %3332 = vmatprep.subr.mxu0 0.0
    %3333 = vmatpush2.msra.mxu0 0.0
    %3334 = vmatprep.subr.mxu0 0.0
    %3335 = vmatpush2.msra.mxu0 0.0
    %3336 = vmatprep.subr.mxu0 0.0
    %3337 = vmatpush2.msra.mxu0 0.0
    %3338 = vmatprep.subr.mxu0 0.0
    %3339 = vmatpush2.msra.mxu0 0.0
    %3340 = vmatprep.subr.mxu0 0.0
    %3341 = vmatpush2.msra.mxu0 0.0
    %3342 = vmatprep.mubr.f32.mxu0 0.0
    %3343 = vmatmul.mubr.f32.gmra.mxu0 %v3276
    %v3344 = vpop.f32.mrf.mxu0
    %v3345 = vadd.f32 0.0, %v3344
    %v3346 = vpop.f32.mrf.mxu0
    %3347 = vdwg.mxu0
    %3348 = vrot.lane.b32.xlu0 %v2267, 64
    %v3349 = vpop.permute.xlu0 %3348
    %v3352 = vsel %vm394, %v2965, 0
    %3354 = vmatprep.subr.mxu0 0.0
    %3355 = vmatpush1.msra.mxu0 0.0
    %3356 = vmatprep.subr.mxu0 0.0
    %3357 = vmatpush1.msra.mxu0 0.0
    %3358 = vmatprep.subr.mxu0 0.0
    %3359 = vmatpush1.msra.mxu0 0.0
    %3360 = vmatprep.subr.mxu0 0.0
    %3361 = vmatpush1.msra.mxu0 0.0
    %3362 = vmatprep.subr.mxu0 0.0
    %3363 = vmatpush1.msra.mxu0 0.0
    %3364 = vmatprep.subr.mxu0 0.0
    %3365 = vmatpush1.msra.mxu0 0.0
    %3366 = vmatprep.subr.mxu0 0.0
    %3367 = vmatpush1.msra.mxu0 0.0
    %3368 = vmatprep.subr.mxu0 0.0
    %3369 = vmatpush1.msra.mxu0 0.0
    %3370 = vmatprep.subr.mxu0 0.0
    %3371 = vmatpush1.msra.mxu0 0.0
    %3372 = vmatprep.subr.mxu0 0.0
    %3373 = vmatpush1.msra.mxu0 0.0
    %3374 = vmatprep.subr.mxu0 0.0
    %3375 = vmatpush1.msra.mxu0 0.0
    %3376 = vmatprep.subr.mxu0 0.0
    %3377 = vmatpush1.msra.mxu0 0.0
    %3378 = vmatprep.subr.mxu0 0.0
    %3379 = vmatpush1.msra.mxu0 0.0
    %3380 = vmatprep.subr.mxu0 0.0
    %3381 = vmatpush1.msra.mxu0 0.0
    %3382 = vmatprep.subr.mxu0 0.0
    %3383 = vmatpush1.msra.mxu0 0.0
    %3384 = vmatprep.subr.mxu0 0.0
    %3385 = vmatpush1.msra.mxu0 %v3349
    %3386 = vmatprep.subr.mxu0 0.0
    %3387 = vmatpush2.msra.mxu0 0.0
    %3388 = vmatprep.subr.mxu0 0.0
    %3389 = vmatpush2.msra.mxu0 0.0
    %3390 = vmatprep.subr.mxu0 0.0
    %3391 = vmatpush2.msra.mxu0 0.0
    %3392 = vmatprep.subr.mxu0 0.0
    %3393 = vmatpush2.msra.mxu0 0.0
    %3394 = vmatprep.subr.mxu0 0.0
    %3395 = vmatpush2.msra.mxu0 0.0
    %3396 = vmatprep.subr.mxu0 0.0
    %3397 = vmatpush2.msra.mxu0 0.0
    %3398 = vmatprep.subr.mxu0 0.0
    %3399 = vmatpush2.msra.mxu0 0.0
    %3400 = vmatprep.subr.mxu0 0.0
    %3401 = vmatpush2.msra.mxu0 0.0
    %3402 = vmatprep.subr.mxu0 0.0
    %3403 = vmatpush2.msra.mxu0 0.0
    %3404 = vmatprep.subr.mxu0 0.0
    %3405 = vmatpush2.msra.mxu0 0.0
    %3406 = vmatprep.subr.mxu0 0.0
    %3407 = vmatpush2.msra.mxu0 0.0
    %3408 = vmatprep.subr.mxu0 0.0
    %3409 = vmatpush2.msra.mxu0 0.0
    %3410 = vmatprep.subr.mxu0 0.0
    %3411 = vmatpush2.msra.mxu0 0.0
    %3412 = vmatprep.subr.mxu0 0.0
    %3413 = vmatpush2.msra.mxu0 0.0
    %3414 = vmatprep.subr.mxu0 0.0
    %3415 = vmatpush2.msra.mxu0 0.0
    %3416 = vmatprep.subr.mxu0 0.0
    %3417 = vmatpush2.msra.mxu0 0.0
    %3418 = vmatprep.mubr.f32.mxu0 0.0
    %3419 = vmatmul.mubr.f32.gmra.mxu0 %v3352
    %v3420 = vpop.f32.mrf.mxu0
    %v3421 = vadd.f32 0.0, %v3420
    %v3422 = vpop.f32.mrf.mxu0
    %3423 = vdwg.mxu0
    %3424 = vrot.lane.b32.xlu0 %v2269, 64
    %v3425 = vpop.permute.xlu0 %3424
    %v3428 = vsel %vm394, %v2966, 0
    %3430 = vmatprep.subr.mxu0 0.0
    %3431 = vmatpush1.msra.mxu0 0.0
    %3432 = vmatprep.subr.mxu0 0.0
    %3433 = vmatpush1.msra.mxu0 0.0
    %3434 = vmatprep.subr.mxu0 0.0
    %3435 = vmatpush1.msra.mxu0 0.0
    %3436 = vmatprep.subr.mxu0 0.0
    %3437 = vmatpush1.msra.mxu0 0.0
    %3438 = vmatprep.subr.mxu0 0.0
    %3439 = vmatpush1.msra.mxu0 0.0
    %3440 = vmatprep.subr.mxu0 0.0
    %3441 = vmatpush1.msra.mxu0 0.0
    %3442 = vmatprep.subr.mxu0 0.0
    %3443 = vmatpush1.msra.mxu0 0.0
    %3444 = vmatprep.subr.mxu0 0.0
    %3445 = vmatpush1.msra.mxu0 0.0
    %3446 = vmatprep.subr.mxu0 0.0
    %3447 = vmatpush1.msra.mxu0 0.0
    %3448 = vmatprep.subr.mxu0 0.0
    %3449 = vmatpush1.msra.mxu0 0.0
    %3450 = vmatprep.subr.mxu0 0.0
    %3451 = vmatpush1.msra.mxu0 0.0
    %3452 = vmatprep.subr.mxu0 0.0
    %3453 = vmatpush1.msra.mxu0 0.0
    %3454 = vmatprep.subr.mxu0 0.0
    %3455 = vmatpush1.msra.mxu0 0.0
    %3456 = vmatprep.subr.mxu0 0.0
    %3457 = vmatpush1.msra.mxu0 0.0
    %3458 = vmatprep.subr.mxu0 0.0
    %3459 = vmatpush1.msra.mxu0 0.0
    %3460 = vmatprep.subr.mxu0 0.0
    %3461 = vmatpush1.msra.mxu0 %v3425
    %3462 = vmatprep.subr.mxu0 0.0
    %3463 = vmatpush2.msra.mxu0 0.0
    %3464 = vmatprep.subr.mxu0 0.0
    %3465 = vmatpush2.msra.mxu0 0.0
    %3466 = vmatprep.subr.mxu0 0.0
    %3467 = vmatpush2.msra.mxu0 0.0
    %3468 = vmatprep.subr.mxu0 0.0
    %3469 = vmatpush2.msra.mxu0 0.0
    %3470 = vmatprep.subr.mxu0 0.0
    %3471 = vmatpush2.msra.mxu0 0.0
    %3472 = vmatprep.subr.mxu0 0.0
    %3473 = vmatpush2.msra.mxu0 0.0
    %3474 = vmatprep.subr.mxu0 0.0
    %3475 = vmatpush2.msra.mxu0 0.0
    %3476 = vmatprep.subr.mxu0 0.0
    %3477 = vmatpush2.msra.mxu0 0.0
    %3478 = vmatprep.subr.mxu0 0.0
    %3479 = vmatpush2.msra.mxu0 0.0
    %3480 = vmatprep.subr.mxu0 0.0
    %3481 = vmatpush2.msra.mxu0 0.0
    %3482 = vmatprep.subr.mxu0 0.0
    %3483 = vmatpush2.msra.mxu0 0.0
    %3484 = vmatprep.subr.mxu0 0.0
    %3485 = vmatpush2.msra.mxu0 0.0
    %3486 = vmatprep.subr.mxu0 0.0
    %3487 = vmatpush2.msra.mxu0 0.0
    %3488 = vmatprep.subr.mxu0 0.0
    %3489 = vmatpush2.msra.mxu0 0.0
    %3490 = vmatprep.subr.mxu0 0.0
    %3491 = vmatpush2.msra.mxu0 0.0
    %3492 = vmatprep.subr.mxu0 0.0
    %3493 = vmatpush2.msra.mxu0 0.0
    %3494 = vmatprep.mubr.f32.mxu0 0.0
    %3495 = vmatmul.mubr.f32.gmra.mxu0 %v3428
    %v3496 = vpop.f32.mrf.mxu0
    %v3497 = vadd.f32 0.0, %v3496
    %v3498 = vpop.f32.mrf.mxu0
    %3499 = vdwg.mxu0
    %3500 = vrot.lane.b32.xlu0 %v2271, 64
    %v3501 = vpop.permute.xlu0 %3500
    %v3504 = vsel %vm394, %v2967, 0
    %3506 = vmatprep.subr.mxu0 0.0
    %3507 = vmatpush1.msra.mxu0 0.0
    %3508 = vmatprep.subr.mxu0 0.0
    %3509 = vmatpush1.msra.mxu0 0.0
    %3510 = vmatprep.subr.mxu0 0.0
    %3511 = vmatpush1.msra.mxu0 0.0
    %3512 = vmatprep.subr.mxu0 0.0
    %3513 = vmatpush1.msra.mxu0 0.0
    %3514 = vmatprep.subr.mxu0 0.0
    %3515 = vmatpush1.msra.mxu0 0.0
    %3516 = vmatprep.subr.mxu0 0.0
    %3517 = vmatpush1.msra.mxu0 0.0
    %3518 = vmatprep.subr.mxu0 0.0
    %3519 = vmatpush1.msra.mxu0 0.0
    %3520 = vmatprep.subr.mxu0 0.0
    %3521 = vmatpush1.msra.mxu0 0.0
    %3522 = vmatprep.subr.mxu0 0.0
    %3523 = vmatpush1.msra.mxu0 0.0
    %3524 = vmatprep.subr.mxu0 0.0
    %3525 = vmatpush1.msra.mxu0 0.0
    %3526 = vmatprep.subr.mxu0 0.0
    %3527 = vmatpush1.msra.mxu0 0.0
    %3528 = vmatprep.subr.mxu0 0.0
    %3529 = vmatpush1.msra.mxu0 0.0
    %3530 = vmatprep.subr.mxu0 0.0
    %3531 = vmatpush1.msra.mxu0 0.0
    %3532 = vmatprep.subr.mxu0 0.0
    %3533 = vmatpush1.msra.mxu0 0.0
    %3534 = vmatprep.subr.mxu0 0.0
    %3535 = vmatpush1.msra.mxu0 0.0
    %3536 = vmatprep.subr.mxu0 0.0
    %3537 = vmatpush1.msra.mxu0 %v3501
    %3538 = vmatprep.subr.mxu0 0.0
    %3539 = vmatpush2.msra.mxu0 0.0
    %3540 = vmatprep.subr.mxu0 0.0
    %3541 = vmatpush2.msra.mxu0 0.0
    %3542 = vmatprep.subr.mxu0 0.0
    %3543 = vmatpush2.msra.mxu0 0.0
    %3544 = vmatprep.subr.mxu0 0.0
    %3545 = vmatpush2.msra.mxu0 0.0
    %3546 = vmatprep.subr.mxu0 0.0
    %3547 = vmatpush2.msra.mxu0 0.0
    %3548 = vmatprep.subr.mxu0 0.0
    %3549 = vmatpush2.msra.mxu0 0.0
    %3550 = vmatprep.subr.mxu0 0.0
    %3551 = vmatpush2.msra.mxu0 0.0
    %3552 = vmatprep.subr.mxu0 0.0
    %3553 = vmatpush2.msra.mxu0 0.0
    %3554 = vmatprep.subr.mxu0 0.0
    %3555 = vmatpush2.msra.mxu0 0.0
    %3556 = vmatprep.subr.mxu0 0.0
    %3557 = vmatpush2.msra.mxu0 0.0
    %3558 = vmatprep.subr.mxu0 0.0
    %3559 = vmatpush2.msra.mxu0 0.0
    %3560 = vmatprep.subr.mxu0 0.0
    %3561 = vmatpush2.msra.mxu0 0.0
    %3562 = vmatprep.subr.mxu0 0.0
    %3563 = vmatpush2.msra.mxu0 0.0
    %3564 = vmatprep.subr.mxu0 0.0
    %3565 = vmatpush2.msra.mxu0 0.0
    %3566 = vmatprep.subr.mxu0 0.0
    %3567 = vmatpush2.msra.mxu0 0.0
    %3568 = vmatprep.subr.mxu0 0.0
    %3569 = vmatpush2.msra.mxu0 0.0
    %3570 = vmatprep.mubr.f32.mxu0 0.0
    %3571 = vmatmul.mubr.f32.gmra.mxu0 %v3504
    %v3572 = vpop.f32.mrf.mxu0
    %v3573 = vadd.f32 0.0, %v3572
    %v3574 = vpop.f32.mrf.mxu0
    %3575 = vdwg.mxu0
    %3576 = vst.msk [vmem:[#allocation2] sm:$0xff] %vm394, %v3041
    %3577 = vst.msk [vmem:[#allocation2 + $0x8] sm:$0xff] %vm394, %v3117
    %3580 = vrot.lane.b32.xlu0 %v3193, 8
    %v3581 = vpop.permute.xlu0 %3580
    %3582 = vrot.lane.b32.xlu0 %v3269, 8
    %v3583 = vpop.permute.xlu0 %3582
    %3586 = vst.msk [vmem:[#allocation2] sm:$0xff] %vm1707, %v3581
    %3587 = vst.msk [vmem:[#allocation2 + $0x8] sm:$0xff] %vm1707, %v3583
    %3590 = vrot.lane.b32.xlu0 %v3345, 16
    %v3591 = vpop.permute.xlu0 %3590
    %3592 = vrot.lane.b32.xlu0 %v3421, 16
    %v3593 = vpop.permute.xlu0 %3592
    %3596 = vst.msk [vmem:[#allocation2] sm:$0xff] %vm1718, %v3591
    %3597 = vst.msk [vmem:[#allocation2 + $0x8] sm:$0xff] %vm1718, %v3593
    %3600 = vrot.lane.b32.xlu0 %v3497, 24
    %v3601 = vpop.permute.xlu0 %3600
    %3602 = vrot.lane.b32.xlu0 %v3573, 24
    %v3603 = vpop.permute.xlu0 %3602
    %3606 = vst.msk [vmem:[#allocation2] sm:$0xff] %vm1729, %v3601
    %3607 = vst.msk [vmem:[#allocation2 + $0x8] sm:$0xff] %vm1729, %v3603
    %v3608 = vld [vmem:[#allocation2] sm:$0xff]
    %v3609 = vld [vmem:[#allocation2 + $0x8] sm:$0xff]
    %s3610 = scalar_lea.vmem %s7, 16
    %v3611 = vld [vmem:[%s3610] sm:$0xf]
    %v3612 = vld [vmem:[%s3610 + $0x4] sm:$0xf]
    %v3613 = vld [vmem:[%s3610 + $0x8] sm:$0xf]
    %v3614 = vld [vmem:[%s3610 + $0xc] sm:$0xf]
    %v3615 = vunpack.c.l.bf16 %v3611
    %v3616 = vunpack.c.l.bf16 %v3612
    %v3617 = vunpack.c.l.bf16 %v3613
    %v3618 = vunpack.c.l.bf16 %v3614
    %s3619 = scalar_lea.vmem %s8, 1
    %v3620 = vld [vmem:[%s3619] sm:$0x1]
    %v3622 = vlaneseq
    %v3623 = vshrl.u32 %v3622, 7
    %v3624 = vsub.s32 0, %v3623
    %v3625 = vrot.slane %v3620, %v3624
    %v3628 = vsel %vm229, %v3608, 0
    %v3631 = vsel %vm229, %v3609, 0
    %3633 = vmatprep.subr.mxu0 0.0
    %3634 = vmatpush1.msra.mxu0 0.0
    %3635 = vmatprep.subr.mxu0 0.0
    %3636 = vmatpush1.msra.mxu0 0.0
    %3637 = vmatprep.subr.mxu0 0.0
    %3638 = vmatpush1.msra.mxu0 0.0
    %3639 = vmatprep.subr.mxu0 0.0
    %3640 = vmatpush1.msra.mxu0 0.0
    %3641 = vmatprep.subr.mxu0 0.0
    %3642 = vmatpush1.msra.mxu0 0.0
    %3643 = vmatprep.subr.mxu0 0.0
    %3644 = vmatpush1.msra.mxu0 0.0
    %3645 = vmatprep.subr.mxu0 0.0
    %3646 = vmatpush1.msra.mxu0 0.0
    %3647 = vmatprep.subr.mxu0 0.0
    %3648 = vmatpush1.msra.mxu0 0.0
    %3649 = vmatprep.subr.mxu0 0.0
    %3650 = vmatpush1.msra.mxu0 0.0
    %3651 = vmatprep.subr.mxu0 0.0
    %3652 = vmatpush1.msra.mxu0 0.0
    %3653 = vmatprep.subr.mxu0 0.0
    %3654 = vmatpush1.msra.mxu0 0.0
    %3655 = vmatprep.subr.mxu0 0.0
    %3656 = vmatpush1.msra.mxu0 0.0
    %3657 = vmatprep.subr.mxu0 0.0
    %3658 = vmatpush1.msra.mxu0 %v3618
    %3659 = vmatprep.subr.mxu0 0.0
    %3660 = vmatpush1.msra.mxu0 %v3617
    %3661 = vmatprep.subr.mxu0 0.0
    %3662 = vmatpush1.msra.mxu0 %v3616
    %3663 = vmatprep.subr.mxu0 0.0
    %3664 = vmatpush1.msra.mxu0 %v3615
    %3665 = vmatprep.subr.mxu0 0.0
    %3666 = vmatpush2.msra.mxu0 0.0
    %3667 = vmatprep.subr.mxu0 0.0
    %3668 = vmatpush2.msra.mxu0 0.0
    %3669 = vmatprep.subr.mxu0 0.0
    %3670 = vmatpush2.msra.mxu0 0.0
    %3671 = vmatprep.subr.mxu0 0.0
    %3672 = vmatpush2.msra.mxu0 0.0
    %3673 = vmatprep.subr.mxu0 0.0
    %3674 = vmatpush2.msra.mxu0 0.0
    %3675 = vmatprep.subr.mxu0 0.0
    %3676 = vmatpush2.msra.mxu0 0.0
    %3677 = vmatprep.subr.mxu0 0.0
    %3678 = vmatpush2.msra.mxu0 0.0
    %3679 = vmatprep.subr.mxu0 0.0
    %3680 = vmatpush2.msra.mxu0 0.0
    %3681 = vmatprep.subr.mxu0 0.0
    %3682 = vmatpush2.msra.mxu0 0.0
    %3683 = vmatprep.subr.mxu0 0.0
    %3684 = vmatpush2.msra.mxu0 0.0
    %3685 = vmatprep.subr.mxu0 0.0
    %3686 = vmatpush2.msra.mxu0 0.0
    %3687 = vmatprep.subr.mxu0 0.0
    %3688 = vmatpush2.msra.mxu0 0.0
    %3689 = vmatprep.subr.mxu0 0.0
    %3690 = vmatpush2.msra.mxu0 0.0
    %3691 = vmatprep.subr.mxu0 0.0
    %3692 = vmatpush2.msra.mxu0 0.0
    %3693 = vmatprep.subr.mxu0 0.0
    %3694 = vmatpush2.msra.mxu0 0.0
    %3695 = vmatprep.subr.mxu0 0.0
    %3696 = vmatpush2.msra.mxu0 0.0
    %3697 = vmatprep.mubr.f32.mxu0 0.0
    %3698 = vmatmul.mubr.f32.gmra.mxu0 %v3628
    %v3699 = vpop.f32.mrf.mxu0
    %v3700 = vadd.f32 %v3625, %v3699
    %v3701 = vpop.f32.mrf.mxu0
    %3702 = vmatprep.mubr.f32.mxu0 0.0
    %3703 = vmatmul.mubr.f32.gmra.mxu0 %v3631
    %v3704 = vpop.f32.mrf.mxu0
    %v3705 = vadd.f32 %v3625, %v3704
    %v3706 = vpop.f32.mrf.mxu0
    %3707 = vdwg.mxu0
    %v3708 = vadd.f32 %v2104, %v3700
    %v3709 = vadd.f32 %v2105, %v3705
    %s3710 = scalar_lea.vmem %s9, 1
    %v3711 = vld [vmem:[%s3710] sm:$0x1]
    %s3712 = scalar_lea.vmem %s10, 1
    %v3713 = vld [vmem:[%s3712] sm:$0x1]
    %v3714 = vsel %vm229, %v3708, 0.0
    %3715 = vadd.xlane.f32.xlu0 %v3714
    %v3716 = vpop.xlane.xlu0 %3715
    %v3717 = vsel %vm229, %v3709, 0.0
    %3718 = vadd.xlane.f32.xlu0 %v3717
    %v3719 = vpop.xlane.xlu0 %3718
    %v3720 = vmul.f32 %v3716, %v236
    %v3721 = vmul.f32 %v3719, %v236
    %v3722 = vsub.f32 %v3708, %v3720
    %v3723 = vsub.f32 %v3709, %v3721
    %v3724 = vmul.f32 %v3722, %v3722
    %v3725 = vmul.f32 %v3723, %v3723
    %v3726 = vsel %vm229, %v3724, 0.0
    %3727 = vadd.xlane.f32.xlu0 %v3726
    %v3728 = vpop.xlane.xlu0 %3727
    %v3729 = vsel %vm229, %v3725, 0.0
    %3730 = vadd.xlane.f32.xlu0 %v3729
    %v3731 = vpop.xlane.xlu0 %3730
    %v3732 = vmul.f32 %v3728, %v236
    %v3733 = vmul.f32 %v3731, %v236
    %v3734 = vadd.f32 %v3732, 1e-05
    %v3735 = vadd.f32 %v3733, 1e-05
    %v3736 = vrsqrt.pop %v3734
    %v3737 = vrsqrt.pop %v3735
    %v3738 = vmul.f32 %v3722, %v3736
    %v3739 = vmul.f32 %v3723, %v3737
    %v3741 = vlaneseq
    %v3742 = vshrl.u32 %v3741, 7
    %v3743 = vsub.s32 0, %v3742
    %v3744 = vrot.slane %v3711, %v3743
    %v3746 = vmul.f32 %v3744, %v3738
    %v3747 = vmul.f32 %v3744, %v3739
    %v3749 = vlaneseq
    %v3750 = vshrl.u32 %v3749, 7
    %v3751 = vsub.s32 0, %v3750
    %v3752 = vrot.slane %v3713, %v3751
    %v3754 = vadd.f32 %v3746, %v3752
    %v3755 = vadd.f32 %v3747, %v3752
    %s3756 = scalar_lea.vmem %s11, 16
    %v3757 = vld [vmem:[%s3756] sm:$0xf]
    %v3758 = vld [vmem:[%s3756 + $0x4] sm:$0xf]
    %v3759 = vld [vmem:[%s3756 + $0x8] sm:$0xf]
    %v3760 = vld [vmem:[%s3756 + $0xc] sm:$0xf]
    %v3761 = vunpack.c.l.bf16 %v3757
    %v3762 = vunpack.c.l.bf16 %v3758
    %v3763 = vunpack.c.l.bf16 %v3759
    %v3764 = vunpack.c.l.bf16 %v3760
    %s3765 = scalar_lea.vmem %s12, 1
    %v3766 = vld [vmem:[%s3765] sm:$0x1]
    %v3768 = vlaneseq
    %v3769 = vshrl.u32 %v3768, 7
    %v3770 = vsub.s32 0, %v3769
    %v3771 = vrot.slane %v3766, %v3770
    %v3774 = vsel %vm229, %v3754, 0
    %v3777 = vsel %vm229, %v3755, 0
    %3779 = vmatprep.subr.mxu0 0.0
    %3780 = vmatpush1.msra.mxu0 0.0
    %3781 = vmatprep.subr.mxu0 0.0
    %3782 = vmatpush1.msra.mxu0 0.0
    %3783 = vmatprep.subr.mxu0 0.0
    %3784 = vmatpush1.msra.mxu0 0.0
    %3785 = vmatprep.subr.mxu0 0.0
    %3786 = vmatpush1.msra.mxu0 0.0
    %3787 = vmatprep.subr.mxu0 0.0
    %3788 = vmatpush1.msra.mxu0 0.0
    %3789 = vmatprep.subr.mxu0 0.0
    %3790 = vmatpush1.msra.mxu0 0.0
    %3791 = vmatprep.subr.mxu0 0.0
    %3792 = vmatpush1.msra.mxu0 0.0
    %3793 = vmatprep.subr.mxu0 0.0
    %3794 = vmatpush1.msra.mxu0 0.0
    %3795 = vmatprep.subr.mxu0 0.0
    %3796 = vmatpush1.msra.mxu0 0.0
    %3797 = vmatprep.subr.mxu0 0.0
    %3798 = vmatpush1.msra.mxu0 0.0
    %3799 = vmatprep.subr.mxu0 0.0
    %3800 = vmatpush1.msra.mxu0 0.0
    %3801 = vmatprep.subr.mxu0 0.0
    %3802 = vmatpush1.msra.mxu0 0.0
    %3803 = vmatprep.subr.mxu0 0.0
    %3804 = vmatpush1.msra.mxu0 %v3764
    %3805 = vmatprep.subr.mxu0 0.0
    %3806 = vmatpush1.msra.mxu0 %v3763
    %3807 = vmatprep.subr.mxu0 0.0
    %3808 = vmatpush1.msra.mxu0 %v3762
    %3809 = vmatprep.subr.mxu0 0.0
    %3810 = vmatpush1.msra.mxu0 %v3761
    %3811 = vmatprep.subr.mxu0 0.0
    %3812 = vmatpush2.msra.mxu0 0.0
    %3813 = vmatprep.subr.mxu0 0.0
    %3814 = vmatpush2.msra.mxu0 0.0
    %3815 = vmatprep.subr.mxu0 0.0
    %3816 = vmatpush2.msra.mxu0 0.0
    %3817 = vmatprep.subr.mxu0 0.0
    %3818 = vmatpush2.msra.mxu0 0.0
    %3819 = vmatprep.subr.mxu0 0.0
    %3820 = vmatpush2.msra.mxu0 0.0
    %3821 = vmatprep.subr.mxu0 0.0
    %3822 = vmatpush2.msra.mxu0 0.0
    %3823 = vmatprep.subr.mxu0 0.0
    %3824 = vmatpush2.msra.mxu0 0.0
    %3825 = vmatprep.subr.mxu0 0.0
    %3826 = vmatpush2.msra.mxu0 0.0
    %3827 = vmatprep.subr.mxu0 0.0
    %3828 = vmatpush2.msra.mxu0 0.0
    %3829 = vmatprep.subr.mxu0 0.0
    %3830 = vmatpush2.msra.mxu0 0.0
    %3831 = vmatprep.subr.mxu0 0.0
    %3832 = vmatpush2.msra.mxu0 0.0
    %3833 = vmatprep.subr.mxu0 0.0
    %3834 = vmatpush2.msra.mxu0 0.0
    %3835 = vmatprep.subr.mxu0 0.0
    %3836 = vmatpush2.msra.mxu0 0.0
    %3837 = vmatprep.subr.mxu0 0.0
    %3838 = vmatpush2.msra.mxu0 0.0
    %3839 = vmatprep.subr.mxu0 0.0
    %3840 = vmatpush2.msra.mxu0 0.0
    %3841 = vmatprep.subr.mxu0 0.0
    %3842 = vmatpush2.msra.mxu0 0.0
    %3843 = vmatprep.mubr.f32.mxu0 0.0
    %3844 = vmatmul.mubr.f32.gmra.mxu0 %v3774
    %v3845 = vpop.f32.mrf.mxu0
    %v3846 = vadd.f32 %v3771, %v3845
    %v3847 = vpop.f32.mrf.mxu0
    %3848 = vmatprep.mubr.f32.mxu0 0.0
    %3849 = vmatmul.mubr.f32.gmra.mxu0 %v3777
    %v3850 = vpop.f32.mrf.mxu0
    %v3851 = vadd.f32 %v3771, %v3850
    %v3852 = vpop.f32.mrf.mxu0
    %3853 = vdwg.mxu0
    %v3854 = vmul.f32 %v3846, 0.5
    %v3855 = vmul.f32 %v3851, 0.5
    %v3856 = vmul.f32 %v3846, %v3846
    %v3857 = vmul.f32 %v3851, %v3851
    %v3858 = vmul.f32 %v3846, %v3856
    %v3859 = vmul.f32 %v3851, %v3857
    %v3860 = vmul.f32 %v3858, 0.044715
    %v3861 = vmul.f32 %v3859, 0.044715
    %v3862 = vadd.f32 %v3846, %v3860
    %v3863 = vadd.f32 %v3851, %v3861
    %v3864 = vmul.f32 %v3862, 0.7978846
    %v3865 = vmul.f32 %v3863, 0.7978846
    %v3866 = vtanh.pop %v3864
    %v3867 = vtanh.pop %v3865
    %v3868 = vadd.f32 %v3866, 1.0
    %v3869 = vadd.f32 %v3867, 1.0
    %v3870 = vmul.f32 %v3854, %v3868
    %v3871 = vmul.f32 %v3855, %v3869
    %s3872 = scalar_lea.vmem %s13, 64
    %v3873 = vld [vmem:[%s3872] sm:$0xf]
    %v3874 = vld [vmem:[%s3872 + $0x4] sm:$0xf]
    %v3875 = vld [vmem:[%s3872 + $0x8] sm:$0xf]
    %v3876 = vld [vmem:[%s3872 + $0xc] sm:$0xf]
    %v3877 = vld [vmem:[%s3872 + $0x10] sm:$0xf]
    %v3878 = vld [vmem:[%s3872 + $0x14] sm:$0xf]
    %v3879 = vld [vmem:[%s3872 + $0x18] sm:$0xf]
    %v3880 = vld [vmem:[%s3872 + $0x1c] sm:$0xf]
    %v3881 = vld [vmem:[%s3872 + $0x20] sm:$0xf]
    %v3882 = vld [vmem:[%s3872 + $0x24] sm:$0xf]
    %v3883 = vld [vmem:[%s3872 + $0x28] sm:$0xf]
    %v3884 = vld [vmem:[%s3872 + $0x2c] sm:$0xf]
    %v3885 = vld [vmem:[%s3872 + $0x30] sm:$0xf]
    %v3886 = vld [vmem:[%s3872 + $0x34] sm:$0xf]
    %v3887 = vld [vmem:[%s3872 + $0x38] sm:$0xf]
    %v3888 = vld [vmem:[%s3872 + $0x3c] sm:$0xf]
    %v3889 = vunpack.c.l.bf16 %v3873
    %v3890 = vunpack.c.l.bf16 %v3874
    %v3891 = vunpack.c.l.bf16 %v3875
    %v3892 = vunpack.c.l.bf16 %v3876
    %v3893 = vunpack.c.l.bf16 %v3877
    %v3894 = vunpack.c.l.bf16 %v3878
    %v3895 = vunpack.c.l.bf16 %v3879
    %v3896 = vunpack.c.l.bf16 %v3880
    %v3897 = vunpack.c.l.bf16 %v3881
    %v3898 = vunpack.c.l.bf16 %v3882
    %v3899 = vunpack.c.l.bf16 %v3883
    %v3900 = vunpack.c.l.bf16 %v3884
    %v3901 = vunpack.c.l.bf16 %v3885
    %v3902 = vunpack.c.l.bf16 %v3886
    %v3903 = vunpack.c.l.bf16 %v3887
    %v3904 = vunpack.c.l.bf16 %v3888
    %s3905 = scalar_lea.vmem %s14, 1
    %v3906 = vld [vmem:[%s3905] sm:$0x1]
    %v3908 = vlaneseq
    %v3909 = vshrl.u32 %v3908, 7
    %v3910 = vsub.s32 0, %v3909
    %v3911 = vrot.slane %v3906, %v3910
    %3913 = vmatprep.subr.mxu0 0.0
    %3914 = vmatpush1.msra.mxu0 %v3904
    %3915 = vmatprep.subr.mxu0 0.0
    %3916 = vmatpush1.msra.mxu0 %v3903
    %3917 = vmatprep.subr.mxu0 0.0
    %3918 = vmatpush1.msra.mxu0 %v3902
    %3919 = vmatprep.subr.mxu0 0.0
    %3920 = vmatpush1.msra.mxu0 %v3901
    %3921 = vmatprep.subr.mxu0 0.0
    %3922 = vmatpush1.msra.mxu0 %v3900
    %3923 = vmatprep.subr.mxu0 0.0
    %3924 = vmatpush1.msra.mxu0 %v3899
    %3925 = vmatprep.subr.mxu0 0.0
    %3926 = vmatpush1.msra.mxu0 %v3898
    %3927 = vmatprep.subr.mxu0 0.0
    %3928 = vmatpush1.msra.mxu0 %v3897
    %3929 = vmatprep.subr.mxu0 0.0
    %3930 = vmatpush1.msra.mxu0 %v3896
    %3931 = vmatprep.subr.mxu0 0.0
    %3932 = vmatpush1.msra.mxu0 %v3895
    %3933 = vmatprep.subr.mxu0 0.0
    %3934 = vmatpush1.msra.mxu0 %v3894
    %3935 = vmatprep.subr.mxu0 0.0
    %3936 = vmatpush1.msra.mxu0 %v3893
    %3937 = vmatprep.subr.mxu0 0.0
    %3938 = vmatpush1.msra.mxu0 %v3892
    %3939 = vmatprep.subr.mxu0 0.0
    %3940 = vmatpush1.msra.mxu0 %v3891
    %3941 = vmatprep.subr.mxu0 0.0
    %3942 = vmatpush1.msra.mxu0 %v3890
    %3943 = vmatprep.subr.mxu0 0.0
    %3944 = vmatpush1.msra.mxu0 %v3889
    %3945 = vmatprep.subr.mxu0 0.0
    %3946 = vmatpush2.msra.mxu0 0.0
    %3947 = vmatprep.subr.mxu0 0.0
    %3948 = vmatpush2.msra.mxu0 0.0
    %3949 = vmatprep.subr.mxu0 0.0
    %3950 = vmatpush2.msra.mxu0 0.0
    %3951 = vmatprep.subr.mxu0 0.0
    %3952 = vmatpush2.msra.mxu0 0.0
    %3953 = vmatprep.subr.mxu0 0.0
    %3954 = vmatpush2.msra.mxu0 0.0
    %3955 = vmatprep.subr.mxu0 0.0
    %3956 = vmatpush2.msra.mxu0 0.0
    %3957 = vmatprep.subr.mxu0 0.0
    %3958 = vmatpush2.msra.mxu0 0.0
    %3959 = vmatprep.subr.mxu0 0.0
    %3960 = vmatpush2.msra.mxu0 0.0
    %3961 = vmatprep.subr.mxu0 0.0
    %3962 = vmatpush2.msra.mxu0 0.0
    %3963 = vmatprep.subr.mxu0 0.0
    %3964 = vmatpush2.msra.mxu0 0.0
    %3965 = vmatprep.subr.mxu0 0.0
    %3966 = vmatpush2.msra.mxu0 0.0
    %3967 = vmatprep.subr.mxu0 0.0
    %3968 = vmatpush2.msra.mxu0 0.0
    %3969 = vmatprep.subr.mxu0 0.0
    %3970 = vmatpush2.msra.mxu0 0.0
    %3971 = vmatprep.subr.mxu0 0.0
    %3972 = vmatpush2.msra.mxu0 0.0
    %3973 = vmatprep.subr.mxu0 0.0
    %3974 = vmatpush2.msra.mxu0 0.0
    %3975 = vmatprep.subr.mxu0 0.0
    %3976 = vmatpush2.msra.mxu0 0.0
    %3977 = vmatprep.mubr.f32.mxu0 0.0
    %3978 = vmatmul.mubr.f32.gmra.mxu0 %v3870
    %v3979 = vpop.f32.mrf.mxu0
    %v3980 = vadd.f32 %v3911, %v3979
    %v3981 = vpop.f32.mrf.mxu0
    %3982 = vmatprep.mubr.f32.mxu0 0.0
    %3983 = vmatmul.mubr.f32.gmra.mxu0 %v3871
    %v3984 = vpop.f32.mrf.mxu0
    %v3985 = vadd.f32 %v3911, %v3984
    %v3986 = vpop.f32.mrf.mxu0
    %3987 = vdwg.mxu0
    %v3988 = vadd.f32 %v3708, %v3980
    %v3989 = vadd.f32 %v3709, %v3985
    %v3990 = vld [vmem:[%s15] sm:$0x1]
    %v3991 = vld [vmem:[%s16] sm:$0x1]
    %v3992 = vsel %vm229, %v3988, 0.0
    %3993 = vadd.xlane.f32.xlu0 %v3992
    %v3994 = vpop.xlane.xlu0 %3993
    %v3995 = vsel %vm229, %v3989, 0.0
    %3996 = vadd.xlane.f32.xlu0 %v3995
    %v3997 = vpop.xlane.xlu0 %3996
    %v3998 = vmul.f32 %v3994, %v236
    %v3999 = vmul.f32 %v3997, %v236
    %v4000 = vsub.f32 %v3988, %v3998
    %v4001 = vsub.f32 %v3989, %v3999
    %v4002 = vmul.f32 %v4000, %v4000
    %v4003 = vmul.f32 %v4001, %v4001
    %v4004 = vsel %vm229, %v4002, 0.0
    %4005 = vadd.xlane.f32.xlu0 %v4004
    %v4006 = vpop.xlane.xlu0 %4005
    %v4007 = vsel %vm229, %v4003, 0.0
    %4008 = vadd.xlane.f32.xlu0 %v4007
    %v4009 = vpop.xlane.xlu0 %4008
    %v4010 = vmul.f32 %v4006, %v236
    %v4011 = vmul.f32 %v4009, %v236
    %v4012 = vadd.f32 %v4010, 1e-05
    %v4013 = vadd.f32 %v4011, 1e-05
    %v4014 = vrsqrt.pop %v4012
    %v4015 = vrsqrt.pop %v4013
    %v4016 = vmul.f32 %v4000, %v4014
    %v4017 = vmul.f32 %v4001, %v4015
    %v4019 = vlaneseq
    %v4020 = vshrl.u32 %v4019, 7
    %v4021 = vsub.s32 0, %v4020
    %v4022 = vrot.slane %v3990, %v4021
    %v4024 = vmul.f32 %v4022, %v4016
    %v4025 = vmul.f32 %v4022, %v4017
    %v4027 = vlaneseq
    %v4028 = vshrl.u32 %v4027, 7
    %v4029 = vsub.s32 0, %v4028
    %v4030 = vrot.slane %v3991, %v4029
    %v4032 = vadd.f32 %v4024, %v4030
    %v4033 = vadd.f32 %v4025, %v4030
    %v4034 = vld [vmem:[%s17] sm:$0xff]
    %v4035 = vld [vmem:[%s17 + $0x8] sm:$0xff]
    %v4036 = vld [vmem:[%s17 + $0x10] sm:$0xff]
    %v4037 = vld [vmem:[%s17 + $0x18] sm:$0xff]
    %v4038 = vunpack.c.l.bf16 %v4034
    %v4039 = vunpack.c.h.bf16 %v4034
    %v4040 = vunpack.c.l.bf16 %v4035
    %v4041 = vunpack.c.h.bf16 %v4035
    %v4042 = vunpack.c.l.bf16 %v4036
    %v4043 = vunpack.c.h.bf16 %v4036
    %v4044 = vunpack.c.l.bf16 %v4037
    %v4045 = vunpack.c.h.bf16 %v4037
    %v4047 = vsel %vm229, %v4032, 0
    %v4050 = vsel %vm229, %v4033, 0
    %4052 = vmatprep.subr.mxu0 0.0
    %4053 = vmatpush1.msra.mxu0 0.0
    %4054 = vmatprep.subr.mxu0 0.0
    %4055 = vmatpush1.msra.mxu0 0.0
    %4056 = vmatprep.subr.mxu0 0.0
    %4057 = vmatpush1.msra.mxu0 0.0
    %4058 = vmatprep.subr.mxu0 0.0
    %4059 = vmatpush1.msra.mxu0 0.0
    %4060 = vmatprep.subr.mxu0 0.0
    %4061 = vmatpush1.msra.mxu0 0.0
    %4062 = vmatprep.subr.mxu0 0.0
    %4063 = vmatpush1.msra.mxu0 0.0
    %4064 = vmatprep.subr.mxu0 0.0
    %4065 = vmatpush1.msra.mxu0 0.0
    %4066 = vmatprep.subr.mxu0 0.0
    %4067 = vmatpush1.msra.mxu0 0.0
    %4068 = vmatprep.subr.mxu0 0.0
    %4069 = vmatpush1.msra.mxu0 0.0
    %4070 = vmatprep.subr.mxu0 0.0
    %4071 = vmatpush1.msra.mxu0 0.0
    %4072 = vmatprep.subr.mxu0 0.0
    %4073 = vmatpush1.msra.mxu0 0.0
    %4074 = vmatprep.subr.mxu0 0.0
    %4075 = vmatpush1.msra.mxu0 0.0
    %4076 = vmatprep.subr.mxu0 %v4045
    %4077 = vmatpush1.msra.mxu0 %v4044
    %4078 = vmatprep.subr.mxu0 %v4043
    %4079 = vmatpush1.msra.mxu0 %v4042
    %4080 = vmatprep.subr.mxu0 %v4041
    %4081 = vmatpush1.msra.mxu0 %v4040
    %4082 = vmatprep.subr.mxu0 %v4039
    %4083 = vmatpush1.msra.mxu0 %v4038
    %4084 = vmatprep.subr.mxu0 0.0
    %4085 = vmatpush2.msra.mxu0 0.0
    %4086 = vmatprep.subr.mxu0 0.0
    %4087 = vmatpush2.msra.mxu0 0.0
    %4088 = vmatprep.subr.mxu0 0.0
    %4089 = vmatpush2.msra.mxu0 0.0
    %4090 = vmatprep.subr.mxu0 0.0
    %4091 = vmatpush2.msra.mxu0 0.0
    %4092 = vmatprep.subr.mxu0 0.0
    %4093 = vmatpush2.msra.mxu0 0.0
    %4094 = vmatprep.subr.mxu0 0.0
    %4095 = vmatpush2.msra.mxu0 0.0
    %4096 = vmatprep.subr.mxu0 0.0
    %4097 = vmatpush2.msra.mxu0 0.0
    %4098 = vmatprep.subr.mxu0 0.0
    %4099 = vmatpush2.msra.mxu0 0.0
    %4100 = vmatprep.subr.mxu0 0.0
    %4101 = vmatpush2.msra.mxu0 0.0
    %4102 = vmatprep.subr.mxu0 0.0
    %4103 = vmatpush2.msra.mxu0 0.0
    %4104 = vmatprep.subr.mxu0 0.0
    %4105 = vmatpush2.msra.mxu0 0.0
    %4106 = vmatprep.subr.mxu0 0.0
    %4107 = vmatpush2.msra.mxu0 0.0
    %4108 = vmatprep.subr.mxu0 0.0
    %4109 = vmatpush2.msra.mxu0 0.0
    %4110 = vmatprep.subr.mxu0 0.0
    %4111 = vmatpush2.msra.mxu0 0.0
    %4112 = vmatprep.subr.mxu0 0.0
    %4113 = vmatpush2.msra.mxu0 0.0
    %4114 = vmatprep.subr.mxu0 0.0
    %4115 = vmatpush2.msra.mxu0 0.0
    %4116 = vmatprep.mubr.f32.mxu0 0.0
    %4117 = vmatmul.mubr.f32.gmra.mxu0 %v4047
    %v4118 = vpop.f32.mrf.mxu0
    %v4119 = vadd.f32 0.0, %v4118
    %v4120 = vpop.f32.mrf.mxu0
    %v4121 = vadd.f32 0.0, %v4120
    %4122 = vmatprep.mubr.f32.mxu0 0.0
    %4123 = vmatmul.mubr.f32.gmra.mxu0 %v4050
    %v4124 = vpop.f32.mrf.mxu0
    %v4125 = vadd.f32 0.0, %v4124
    %v4126 = vpop.f32.mrf.mxu0
    %v4127 = vadd.f32 0.0, %v4126
    %4128 = vdwg.mxu0
    %4129 = vst [vmem:[#allocation3] sm:$0xff] %v4119
    %4130 = vst [vmem:[#allocation3 + $0x8] sm:$0xff] %v4121
    %4131 = vst [vmem:[#allocation3 + $0x10] sm:$0xff] %v4125
    %4132 = vst [vmem:[#allocation3 + $0x18] sm:$0xff] %v4127
    // Predicated region
    $region74: #{tpu_custom_call.1} parent=1 // pred_check
      _
    $region75: #{tpu_custom_call.1} parent=1 // pred_check_branch
      %4134 = sbr.rel (0) target = $region77
    $region76: #{tpu_custom_call.1} parent=1 // pred_region
      %s4136 = ssub.s32 512, 512
      %4137 = vsyncadd [#allocation4], %s4136
      %s4138 = sshll.u32 [#allocation3], 4
      %s4139 = int_to_ptr.vmem [resolvable:$true] %s4138
      %4144 = dma.vmem_to_hbm [thread:$0]  %s4139, 512, %s18, [#allocation4], 256, 256, 16
    $region77: #{tpu_custom_call.1} parent=1 // pred_fallthru
      _
    // Predicated region
    $region78: #{tpu_custom_call.1} parent=1 // pred_check
      _
    $region79: #{tpu_custom_call.1} parent=1 // pred_check_branch
      %4146 = sbr.rel (0) target = $region81
    $region80: #{tpu_custom_call.1} parent=1 // pred_region
      %4147 = dma.done [#allocation4], 512
    $region81: #{tpu_custom_call.1} parent=1 // pred_fallthru
      _
    %4148 = vsyncpa [#allocation4], 1

</llo_original>
